<compile_context>
chip_gen: v6e
topology: v6e:2x2x1
jax: 0.10.0
libtpu: 0.0.40
codegen_flags: <defaults>
</compile_context>

<pallas_src>
import functools

import jax
import jax.numpy as jnp
from jax.experimental import pallas as pl


def _sigmoid_via_tanh(x):
    # sigmoid(x) == 0.5 * (1 + tanh(x/2)): one EUP tanh push instead of
    # exp + reciprocal, applied full-width over the whole 4H=128-lane gate vreg.
    return 0.5 * (jnp.tanh(0.5 * x) + 1.0)


# -----------------------------------------------------------------------------
# Fused kernel: L LSTM layers + Linear head, everything VMEM/vreg resident.
# -----------------------------------------------------------------------------
def _net_kernel(*refs, T, H, L, O):
    # refs layout:
    #   inputs : x, (wih_T, whh_T, bias) * L, wlin_T, blin
    #   outputs: out, h_n, c_n
    x_ref = refs[0]
    w_refs = refs[1:1 + 3 * L]
    wlin_ref = refs[1 + 3 * L]
    blin_ref = refs[2 + 3 * L]
    out_ref = refs[3 + 3 * L]
    h_ref = refs[4 + 3 * L]
    c_ref = refs[5 + 3 * L]

    B = x_ref.shape[0]
    in0 = x_ref.shape[2]

    ys = None  # per-timestep inputs of the current layer (list of (B,H) values)
    for l in range(L):                              # static layer loop
        wih = w_refs[3 * l][...].astype(jnp.float32)       # (in_dim, 4H)
        whh = w_refs[3 * l + 1][...].astype(jnp.float32)   # (H, 4H)
        bias = w_refs[3 * l + 2][...].astype(jnp.float32)  # (1, 4H)

        if l == 0:
            # Non-recurrent input projection hoisted out of the recurrence as
            # one (B*T, in) @ (in, 4H) matmul (single MXU pass).
            x = x_ref[...].astype(jnp.float32).reshape(B * T, in0)
            gx0 = jnp.dot(x, wih, preferred_element_type=jnp.float32) + bias
            gx0 = gx0.reshape(B, T, 4 * H)

        h = jnp.zeros((B, H), jnp.float32)
        c = jnp.zeros((B, H), jnp.float32)
        outs = []
        for t in range(T):                          # static unroll over time
            if l == 0:
                gx_t = gx0[:, t, :]                 # (B, 4H), ready up-front
            else:
                # Per-step projection from register values: layer l step t
                # depends only on layer l-1 step t -> wavefront dataflow,
                # no barrier on the previous layer's full sequence.
                gx_t = jnp.dot(ys[t], wih,
                               preferred_element_type=jnp.float32) + bias
            gates = gx_t + jnp.dot(h, whh, preferred_element_type=jnp.float32)

            sg = _sigmoid_via_tanh(gates)           # one full-width EUP push
            i_g = sg[:, 0 * H:1 * H]
            f_g = sg[:, 1 * H:2 * H]
            o_g = sg[:, 3 * H:4 * H]
            g_g = jnp.tanh(gates[:, 2 * H:3 * H])   # second EUP push

            c = f_g * c + i_g * g_g
            h = o_g * jnp.tanh(c)                   # third EUP push
            outs.append(h)                          # stays in vregs

        # Only the final state is ever stored.
        h_ref[l] = h.astype(h_ref.dtype)
        c_ref[l] = c.astype(c_ref.dtype)
        ys = outs

    # Fused Linear head: ONE (B*T, H) @ (H, O) matmul, single output write.
    y_all = jnp.stack(ys, axis=1).reshape(B * T, H)        # (B, T, H)->(B*T, H)
    wlin = wlin_ref[...].astype(jnp.float32)                # (H, O)
    blin = blin_ref[...].astype(jnp.float32)                # (1, O)
    head = jnp.dot(y_all, wlin, preferred_element_type=jnp.float32) + blin
    out_ref[...] = head.reshape(B, T, O).astype(out_ref.dtype)


# -----------------------------------------------------------------------------
# Wrapper: one pallas_call for the whole Net.forward (no grid, no scratch).
# -----------------------------------------------------------------------------
@jax.jit
def net_forward(x, params):
    """x: (B, T, input_size). Returns (linear_out (B,T,O), (h_n, c_n))."""
    B, T, _ = x.shape
    H = params["lstm"][0][1].shape[0]        # whh_T is (H, 4H)
    L = len(params["lstm"])
    O = params["w_lin_T"].shape[1]

    flat_w = []
    for (wih_T, whh_T, b) in params["lstm"]:
        flat_w += [wih_T, whh_T, b]

    kernel = functools.partial(_net_kernel, T=T, H=H, L=L, O=O)
    out, h_n, c_n = pl.pallas_call(
        kernel,
        out_shape=(jax.ShapeDtypeStruct((B, T, O), x.dtype),
                   jax.ShapeDtypeStruct((L, B, H), x.dtype),
                   jax.ShapeDtypeStruct((L, B, H), x.dtype)),
    )(x, *flat_w, params["w_lin_T"], params["b_lin"])
    return out, (h_n, c_n)


# -----------------------------------------------------------------------------
# Parameter init (deterministic, PyTorch-style uniform(-1/sqrt(H), 1/sqrt(H)))
# -----------------------------------------------------------------------------
def init_params(key, input_size, hidden_size, num_layers, output_size):
    k = 1.0 / jnp.sqrt(hidden_size)
    params = {"lstm": []}
    for layer in range(num_layers):
        in_sz = input_size if layer == 0 else hidden_size
        key, k1, k2, k3, k4 = jax.random.split(key, 5)
        w_ih = jax.random.uniform(k1, (4 * hidden_size, in_sz),
                                  jnp.float32, -k, k)
        w_hh = jax.random.uniform(k2, (4 * hidden_size, hidden_size),
                                  jnp.float32, -k, k)
        b_ih = jax.random.uniform(k3, (4 * hidden_size,), jnp.float32, -k, k)
        b_hh = jax.random.uniform(k4, (4 * hidden_size,), jnp.float32, -k, k)
        params["lstm"].append(
            (w_ih.T, w_hh.T, (b_ih + b_hh).reshape(1, 4 * hidden_size)))
    key, k5, k6 = jax.random.split(key, 3)
    w_lin = jax.random.uniform(k5, (output_size, hidden_size),
                               jnp.float32, -k, k)
    b_lin = jax.random.uniform(k6, (output_size,), jnp.float32, -k, k)
    params["w_lin_T"] = w_lin.T                       # (H, O)
    params["b_lin"] = b_lin.reshape(1, output_size)   # (1, O)
    return params


# -----------------------------------------------------------------------------
# Pure-JAX reference (same math) for a correctness sanity check
# -----------------------------------------------------------------------------
def net_reference(x, params):
    B, T, _ = x.shape
    layer_in = x
    h_list, c_list = [], []
    for (wih_T, whh_T, bias) in params["lstm"]:
        H = whh_T.shape[0]
        h = jnp.zeros((B, H), jnp.float32)
        c = jnp.zeros((B, H), jnp.float32)
        ys = []
        for t in range(T):
            gates = layer_in[:, t, :] @ wih_T + h @ whh_T + bias
            i_g = jax.nn.sigmoid(gates[:, 0 * H:1 * H])
            f_g = jax.nn.sigmoid(gates[:, 1 * H:2 * H])
            g_g = jnp.tanh(gates[:, 2 * H:3 * H])
            o_g = jax.nn.sigmoid(gates[:, 3 * H:4 * H])
            c = f_g * c + i_g * g_g
            h = o_g * jnp.tanh(c)
            ys.append(h)
        layer_in = jnp.stack(ys, axis=1)
        h_list.append(h)
        c_list.append(c)
    out = layer_in @ params["w_lin_T"] + params["b_lin"]
    return out, (jnp.stack(h_list, axis=0), jnp.stack(c_list, axis=0))


if __name__ == "__main__":
    # config: input_size=8, hidden_size=32, lstm_layers=2, output_size=1
    B, T, INPUT, HIDDEN, LAYERS, OUT = 2, 8, 8, 32, 2, 1

    key = jax.random.PRNGKey(0)
    key, xk = jax.random.split(key)
    x = jax.random.normal(xk, (B, T, INPUT), jnp.float32)

    params = init_params(key, INPUT, HIDDEN, LAYERS, OUT)

    linear_out, (h_n, c_n) = net_forward(x, params)
    jax.block_until_ready((linear_out, h_n, c_n))

    assert linear_out.shape == (B, T, OUT)
    assert h_n.shape == (LAYERS, B, HIDDEN)
    assert c_n.shape == (LAYERS, B, HIDDEN)

    # numerical sanity check vs pure-JAX reference
    ref_out, (ref_h, ref_c) = net_reference(x, params)
    err = max(float(jnp.max(jnp.abs(linear_out - ref_out))),
              float(jnp.max(jnp.abs(h_n - ref_h))),
              float(jnp.max(jnp.abs(c_n - ref_c))))
    assert err < 1e-3, f"mismatch vs reference: {err}"

    print("KERNEL_OK")
</pallas_src>

<mosaic_0001>
module attributes {stable_mosaic.version = 11 : i64} {
  func.func @_net_kernel(%arg0: memref<2x8x8xf32, #tpu.memory_space<vmem>>, %arg1: memref<8x128xf32, #tpu.memory_space<vmem>>, %arg2: memref<32x128xf32, #tpu.memory_space<vmem>>, %arg3: memref<1x128xf32, #tpu.memory_space<vmem>>, %arg4: memref<32x128xf32, #tpu.memory_space<vmem>>, %arg5: memref<32x128xf32, #tpu.memory_space<vmem>>, %arg6: memref<1x128xf32, #tpu.memory_space<vmem>>, %arg7: memref<32x1xf32, #tpu.memory_space<vmem>>, %arg8: memref<1x1xf32, #tpu.memory_space<vmem>>, %arg9: memref<2x8x1xf32, #tpu.memory_space<vmem>>, %arg10: memref<2x2x32xf32, #tpu.memory_space<vmem>>, %arg11: memref<2x2x32xf32, #tpu.memory_space<vmem>>) attributes {dimension_semantics = [], scalar_prefetch = 0 : i64, scratch_operands = 0 : i64, tpu.core_type = #tpu.core_type<tc>} {
    %c0 = arith.constant 0 : index
    %c0_0 = arith.constant 0 : index
    %0 = vector.load %arg1[%c0, %c0_0] : memref<8x128xf32, #tpu.memory_space<vmem>>, vector<8x128xf32>
    %c0_1 = arith.constant 0 : index
    %c0_2 = arith.constant 0 : index
    %1 = vector.load %arg2[%c0_1, %c0_2] : memref<32x128xf32, #tpu.memory_space<vmem>>, vector<32x128xf32>
    %c0_3 = arith.constant 0 : index
    %c0_4 = arith.constant 0 : index
    %2 = vector.load %arg3[%c0_3, %c0_4] : memref<1x128xf32, #tpu.memory_space<vmem>>, vector<1x128xf32>
    %c0_5 = arith.constant 0 : index
    %c0_6 = arith.constant 0 : index
    %c0_7 = arith.constant 0 : index
    %3 = vector.load %arg0[%c0_5, %c0_6, %c0_7] : memref<2x8x8xf32, #tpu.memory_space<vmem>>, vector<2x8x8xf32>
    %4 = vector.shape_cast %3 : vector<2x8x8xf32> to vector<16x8xf32>
    %cst = arith.constant dense<0.000000e+00> : vector<16x128xf32>
    %5 = tpu.matmul %4, %0, %cst {dimension_numbers = #tpu.dot_dimension_numbers<[1], [0], [0], [1], [0, 0, 1, 1], [], []>} : vector<16x8xf32>, vector<8x128xf32>, vector<16x128xf32> -> vector<16x128xf32>
    %6 = vector.broadcast %2 : vector<1x128xf32> to vector<16x128xf32>
    %7 = arith.addf %5, %6 : vector<16x128xf32>
    %8 = vector.shape_cast %7 : vector<16x128xf32> to vector<2x8x128xf32>
    %cst_8 = arith.constant 0.000000e+00 : f32
    %9 = vector.broadcast %cst_8 : f32 to vector<2x32xf32>
    %cst_9 = arith.constant 0.000000e+00 : f32
    %10 = vector.broadcast %cst_9 : f32 to vector<2x32xf32>
    %11 = vector.extract_strided_slice %8 {offsets = [0, 0, 0], sizes = [2, 1, 128], strides = [1, 1, 1]} : vector<2x8x128xf32> to vector<2x1x128xf32>
    %12 = vector.shape_cast %11 : vector<2x1x128xf32> to vector<2x128xf32>
    %cst_10 = arith.constant dense<0.000000e+00> : vector<2x128xf32>
    %13 = tpu.matmul %9, %1, %cst_10 {dimension_numbers = #tpu.dot_dimension_numbers<[1], [0], [0], [1], [0, 0, 1, 1], [], []>} : vector<2x32xf32>, vector<32x128xf32>, vector<2x128xf32> -> vector<2x128xf32>
    %14 = arith.addf %12, %13 : vector<2x128xf32>
    %cst_11 = arith.constant 5.000000e-01 : f32
    %15 = vector.broadcast %cst_11 : f32 to vector<2x128xf32>
    %16 = arith.mulf %15, %14 : vector<2x128xf32>
    %17 = math.tanh %16 : vector<2x128xf32>
    %cst_12 = arith.constant 1.000000e+00 : f32
    %18 = vector.broadcast %cst_12 : f32 to vector<2x128xf32>
    %19 = arith.addf %17, %18 : vector<2x128xf32>
    %cst_13 = arith.constant 5.000000e-01 : f32
    %20 = vector.broadcast %cst_13 : f32 to vector<2x128xf32>
    %21 = arith.mulf %20, %19 : vector<2x128xf32>
    %22 = vector.extract_strided_slice %21 {offsets = [0, 0], sizes = [2, 32], strides = [1, 1]} : vector<2x128xf32> to vector<2x32xf32>
    %23 = vector.extract_strided_slice %21 {offsets = [0, 32], sizes = [2, 32], strides = [1, 1]} : vector<2x128xf32> to vector<2x32xf32>
    %24 = vector.extract_strided_slice %21 {offsets = [0, 96], sizes = [2, 32], strides = [1, 1]} : vector<2x128xf32> to vector<2x32xf32>
    %25 = vector.extract_strided_slice %14 {offsets = [0, 64], sizes = [2, 32], strides = [1, 1]} : vector<2x128xf32> to vector<2x32xf32>
    %26 = math.tanh %25 : vector<2x32xf32>
    %27 = arith.mulf %23, %10 : vector<2x32xf32>
    %28 = arith.mulf %22, %26 : vector<2x32xf32>
    %29 = arith.addf %27, %28 : vector<2x32xf32>
    %30 = math.tanh %29 : vector<2x32xf32>
    %31 = arith.mulf %24, %30 : vector<2x32xf32>
    %32 = vector.extract_strided_slice %8 {offsets = [0, 1, 0], sizes = [2, 1, 128], strides = [1, 1, 1]} : vector<2x8x128xf32> to vector<2x1x128xf32>
    %33 = vector.shape_cast %32 : vector<2x1x128xf32> to vector<2x128xf32>
    %cst_14 = arith.constant dense<0.000000e+00> : vector<2x128xf32>
    %34 = tpu.matmul %31, %1, %cst_14 {dimension_numbers = #tpu.dot_dimension_numbers<[1], [0], [0], [1], [0, 0, 1, 1], [], []>} : vector<2x32xf32>, vector<32x128xf32>, vector<2x128xf32> -> vector<2x128xf32>
    %35 = arith.addf %33, %34 : vector<2x128xf32>
    %cst_15 = arith.constant 5.000000e-01 : f32
    %36 = vector.broadcast %cst_15 : f32 to vector<2x128xf32>
    %37 = arith.mulf %36, %35 : vector<2x128xf32>
    %38 = math.tanh %37 : vector<2x128xf32>
    %cst_16 = arith.constant 1.000000e+00 : f32
    %39 = vector.broadcast %cst_16 : f32 to vector<2x128xf32>
    %40 = arith.addf %38, %39 : vector<2x128xf32>
    %cst_17 = arith.constant 5.000000e-01 : f32
    %41 = vector.broadcast %cst_17 : f32 to vector<2x128xf32>
    %42 = arith.mulf %41, %40 : vector<2x128xf32>
    %43 = vector.extract_strided_slice %42 {offsets = [0, 0], sizes = [2, 32], strides = [1, 1]} : vector<2x128xf32> to vector<2x32xf32>
    %44 = vector.extract_strided_slice %42 {offsets = [0, 32], sizes = [2, 32], strides = [1, 1]} : vector<2x128xf32> to vector<2x32xf32>
    %45 = vector.extract_strided_slice %42 {offsets = [0, 96], sizes = [2, 32], strides = [1, 1]} : vector<2x128xf32> to vector<2x32xf32>
    %46 = vector.extract_strided_slice %35 {offsets = [0, 64], sizes = [2, 32], strides = [1, 1]} : vector<2x128xf32> to vector<2x32xf32>
    %47 = math.tanh %46 : vector<2x32xf32>
    %48 = arith.mulf %44, %29 : vector<2x32xf32>
    %49 = arith.mulf %43, %47 : vector<2x32xf32>
    %50 = arith.addf %48, %49 : vector<2x32xf32>
    %51 = math.tanh %50 : vector<2x32xf32>
    %52 = arith.mulf %45, %51 : vector<2x32xf32>
    %53 = vector.extract_strided_slice %8 {offsets = [0, 2, 0], sizes = [2, 1, 128], strides = [1, 1, 1]} : vector<2x8x128xf32> to vector<2x1x128xf32>
    %54 = vector.shape_cast %53 : vector<2x1x128xf32> to vector<2x128xf32>
    %cst_18 = arith.constant dense<0.000000e+00> : vector<2x128xf32>
    %55 = tpu.matmul %52, %1, %cst_18 {dimension_numbers = #tpu.dot_dimension_numbers<[1], [0], [0], [1], [0, 0, 1, 1], [], []>} : vector<2x32xf32>, vector<32x128xf32>, vector<2x128xf32> -> vector<2x128xf32>
    %56 = arith.addf %54, %55 : vector<2x128xf32>
    %cst_19 = arith.constant 5.000000e-01 : f32
    %57 = vector.broadcast %cst_19 : f32 to vector<2x128xf32>
    %58 = arith.mulf %57, %56 : vector<2x128xf32>
    %59 = math.tanh %58 : vector<2x128xf32>
    %cst_20 = arith.constant 1.000000e+00 : f32
    %60 = vector.broadcast %cst_20 : f32 to vector<2x128xf32>
    %61 = arith.addf %59, %60 : vector<2x128xf32>
    %cst_21 = arith.constant 5.000000e-01 : f32
    %62 = vector.broadcast %cst_21 : f32 to vector<2x128xf32>
    %63 = arith.mulf %62, %61 : vector<2x128xf32>
    %64 = vector.extract_strided_slice %63 {offsets = [0, 0], sizes = [2, 32], strides = [1, 1]} : vector<2x128xf32> to vector<2x32xf32>
    %65 = vector.extract_strided_slice %63 {offsets = [0, 32], sizes = [2, 32], strides = [1, 1]} : vector<2x128xf32> to vector<2x32xf32>
    %66 = vector.extract_strided_slice %63 {offsets = [0, 96], sizes = [2, 32], strides = [1, 1]} : vector<2x128xf32> to vector<2x32xf32>
    %67 = vector.extract_strided_slice %56 {offsets = [0, 64], sizes = [2, 32], strides = [1, 1]} : vector<2x128xf32> to vector<2x32xf32>
    %68 = math.tanh %67 : vector<2x32xf32>
    %69 = arith.mulf %65, %50 : vector<2x32xf32>
    %70 = arith.mulf %64, %68 : vector<2x32xf32>
    %71 = arith.addf %69, %70 : vector<2x32xf32>
    %72 = math.tanh %71 : vector<2x32xf32>
    %73 = arith.mulf %66, %72 : vector<2x32xf32>
    %74 = vector.extract_strided_slice %8 {offsets = [0, 3, 0], sizes = [2, 1, 128], strides = [1, 1, 1]} : vector<2x8x128xf32> to vector<2x1x128xf32>
    %75 = vector.shape_cast %74 : vector<2x1x128xf32> to vector<2x128xf32>
    %cst_22 = arith.constant dense<0.000000e+00> : vector<2x128xf32>
    %76 = tpu.matmul %73, %1, %cst_22 {dimension_numbers = #tpu.dot_dimension_numbers<[1], [0], [0], [1], [0, 0, 1, 1], [], []>} : vector<2x32xf32>, vector<32x128xf32>, vector<2x128xf32> -> vector<2x128xf32>
    %77 = arith.addf %75, %76 : vector<2x128xf32>
    %cst_23 = arith.constant 5.000000e-01 : f32
    %78 = vector.broadcast %cst_23 : f32 to vector<2x128xf32>
    %79 = arith.mulf %78, %77 : vector<2x128xf32>
    %80 = math.tanh %79 : vector<2x128xf32>
    %cst_24 = arith.constant 1.000000e+00 : f32
    %81 = vector.broadcast %cst_24 : f32 to vector<2x128xf32>
    %82 = arith.addf %80, %81 : vector<2x128xf32>
    %cst_25 = arith.constant 5.000000e-01 : f32
    %83 = vector.broadcast %cst_25 : f32 to vector<2x128xf32>
    %84 = arith.mulf %83, %82 : vector<2x128xf32>
    %85 = vector.extract_strided_slice %84 {offsets = [0, 0], sizes = [2, 32], strides = [1, 1]} : vector<2x128xf32> to vector<2x32xf32>
    %86 = vector.extract_strided_slice %84 {offsets = [0, 32], sizes = [2, 32], strides = [1, 1]} : vector<2x128xf32> to vector<2x32xf32>
    %87 = vector.extract_strided_slice %84 {offsets = [0, 96], sizes = [2, 32], strides = [1, 1]} : vector<2x128xf32> to vector<2x32xf32>
    %88 = vector.extract_strided_slice %77 {offsets = [0, 64], sizes = [2, 32], strides = [1, 1]} : vector<2x128xf32> to vector<2x32xf32>
    %89 = math.tanh %88 : vector<2x32xf32>
    %90 = arith.mulf %86, %71 : vector<2x32xf32>
    %91 = arith.mulf %85, %89 : vector<2x32xf32>
    %92 = arith.addf %90, %91 : vector<2x32xf32>
    %93 = math.tanh %92 : vector<2x32xf32>
    %94 = arith.mulf %87, %93 : vector<2x32xf32>
    %95 = vector.extract_strided_slice %8 {offsets = [0, 4, 0], sizes = [2, 1, 128], strides = [1, 1, 1]} : vector<2x8x128xf32> to vector<2x1x128xf32>
    %96 = vector.shape_cast %95 : vector<2x1x128xf32> to vector<2x128xf32>
    %cst_26 = arith.constant dense<0.000000e+00> : vector<2x128xf32>
    %97 = tpu.matmul %94, %1, %cst_26 {dimension_numbers = #tpu.dot_dimension_numbers<[1], [0], [0], [1], [0, 0, 1, 1], [], []>} : vector<2x32xf32>, vector<32x128xf32>, vector<2x128xf32> -> vector<2x128xf32>
    %98 = arith.addf %96, %97 : vector<2x128xf32>
    %cst_27 = arith.constant 5.000000e-01 : f32
    %99 = vector.broadcast %cst_27 : f32 to vector<2x128xf32>
    %100 = arith.mulf %99, %98 : vector<2x128xf32>
    %101 = math.tanh %100 : vector<2x128xf32>
    %cst_28 = arith.constant 1.000000e+00 : f32
    %102 = vector.broadcast %cst_28 : f32 to vector<2x128xf32>
    %103 = arith.addf %101, %102 : vector<2x128xf32>
    %cst_29 = arith.constant 5.000000e-01 : f32
    %104 = vector.broadcast %cst_29 : f32 to vector<2x128xf32>
    %105 = arith.mulf %104, %103 : vector<2x128xf32>
    %106 = vector.extract_strided_slice %105 {offsets = [0, 0], sizes = [2, 32], strides = [1, 1]} : vector<2x128xf32> to vector<2x32xf32>
    %107 = vector.extract_strided_slice %105 {offsets = [0, 32], sizes = [2, 32], strides = [1, 1]} : vector<2x128xf32> to vector<2x32xf32>
    %108 = vector.extract_strided_slice %105 {offsets = [0, 96], sizes = [2, 32], strides = [1, 1]} : vector<2x128xf32> to vector<2x32xf32>
    %109 = vector.extract_strided_slice %98 {offsets = [0, 64], sizes = [2, 32], strides = [1, 1]} : vector<2x128xf32> to vector<2x32xf32>
    %110 = math.tanh %109 : vector<2x32xf32>
    %111 = arith.mulf %107, %92 : vector<2x32xf32>
    %112 = arith.mulf %106, %110 : vector<2x32xf32>
    %113 = arith.addf %111, %112 : vector<2x32xf32>
    %114 = math.tanh %113 : vector<2x32xf32>
    %115 = arith.mulf %108, %114 : vector<2x32xf32>
    %116 = vector.extract_strided_slice %8 {offsets = [0, 5, 0], sizes = [2, 1, 128], strides = [1, 1, 1]} : vector<2x8x128xf32> to vector<2x1x128xf32>
    %117 = vector.shape_cast %116 : vector<2x1x128xf32> to vector<2x128xf32>
    %cst_30 = arith.constant dense<0.000000e+00> : vector<2x128xf32>
    %118 = tpu.matmul %115, %1, %cst_30 {dimension_numbers = #tpu.dot_dimension_numbers<[1], [0], [0], [1], [0, 0, 1, 1], [], []>} : vector<2x32xf32>, vector<32x128xf32>, vector<2x128xf32> -> vector<2x128xf32>
    %119 = arith.addf %117, %118 : vector<2x128xf32>
    %cst_31 = arith.constant 5.000000e-01 : f32
    %120 = vector.broadcast %cst_31 : f32 to vector<2x128xf32>
    %121 = arith.mulf %120, %119 : vector<2x128xf32>
    %122 = math.tanh %121 : vector<2x128xf32>
    %cst_32 = arith.constant 1.000000e+00 : f32
    %123 = vector.broadcast %cst_32 : f32 to vector<2x128xf32>
    %124 = arith.addf %122, %123 : vector<2x128xf32>
    %cst_33 = arith.constant 5.000000e-01 : f32
    %125 = vector.broadcast %cst_33 : f32 to vector<2x128xf32>
    %126 = arith.mulf %125, %124 : vector<2x128xf32>
    %127 = vector.extract_strided_slice %126 {offsets = [0, 0], sizes = [2, 32], strides = [1, 1]} : vector<2x128xf32> to vector<2x32xf32>
    %128 = vector.extract_strided_slice %126 {offsets = [0, 32], sizes = [2, 32], strides = [1, 1]} : vector<2x128xf32> to vector<2x32xf32>
    %129 = vector.extract_strided_slice %126 {offsets = [0, 96], sizes = [2, 32], strides = [1, 1]} : vector<2x128xf32> to vector<2x32xf32>
    %130 = vector.extract_strided_slice %119 {offsets = [0, 64], sizes = [2, 32], strides = [1, 1]} : vector<2x128xf32> to vector<2x32xf32>
    %131 = math.tanh %130 : vector<2x32xf32>
    %132 = arith.mulf %128, %113 : vector<2x32xf32>
    %133 = arith.mulf %127, %131 : vector<2x32xf32>
    %134 = arith.addf %132, %133 : vector<2x32xf32>
    %135 = math.tanh %134 : vector<2x32xf32>
    %136 = arith.mulf %129, %135 : vector<2x32xf32>
    %137 = vector.extract_strided_slice %8 {offsets = [0, 6, 0], sizes = [2, 1, 128], strides = [1, 1, 1]} : vector<2x8x128xf32> to vector<2x1x128xf32>
    %138 = vector.shape_cast %137 : vector<2x1x128xf32> to vector<2x128xf32>
    %cst_34 = arith.constant dense<0.000000e+00> : vector<2x128xf32>
    %139 = tpu.matmul %136, %1, %cst_34 {dimension_numbers = #tpu.dot_dimension_numbers<[1], [0], [0], [1], [0, 0, 1, 1], [], []>} : vector<2x32xf32>, vector<32x128xf32>, vector<2x128xf32> -> vector<2x128xf32>
    %140 = arith.addf %138, %139 : vector<2x128xf32>
    %cst_35 = arith.constant 5.000000e-01 : f32
    %141 = vector.broadcast %cst_35 : f32 to vector<2x128xf32>
    %142 = arith.mulf %141, %140 : vector<2x128xf32>
    %143 = math.tanh %142 : vector<2x128xf32>
    %cst_36 = arith.constant 1.000000e+00 : f32
    %144 = vector.broadcast %cst_36 : f32 to vector<2x128xf32>
    %145 = arith.addf %143, %144 : vector<2x128xf32>
    %cst_37 = arith.constant 5.000000e-01 : f32
    %146 = vector.broadcast %cst_37 : f32 to vector<2x128xf32>
    %147 = arith.mulf %146, %145 : vector<2x128xf32>
    %148 = vector.extract_strided_slice %147 {offsets = [0, 0], sizes = [2, 32], strides = [1, 1]} : vector<2x128xf32> to vector<2x32xf32>
    %149 = vector.extract_strided_slice %147 {offsets = [0, 32], sizes = [2, 32], strides = [1, 1]} : vector<2x128xf32> to vector<2x32xf32>
    %150 = vector.extract_strided_slice %147 {offsets = [0, 96], sizes = [2, 32], strides = [1, 1]} : vector<2x128xf32> to vector<2x32xf32>
    %151 = vector.extract_strided_slice %140 {offsets = [0, 64], sizes = [2, 32], strides = [1, 1]} : vector<2x128xf32> to vector<2x32xf32>
    %152 = math.tanh %151 : vector<2x32xf32>
    %153 = arith.mulf %149, %134 : vector<2x32xf32>
    %154 = arith.mulf %148, %152 : vector<2x32xf32>
    %155 = arith.addf %153, %154 : vector<2x32xf32>
    %156 = math.tanh %155 : vector<2x32xf32>
    %157 = arith.mulf %150, %156 : vector<2x32xf32>
    %158 = vector.extract_strided_slice %8 {offsets = [0, 7, 0], sizes = [2, 1, 128], strides = [1, 1, 1]} : vector<2x8x128xf32> to vector<2x1x128xf32>
    %159 = vector.shape_cast %158 : vector<2x1x128xf32> to vector<2x128xf32>
    %cst_38 = arith.constant dense<0.000000e+00> : vector<2x128xf32>
    %160 = tpu.matmul %157, %1, %cst_38 {dimension_numbers = #tpu.dot_dimension_numbers<[1], [0], [0], [1], [0, 0, 1, 1], [], []>} : vector<2x32xf32>, vector<32x128xf32>, vector<2x128xf32> -> vector<2x128xf32>
    %161 = arith.addf %159, %160 : vector<2x128xf32>
    %cst_39 = arith.constant 5.000000e-01 : f32
    %162 = vector.broadcast %cst_39 : f32 to vector<2x128xf32>
    %163 = arith.mulf %162, %161 : vector<2x128xf32>
    %164 = math.tanh %163 : vector<2x128xf32>
    %cst_40 = arith.constant 1.000000e+00 : f32
    %165 = vector.broadcast %cst_40 : f32 to vector<2x128xf32>
    %166 = arith.addf %164, %165 : vector<2x128xf32>
    %cst_41 = arith.constant 5.000000e-01 : f32
    %167 = vector.broadcast %cst_41 : f32 to vector<2x128xf32>
    %168 = arith.mulf %167, %166 : vector<2x128xf32>
    %169 = vector.extract_strided_slice %168 {offsets = [0, 0], sizes = [2, 32], strides = [1, 1]} : vector<2x128xf32> to vector<2x32xf32>
    %170 = vector.extract_strided_slice %168 {offsets = [0, 32], sizes = [2, 32], strides = [1, 1]} : vector<2x128xf32> to vector<2x32xf32>
    %171 = vector.extract_strided_slice %168 {offsets = [0, 96], sizes = [2, 32], strides = [1, 1]} : vector<2x128xf32> to vector<2x32xf32>
    %172 = vector.extract_strided_slice %161 {offsets = [0, 64], sizes = [2, 32], strides = [1, 1]} : vector<2x128xf32> to vector<2x32xf32>
    %173 = math.tanh %172 : vector<2x32xf32>
    %174 = arith.mulf %170, %155 : vector<2x32xf32>
    %175 = arith.mulf %169, %173 : vector<2x32xf32>
    %176 = arith.addf %174, %175 : vector<2x32xf32>
    %177 = math.tanh %176 : vector<2x32xf32>
    %178 = arith.mulf %171, %177 : vector<2x32xf32>
    %c0_42 = arith.constant 0 : index
    %c0_43 = arith.constant 0 : index
    %c0_44 = arith.constant 0 : index
    %179 = vector.load %arg10[%c0_42, %c0_43, %c0_44] : memref<2x2x32xf32, #tpu.memory_space<vmem>>, vector<1x2x32xf32>
    %180 = vector.shape_cast %179 : vector<1x2x32xf32> to vector<2x32xf32>
    %181 = vector.shape_cast %178 : vector<2x32xf32> to vector<1x2x32xf32>
    tpu.vector_store %arg10[%c0_42, %c0_43, %c0_44], %181 {strides = array<i32>} : memref<2x2x32xf32, #tpu.memory_space<vmem>>, vector<1x2x32xf32>,
    %c0_45 = arith.constant 0 : index
    %c0_46 = arith.constant 0 : index
    %c0_47 = arith.constant 0 : index
    %182 = vector.load %arg11[%c0_45, %c0_46, %c0_47] : memref<2x2x32xf32, #tpu.memory_space<vmem>>, vector<1x2x32xf32>
    %183 = vector.shape_cast %182 : vector<1x2x32xf32> to vector<2x32xf32>
    %184 = vector.shape_cast %176 : vector<2x32xf32> to vector<1x2x32xf32>
    tpu.vector_store %arg11[%c0_45, %c0_46, %c0_47], %184 {strides = array<i32>} : memref<2x2x32xf32, #tpu.memory_space<vmem>>, vector<1x2x32xf32>,
    %c0_48 = arith.constant 0 : index
    %c0_49 = arith.constant 0 : index
    %185 = vector.load %arg4[%c0_48, %c0_49] : memref<32x128xf32, #tpu.memory_space<vmem>>, vector<32x128xf32>
    %c0_50 = arith.constant 0 : index
    %c0_51 = arith.constant 0 : index
    %186 = vector.load %arg5[%c0_50, %c0_51] : memref<32x128xf32, #tpu.memory_space<vmem>>, vector<32x128xf32>
    %c0_52 = arith.constant 0 : index
    %c0_53 = arith.constant 0 : index
    %187 = vector.load %arg6[%c0_52, %c0_53] : memref<1x128xf32, #tpu.memory_space<vmem>>, vector<1x128xf32>
    %cst_54 = arith.constant 0.000000e+00 : f32
    %188 = vector.broadcast %cst_54 : f32 to vector<2x32xf32>
    %cst_55 = arith.constant 0.000000e+00 : f32
    %189 = vector.broadcast %cst_55 : f32 to vector<2x32xf32>
    %cst_56 = arith.constant dense<0.000000e+00> : vector<2x128xf32>
    %190 = tpu.matmul %31, %185, %cst_56 {dimension_numbers = #tpu.dot_dimension_numbers<[1], [0], [0], [1], [0, 0, 1, 1], [], []>} : vector<2x32xf32>, vector<32x128xf32>, vector<2x128xf32> -> vector<2x128xf32>
    %191 = vector.broadcast %187 : vector<1x128xf32> to vector<2x128xf32>
    %192 = arith.addf %190, %191 : vector<2x128xf32>
    %cst_57 = arith.constant dense<0.000000e+00> : vector<2x128xf32>
    %193 = tpu.matmul %188, %186, %cst_57 {dimension_numbers = #tpu.dot_dimension_numbers<[1], [0], [0], [1], [0, 0, 1, 1], [], []>} : vector<2x32xf32>, vector<32x128xf32>, vector<2x128xf32> -> vector<2x128xf32>
    %194 = arith.addf %192, %193 : vector<2x128xf32>
    %cst_58 = arith.constant 5.000000e-01 : f32
    %195 = vector.broadcast %cst_58 : f32 to vector<2x128xf32>
    %196 = arith.mulf %195, %194 : vector<2x128xf32>
    %197 = math.tanh %196 : vector<2x128xf32>
    %cst_59 = arith.constant 1.000000e+00 : f32
    %198 = vector.broadcast %cst_59 : f32 to vector<2x128xf32>
    %199 = arith.addf %197, %198 : vector<2x128xf32>
    %cst_60 = arith.constant 5.000000e-01 : f32
    %200 = vector.broadcast %cst_60 : f32 to vector<2x128xf32>
    %201 = arith.mulf %200, %199 : vector<2x128xf32>
    %202 = vector.extract_strided_slice %201 {offsets = [0, 0], sizes = [2, 32], strides = [1, 1]} : vector<2x128xf32> to vector<2x32xf32>
    %203 = vector.extract_strided_slice %201 {offsets = [0, 32], sizes = [2, 32], strides = [1, 1]} : vector<2x128xf32> to vector<2x32xf32>
    %204 = vector.extract_strided_slice %201 {offsets = [0, 96], sizes = [2, 32], strides = [1, 1]} : vector<2x128xf32> to vector<2x32xf32>
    %205 = vector.extract_strided_slice %194 {offsets = [0, 64], sizes = [2, 32], strides = [1, 1]} : vector<2x128xf32> to vector<2x32xf32>
    %206 = math.tanh %205 : vector<2x32xf32>
    %207 = arith.mulf %203, %189 : vector<2x32xf32>
    %208 = arith.mulf %202, %206 : vector<2x32xf32>
    %209 = arith.addf %207, %208 : vector<2x32xf32>
    %210 = math.tanh %209 : vector<2x32xf32>
    %211 = arith.mulf %204, %210 : vector<2x32xf32>
    %cst_61 = arith.constant dense<0.000000e+00> : vector<2x128xf32>
    %212 = tpu.matmul %52, %185, %cst_61 {dimension_numbers = #tpu.dot_dimension_numbers<[1], [0], [0], [1], [0, 0, 1, 1], [], []>} : vector<2x32xf32>, vector<32x128xf32>, vector<2x128xf32> -> vector<2x128xf32>
    %213 = vector.broadcast %187 : vector<1x128xf32> to vector<2x128xf32>
    %214 = arith.addf %212, %213 : vector<2x128xf32>
    %cst_62 = arith.constant dense<0.000000e+00> : vector<2x128xf32>
    %215 = tpu.matmul %211, %186, %cst_62 {dimension_numbers = #tpu.dot_dimension_numbers<[1], [0], [0], [1], [0, 0, 1, 1], [], []>} : vector<2x32xf32>, vector<32x128xf32>, vector<2x128xf32> -> vector<2x128xf32>
    %216 = arith.addf %214, %215 : vector<2x128xf32>
    %cst_63 = arith.constant 5.000000e-01 : f32
    %217 = vector.broadcast %cst_63 : f32 to vector<2x128xf32>
    %218 = arith.mulf %217, %216 : vector<2x128xf32>
    %219 = math.tanh %218 : vector<2x128xf32>
    %cst_64 = arith.constant 1.000000e+00 : f32
    %220 = vector.broadcast %cst_64 : f32 to vector<2x128xf32>
    %221 = arith.addf %219, %220 : vector<2x128xf32>
    %cst_65 = arith.constant 5.000000e-01 : f32
    %222 = vector.broadcast %cst_65 : f32 to vector<2x128xf32>
    %223 = arith.mulf %222, %221 : vector<2x128xf32>
    %224 = vector.extract_strided_slice %223 {offsets = [0, 0], sizes = [2, 32], strides = [1, 1]} : vector<2x128xf32> to vector<2x32xf32>
    %225 = vector.extract_strided_slice %223 {offsets = [0, 32], sizes = [2, 32], strides = [1, 1]} : vector<2x128xf32> to vector<2x32xf32>
    %226 = vector.extract_strided_slice %223 {offsets = [0, 96], sizes = [2, 32], strides = [1, 1]} : vector<2x128xf32> to vector<2x32xf32>
    %227 = vector.extract_strided_slice %216 {offsets = [0, 64], sizes = [2, 32], strides = [1, 1]} : vector<2x128xf32> to vector<2x32xf32>
    %228 = math.tanh %227 : vector<2x32xf32>
    %229 = arith.mulf %225, %209 : vector<2x32xf32>
    %230 = arith.mulf %224, %228 : vector<2x32xf32>
    %231 = arith.addf %229, %230 : vector<2x32xf32>
    %232 = math.tanh %231 : vector<2x32xf32>
    %233 = arith.mulf %226, %232 : vector<2x32xf32>
    %cst_66 = arith.constant dense<0.000000e+00> : vector<2x128xf32>
    %234 = tpu.matmul %73, %185, %cst_66 {dimension_numbers = #tpu.dot_dimension_numbers<[1], [0], [0], [1], [0, 0, 1, 1], [], []>} : vector<2x32xf32>, vector<32x128xf32>, vector<2x128xf32> -> vector<2x128xf32>
    %235 = vector.broadcast %187 : vector<1x128xf32> to vector<2x128xf32>
    %236 = arith.addf %234, %235 : vector<2x128xf32>
    %cst_67 = arith.constant dense<0.000000e+00> : vector<2x128xf32>
    %237 = tpu.matmul %233, %186, %cst_67 {dimension_numbers = #tpu.dot_dimension_numbers<[1], [0], [0], [1], [0, 0, 1, 1], [], []>} : vector<2x32xf32>, vector<32x128xf32>, vector<2x128xf32> -> vector<2x128xf32>
    %238 = arith.addf %236, %237 : vector<2x128xf32>
    %cst_68 = arith.constant 5.000000e-01 : f32
    %239 = vector.broadcast %cst_68 : f32 to vector<2x128xf32>
    %240 = arith.mulf %239, %238 : vector<2x128xf32>
    %241 = math.tanh %240 : vector<2x128xf32>
    %cst_69 = arith.constant 1.000000e+00 : f32
    %242 = vector.broadcast %cst_69 : f32 to vector<2x128xf32>
    %243 = arith.addf %241, %242 : vector<2x128xf32>
    %cst_70 = arith.constant 5.000000e-01 : f32
    %244 = vector.broadcast %cst_70 : f32 to vector<2x128xf32>
    %245 = arith.mulf %244, %243 : vector<2x128xf32>
    %246 = vector.extract_strided_slice %245 {offsets = [0, 0], sizes = [2, 32], strides = [1, 1]} : vector<2x128xf32> to vector<2x32xf32>
    %247 = vector.extract_strided_slice %245 {offsets = [0, 32], sizes = [2, 32], strides = [1, 1]} : vector<2x128xf32> to vector<2x32xf32>
    %248 = vector.extract_strided_slice %245 {offsets = [0, 96], sizes = [2, 32], strides = [1, 1]} : vector<2x128xf32> to vector<2x32xf32>
    %249 = vector.extract_strided_slice %238 {offsets = [0, 64], sizes = [2, 32], strides = [1, 1]} : vector<2x128xf32> to vector<2x32xf32>
    %250 = math.tanh %249 : vector<2x32xf32>
    %251 = arith.mulf %247, %231 : vector<2x32xf32>
    %252 = arith.mulf %246, %250 : vector<2x32xf32>
    %253 = arith.addf %251, %252 : vector<2x32xf32>
    %254 = math.tanh %253 : vector<2x32xf32>
    %255 = arith.mulf %248, %254 : vector<2x32xf32>
    %cst_71 = arith.constant dense<0.000000e+00> : vector<2x128xf32>
    %256 = tpu.matmul %94, %185, %cst_71 {dimension_numbers = #tpu.dot_dimension_numbers<[1], [0], [0], [1], [0, 0, 1, 1], [], []>} : vector<2x32xf32>, vector<32x128xf32>, vector<2x128xf32> -> vector<2x128xf32>
    %257 = vector.broadcast %187 : vector<1x128xf32> to vector<2x128xf32>
    %258 = arith.addf %256, %257 : vector<2x128xf32>
    %cst_72 = arith.constant dense<0.000000e+00> : vector<2x128xf32>
    %259 = tpu.matmul %255, %186, %cst_72 {dimension_numbers = #tpu.dot_dimension_numbers<[1], [0], [0], [1], [0, 0, 1, 1], [], []>} : vector<2x32xf32>, vector<32x128xf32>, vector<2x128xf32> -> vector<2x128xf32>
    %260 = arith.addf %258, %259 : vector<2x128xf32>
    %cst_73 = arith.constant 5.000000e-01 : f32
    %261 = vector.broadcast %cst_73 : f32 to vector<2x128xf32>
    %262 = arith.mulf %261, %260 : vector<2x128xf32>
    %263 = math.tanh %262 : vector<2x128xf32>
    %cst_74 = arith.constant 1.000000e+00 : f32
    %264 = vector.broadcast %cst_74 : f32 to vector<2x128xf32>
    %265 = arith.addf %263, %264 : vector<2x128xf32>
    %cst_75 = arith.constant 5.000000e-01 : f32
    %266 = vector.broadcast %cst_75 : f32 to vector<2x128xf32>
    %267 = arith.mulf %266, %265 : vector<2x128xf32>
    %268 = vector.extract_strided_slice %267 {offsets = [0, 0], sizes = [2, 32], strides = [1, 1]} : vector<2x128xf32> to vector<2x32xf32>
    %269 = vector.extract_strided_slice %267 {offsets = [0, 32], sizes = [2, 32], strides = [1, 1]} : vector<2x128xf32> to vector<2x32xf32>
    %270 = vector.extract_strided_slice %267 {offsets = [0, 96], sizes = [2, 32], strides = [1, 1]} : vector<2x128xf32> to vector<2x32xf32>
    %271 = vector.extract_strided_slice %260 {offsets = [0, 64], sizes = [2, 32], strides = [1, 1]} : vector<2x128xf32> to vector<2x32xf32>
    %272 = math.tanh %271 : vector<2x32xf32>
    %273 = arith.mulf %269, %253 : vector<2x32xf32>
    %274 = arith.mulf %268, %272 : vector<2x32xf32>
    %275 = arith.addf %273, %274 : vector<2x32xf32>
    %276 = math.tanh %275 : vector<2x32xf32>
    %277 = arith.mulf %270, %276 : vector<2x32xf32>
    %cst_76 = arith.constant dense<0.000000e+00> : vector<2x128xf32>
    %278 = tpu.matmul %115, %185, %cst_76 {dimension_numbers = #tpu.dot_dimension_numbers<[1], [0], [0], [1], [0, 0, 1, 1], [], []>} : vector<2x32xf32>, vector<32x128xf32>, vector<2x128xf32> -> vector<2x128xf32>
    %279 = vector.broadcast %187 : vector<1x128xf32> to vector<2x128xf32>
    %280 = arith.addf %278, %279 : vector<2x128xf32>
    %cst_77 = arith.constant dense<0.000000e+00> : vector<2x128xf32>
    %281 = tpu.matmul %277, %186, %cst_77 {dimension_numbers = #tpu.dot_dimension_numbers<[1], [0], [0], [1], [0, 0, 1, 1], [], []>} : vector<2x32xf32>, vector<32x128xf32>, vector<2x128xf32> -> vector<2x128xf32>
    %282 = arith.addf %280, %281 : vector<2x128xf32>
    %cst_78 = arith.constant 5.000000e-01 : f32
    %283 = vector.broadcast %cst_78 : f32 to vector<2x128xf32>
    %284 = arith.mulf %283, %282 : vector<2x128xf32>
    %285 = math.tanh %284 : vector<2x128xf32>
    %cst_79 = arith.constant 1.000000e+00 : f32
    %286 = vector.broadcast %cst_79 : f32 to vector<2x128xf32>
    %287 = arith.addf %285, %286 : vector<2x128xf32>
    %cst_80 = arith.constant 5.000000e-01 : f32
    %288 = vector.broadcast %cst_80 : f32 to vector<2x128xf32>
    %289 = arith.mulf %288, %287 : vector<2x128xf32>
    %290 = vector.extract_strided_slice %289 {offsets = [0, 0], sizes = [2, 32], strides = [1, 1]} : vector<2x128xf32> to vector<2x32xf32>
    %291 = vector.extract_strided_slice %289 {offsets = [0, 32], sizes = [2, 32], strides = [1, 1]} : vector<2x128xf32> to vector<2x32xf32>
    %292 = vector.extract_strided_slice %289 {offsets = [0, 96], sizes = [2, 32], strides = [1, 1]} : vector<2x128xf32> to vector<2x32xf32>
    %293 = vector.extract_strided_slice %282 {offsets = [0, 64], sizes = [2, 32], strides = [1, 1]} : vector<2x128xf32> to vector<2x32xf32>
    %294 = math.tanh %293 : vector<2x32xf32>
    %295 = arith.mulf %291, %275 : vector<2x32xf32>
    %296 = arith.mulf %290, %294 : vector<2x32xf32>
    %297 = arith.addf %295, %296 : vector<2x32xf32>
    %298 = math.tanh %297 : vector<2x32xf32>
    %299 = arith.mulf %292, %298 : vector<2x32xf32>
    %cst_81 = arith.constant dense<0.000000e+00> : vector<2x128xf32>
    %300 = tpu.matmul %136, %185, %cst_81 {dimension_numbers = #tpu.dot_dimension_numbers<[1], [0], [0], [1], [0, 0, 1, 1], [], []>} : vector<2x32xf32>, vector<32x128xf32>, vector<2x128xf32> -> vector<2x128xf32>
    %301 = vector.broadcast %187 : vector<1x128xf32> to vector<2x128xf32>
    %302 = arith.addf %300, %301 : vector<2x128xf32>
    %cst_82 = arith.constant dense<0.000000e+00> : vector<2x128xf32>
    %303 = tpu.matmul %299, %186, %cst_82 {dimension_numbers = #tpu.dot_dimension_numbers<[1], [0], [0], [1], [0, 0, 1, 1], [], []>} : vector<2x32xf32>, vector<32x128xf32>, vector<2x128xf32> -> vector<2x128xf32>
    %304 = arith.addf %302, %303 : vector<2x128xf32>
    %cst_83 = arith.constant 5.000000e-01 : f32
    %305 = vector.broadcast %cst_83 : f32 to vector<2x128xf32>
    %306 = arith.mulf %305, %304 : vector<2x128xf32>
    %307 = math.tanh %306 : vector<2x128xf32>
    %cst_84 = arith.constant 1.000000e+00 : f32
    %308 = vector.broadcast %cst_84 : f32 to vector<2x128xf32>
    %309 = arith.addf %307, %308 : vector<2x128xf32>
    %cst_85 = arith.constant 5.000000e-01 : f32
    %310 = vector.broadcast %cst_85 : f32 to vector<2x128xf32>
    %311 = arith.mulf %310, %309 : vector<2x128xf32>
    %312 = vector.extract_strided_slice %311 {offsets = [0, 0], sizes = [2, 32], strides = [1, 1]} : vector<2x128xf32> to vector<2x32xf32>
    %313 = vector.extract_strided_slice %311 {offsets = [0, 32], sizes = [2, 32], strides = [1, 1]} : vector<2x128xf32> to vector<2x32xf32>
    %314 = vector.extract_strided_slice %311 {offsets = [0, 96], sizes = [2, 32], strides = [1, 1]} : vector<2x128xf32> to vector<2x32xf32>
    %315 = vector.extract_strided_slice %304 {offsets = [0, 64], sizes = [2, 32], strides = [1, 1]} : vector<2x128xf32> to vector<2x32xf32>
    %316 = math.tanh %315 : vector<2x32xf32>
    %317 = arith.mulf %313, %297 : vector<2x32xf32>
    %318 = arith.mulf %312, %316 : vector<2x32xf32>
    %319 = arith.addf %317, %318 : vector<2x32xf32>
    %320 = math.tanh %319 : vector<2x32xf32>
    %321 = arith.mulf %314, %320 : vector<2x32xf32>
    %cst_86 = arith.constant dense<0.000000e+00> : vector<2x128xf32>
    %322 = tpu.matmul %157, %185, %cst_86 {dimension_numbers = #tpu.dot_dimension_numbers<[1], [0], [0], [1], [0, 0, 1, 1], [], []>} : vector<2x32xf32>, vector<32x128xf32>, vector<2x128xf32> -> vector<2x128xf32>
    %323 = vector.broadcast %187 : vector<1x128xf32> to vector<2x128xf32>
    %324 = arith.addf %322, %323 : vector<2x128xf32>
    %cst_87 = arith.constant dense<0.000000e+00> : vector<2x128xf32>
    %325 = tpu.matmul %321, %186, %cst_87 {dimension_numbers = #tpu.dot_dimension_numbers<[1], [0], [0], [1], [0, 0, 1, 1], [], []>} : vector<2x32xf32>, vector<32x128xf32>, vector<2x128xf32> -> vector<2x128xf32>
    %326 = arith.addf %324, %325 : vector<2x128xf32>
    %cst_88 = arith.constant 5.000000e-01 : f32
    %327 = vector.broadcast %cst_88 : f32 to vector<2x128xf32>
    %328 = arith.mulf %327, %326 : vector<2x128xf32>
    %329 = math.tanh %328 : vector<2x128xf32>
    %cst_89 = arith.constant 1.000000e+00 : f32
    %330 = vector.broadcast %cst_89 : f32 to vector<2x128xf32>
    %331 = arith.addf %329, %330 : vector<2x128xf32>
    %cst_90 = arith.constant 5.000000e-01 : f32
    %332 = vector.broadcast %cst_90 : f32 to vector<2x128xf32>
    %333 = arith.mulf %332, %331 : vector<2x128xf32>
    %334 = vector.extract_strided_slice %333 {offsets = [0, 0], sizes = [2, 32], strides = [1, 1]} : vector<2x128xf32> to vector<2x32xf32>
    %335 = vector.extract_strided_slice %333 {offsets = [0, 32], sizes = [2, 32], strides = [1, 1]} : vector<2x128xf32> to vector<2x32xf32>
    %336 = vector.extract_strided_slice %333 {offsets = [0, 96], sizes = [2, 32], strides = [1, 1]} : vector<2x128xf32> to vector<2x32xf32>
    %337 = vector.extract_strided_slice %326 {offsets = [0, 64], sizes = [2, 32], strides = [1, 1]} : vector<2x128xf32> to vector<2x32xf32>
    %338 = math.tanh %337 : vector<2x32xf32>
    %339 = arith.mulf %335, %319 : vector<2x32xf32>
    %340 = arith.mulf %334, %338 : vector<2x32xf32>
    %341 = arith.addf %339, %340 : vector<2x32xf32>
    %342 = math.tanh %341 : vector<2x32xf32>
    %343 = arith.mulf %336, %342 : vector<2x32xf32>
    %cst_91 = arith.constant dense<0.000000e+00> : vector<2x128xf32>
    %344 = tpu.matmul %178, %185, %cst_91 {dimension_numbers = #tpu.dot_dimension_numbers<[1], [0], [0], [1], [0, 0, 1, 1], [], []>} : vector<2x32xf32>, vector<32x128xf32>, vector<2x128xf32> -> vector<2x128xf32>
    %345 = vector.broadcast %187 : vector<1x128xf32> to vector<2x128xf32>
    %346 = arith.addf %344, %345 : vector<2x128xf32>
    %cst_92 = arith.constant dense<0.000000e+00> : vector<2x128xf32>
    %347 = tpu.matmul %343, %186, %cst_92 {dimension_numbers = #tpu.dot_dimension_numbers<[1], [0], [0], [1], [0, 0, 1, 1], [], []>} : vector<2x32xf32>, vector<32x128xf32>, vector<2x128xf32> -> vector<2x128xf32>
    %348 = arith.addf %346, %347 : vector<2x128xf32>
    %cst_93 = arith.constant 5.000000e-01 : f32
    %349 = vector.broadcast %cst_93 : f32 to vector<2x128xf32>
    %350 = arith.mulf %349, %348 : vector<2x128xf32>
    %351 = math.tanh %350 : vector<2x128xf32>
    %cst_94 = arith.constant 1.000000e+00 : f32
    %352 = vector.broadcast %cst_94 : f32 to vector<2x128xf32>
    %353 = arith.addf %351, %352 : vector<2x128xf32>
    %cst_95 = arith.constant 5.000000e-01 : f32
    %354 = vector.broadcast %cst_95 : f32 to vector<2x128xf32>
    %355 = arith.mulf %354, %353 : vector<2x128xf32>
    %356 = vector.extract_strided_slice %355 {offsets = [0, 0], sizes = [2, 32], strides = [1, 1]} : vector<2x128xf32> to vector<2x32xf32>
    %357 = vector.extract_strided_slice %355 {offsets = [0, 32], sizes = [2, 32], strides = [1, 1]} : vector<2x128xf32> to vector<2x32xf32>
    %358 = vector.extract_strided_slice %355 {offsets = [0, 96], sizes = [2, 32], strides = [1, 1]} : vector<2x128xf32> to vector<2x32xf32>
    %359 = vector.extract_strided_slice %348 {offsets = [0, 64], sizes = [2, 32], strides = [1, 1]} : vector<2x128xf32> to vector<2x32xf32>
    %360 = math.tanh %359 : vector<2x32xf32>
    %361 = arith.mulf %357, %341 : vector<2x32xf32>
    %362 = arith.mulf %356, %360 : vector<2x32xf32>
    %363 = arith.addf %361, %362 : vector<2x32xf32>
    %364 = math.tanh %363 : vector<2x32xf32>
    %365 = arith.mulf %358, %364 : vector<2x32xf32>
    %c1 = arith.constant 1 : index
    %c0_96 = arith.constant 0 : index
    %c0_97 = arith.constant 0 : index
    %366 = vector.load %arg10[%c1, %c0_96, %c0_97] : memref<2x2x32xf32, #tpu.memory_space<vmem>>, vector<1x2x32xf32>
    %367 = vector.shape_cast %366 : vector<1x2x32xf32> to vector<2x32xf32>
    %368 = vector.shape_cast %365 : vector<2x32xf32> to vector<1x2x32xf32>
    tpu.vector_store %arg10[%c1, %c0_96, %c0_97], %368 {strides = array<i32>} : memref<2x2x32xf32, #tpu.memory_space<vmem>>, vector<1x2x32xf32>,
    %c1_98 = arith.constant 1 : index
    %c0_99 = arith.constant 0 : index
    %c0_100 = arith.constant 0 : index
    %369 = vector.load %arg11[%c1_98, %c0_99, %c0_100] : memref<2x2x32xf32, #tpu.memory_space<vmem>>, vector<1x2x32xf32>
    %370 = vector.shape_cast %369 : vector<1x2x32xf32> to vector<2x32xf32>
    %371 = vector.shape_cast %363 : vector<2x32xf32> to vector<1x2x32xf32>
    tpu.vector_store %arg11[%c1_98, %c0_99, %c0_100], %371 {strides = array<i32>} : memref<2x2x32xf32, #tpu.memory_space<vmem>>, vector<1x2x32xf32>,
    %372 = vector.shape_cast %211 : vector<2x32xf32> to vector<2x1x32xf32>
    %373 = vector.shape_cast %233 : vector<2x32xf32> to vector<2x1x32xf32>
    %374 = vector.shape_cast %255 : vector<2x32xf32> to vector<2x1x32xf32>
    %375 = vector.shape_cast %277 : vector<2x32xf32> to vector<2x1x32xf32>
    %376 = vector.shape_cast %299 : vector<2x32xf32> to vector<2x1x32xf32>
    %377 = vector.shape_cast %321 : vector<2x32xf32> to vector<2x1x32xf32>
    %378 = vector.shape_cast %343 : vector<2x32xf32> to vector<2x1x32xf32>
    %379 = vector.shape_cast %365 : vector<2x32xf32> to vector<2x1x32xf32>
    %380 = tpu.concatenate %372, %373, %374, %375, %376, %377, %378, %379 in 1 : vector<2x1x32xf32>, vector<2x1x32xf32>, vector<2x1x32xf32>, vector<2x1x32xf32>, vector<2x1x32xf32>, vector<2x1x32xf32>, vector<2x1x32xf32>, vector<2x1x32xf32> -> vector<2x8x32xf32>
    %381 = vector.shape_cast %380 : vector<2x8x32xf32> to vector<16x32xf32>
    %c0_101 = arith.constant 0 : index
    %c0_102 = arith.constant 0 : index
    %382 = vector.load %arg7[%c0_101, %c0_102] : memref<32x1xf32, #tpu.memory_space<vmem>>, vector<32x1xf32>
    %c0_103 = arith.constant 0 : index
    %c0_104 = arith.constant 0 : index
    %383 = vector.load %arg8[%c0_103, %c0_104] : memref<1x1xf32, #tpu.memory_space<vmem>>, vector<1x1xf32>
    %cst_105 = arith.constant dense<0.000000e+00> : vector<16x1xf32>
    %384 = tpu.matmul %381, %382, %cst_105 {dimension_numbers = #tpu.dot_dimension_numbers<[1], [0], [0], [1], [0, 0, 1, 1], [], []>} : vector<16x32xf32>, vector<32x1xf32>, vector<16x1xf32> -> vector<16x1xf32>
    %385 = vector.broadcast %383 : vector<1x1xf32> to vector<16x1xf32>
    %386 = arith.addf %384, %385 : vector<16x1xf32>
    %387 = vector.shape_cast %386 : vector<16x1xf32> to vector<2x8x1xf32>
    %c0_106 = arith.constant 0 : index
    %c0_107 = arith.constant 0 : index
    %c0_108 = arith.constant 0 : index
    %388 = vector.load %arg9[%c0_106, %c0_107, %c0_108] : memref<2x8x1xf32, #tpu.memory_space<vmem>>, vector<2x8x1xf32>
    tpu.vector_store %arg9[%c0_106, %c0_107, %c0_108], %387 {strides = array<i32>} : memref<2x8x1xf32, #tpu.memory_space<vmem>>, vector<2x8x1xf32>,
    return
  }
}

</mosaic_0001>

<llo_original>
// kernel: net_forward.1
$region0: #{net_forward.1}
  #allocation0 [shape = 'u32[]', space=smem, size = 0x4, offset = 0x4, fixed_abs, tag = 'smem constant byte address 0x4 - core index']
  #allocation1 [shape = 'u32[144,128]{1,0:T(1,128)}', space=vmem, size = 0x12000, scoped, tag = 'internal scratch']
  #allocation2 [shape = 'f32[1,1]{1,0:T(1,128)S(1)}', space=vmem, size = 0x200, scoped, tag = 'scoped memory for net_forward.1']
  %s0 = inlined_call_operand.hbm [shape: f32[2,8,8], index: 0, kind: input, shape index: {}]
  %s1 = inlined_call_operand.hbm [shape: f32[8,128], index: 1, kind: input, shape index: {}]
  %s2 = inlined_call_operand.vmem [shape: f32[32,128], index: 2, kind: input, shape index: {}]
  %s3 = inlined_call_operand.vmem [shape: f32[1,128], index: 3, kind: input, shape index: {}]
  %s4 = inlined_call_operand.hbm [shape: f32[32,128], index: 4, kind: input, shape index: {}]
  %s5 = inlined_call_operand.hbm [shape: f32[32,128], index: 5, kind: input, shape index: {}]
  %s6 = inlined_call_operand.vmem [shape: f32[1,128], index: 6, kind: input, shape index: {}]
  %s7 = inlined_call_operand.vmem [shape: f32[32,1], index: 7, kind: input, shape index: {}]
  %s8 = inlined_call_operand.<no memory space> [shape: f32[1,1], index: 8, kind: input, shape index: {}]
  %s9 = inlined_call_operand.vmem [shape: f32[2,8,1], index: 9, kind: output, shape index: {0}]
  %s10 = inlined_call_operand.hbm [shape: f32[2,2,32], index: 10, kind: output, shape index: {1}]
  %s11 = inlined_call_operand.hbm [shape: f32[2,2,32], index: 11, kind: output, shape index: {2}]
  %12 = xla_tuple %s9, %s10, %s11
  %s13 = sld [smem:[#allocation0]]
  $region78: #{net_forward.1} parent=0
    _
  %s15 = ssub.s32 1, %s13
  %s16 = scalar_select 0, %s15, %s13
  %v17 = vstv %s8
  %18 = vst [vmem:[#allocation2] sm:$0x1] %v17
  $region1: #{net_forward.1} parent=0
    #allocation3 [shape = 'u8[8192]{0}', space=vmem, size = 0x2000, scoped, tag = 'input window, operand 0, single buffered']
    #allocation4 [shape = 's32[1]{0}', space=sflag, size = 0x4, scoped, tag = 'scoped memory for net_forward.1']
    #allocation5 [shape = 's32[1]{0}', space=sflag, size = 0x4, scoped, tag = 'scoped memory for net_forward.1']
    #allocation6 [shape = 'u8[4096]{0}', space=vmem, size = 0x1000, scoped, tag = 'input window, operand 1, single buffered']
    #allocation7 [shape = 's32[1]{0}', space=sflag, size = 0x4, scoped, tag = 'scoped memory for net_forward.1']
    #allocation8 [shape = 'u8[16384]{0}', space=vmem, size = 0x4000, scoped, tag = 'input window, operand 4, single buffered']
    #allocation9 [shape = 'u8[16384]{0}', space=vmem, size = 0x4000, scoped, tag = 'input window, operand 5, single buffered']
    #allocation10 [shape = 's32[1]{0}', space=sflag, size = 0x4, scoped, tag = 'scoped memory for net_forward.1']
    #allocation11 [shape = 'u8[2048]{0}', space=vmem, size = 0x800, scoped, tag = 'output window, operand 1, single buffered']
    #allocation12 [shape = 'u8[2048]{0}', space=vmem, size = 0x800, scoped, tag = 'output window, operand 2, single buffered']
    #allocation13 [shape = 's32[1]{0}', space=sflag, size = 0x4, scoped, tag = 'scoped memory for net_forward.1']
    %19 = vsyncpa [#allocation4], 0
    %20 = vsyncpa [#allocation7], 0
    %21 = vsyncpa [#allocation10], 0
    %22 = vsyncpa [#allocation5], 0
    %23 = vsyncpa [#allocation13], 0
    // Predicated region
    $region2: #{net_forward.1} parent=1 // pred_check
      _
    $region3: #{net_forward.1} parent=1 // pred_check_branch
      %25 = sbr.rel (0) target = $region5
    $region4: #{net_forward.1} parent=1 // pred_region
      %s27 = ssub.s32 256, 256
      %28 = vsyncadd [#allocation4], %s27
      %s29 = sshll.u32 [#allocation3], 4
      %s30 = int_to_ptr.vmem [resolvable:$true] %s29
      %35 = dma.hbm_to_vmem [thread:$0]  %s0, 256, %s30, [#allocation4], 128, 128, 8
    $region5: #{net_forward.1} parent=1 // pred_fallthru
      _
    // Predicated region
    $region6: #{net_forward.1} parent=1 // pred_check
      _
    $region7: #{net_forward.1} parent=1 // pred_check_branch
      %37 = sbr.rel (0) target = $region9
    $region8: #{net_forward.1} parent=1 // pred_region
      %s39 = ssub.s32 128, 128
      %40 = vsyncadd [#allocation7], %s39
      %s42 = sshll.u32 [#allocation6], 4
      %s43 = int_to_ptr.vmem [resolvable:$true] %s42
      %45 = dma.hbm_to_vmem [thread:$0]  %s1, 128, %s43, [#allocation7]
    $region9: #{net_forward.1} parent=1 // pred_fallthru
      _
    // Predicated region
    $region10: #{net_forward.1} parent=1 // pred_check
      _
    $region11: #{net_forward.1} parent=1 // pred_check_branch
      %47 = sbr.rel (0) target = $region13
    $region12: #{net_forward.1} parent=1 // pred_region
      _
    $region13: #{net_forward.1} parent=1 // pred_fallthru
      _
    // Predicated region
    $region14: #{net_forward.1} parent=1 // pred_check
      _
    $region15: #{net_forward.1} parent=1 // pred_check_branch
      %49 = sbr.rel (0) target = $region17
    $region16: #{net_forward.1} parent=1 // pred_region
      _
    $region17: #{net_forward.1} parent=1 // pred_fallthru
      _
    // Predicated region
    $region18: #{net_forward.1} parent=1 // pred_check
      _
    $region19: #{net_forward.1} parent=1 // pred_check_branch
      %51 = sbr.rel (0) target = $region21
    $region20: #{net_forward.1} parent=1 // pred_region
      %s53 = ssub.s32 512, 512
      %54 = vsyncadd [#allocation7], %s53
      %s55 = sshll.u32 [#allocation8], 4
      %s56 = int_to_ptr.vmem [resolvable:$true] %s55
      %61 = dma.hbm_to_vmem [thread:$0]  %s4, 512, %s56, [#allocation7], 128, 128, 8
    $region21: #{net_forward.1} parent=1 // pred_fallthru
      _
    // Predicated region
    $region22: #{net_forward.1} parent=1 // pred_check
      _
    $region23: #{net_forward.1} parent=1 // pred_check_branch
      %63 = sbr.rel (0) target = $region25
    $region24: #{net_forward.1} parent=1 // pred_region
      %s65 = ssub.s32 512, 512
      %66 = vsyncadd [#allocation10], %s65
      %s67 = sshll.u32 [#allocation9], 4
      %s68 = int_to_ptr.vmem [resolvable:$true] %s67
      %73 = dma.hbm_to_vmem [thread:$0]  %s5, 512, %s68, [#allocation10], 128, 128, 8
    $region25: #{net_forward.1} parent=1 // pred_fallthru
      _
    // Predicated region
    $region26: #{net_forward.1} parent=1 // pred_check
      _
    $region27: #{net_forward.1} parent=1 // pred_check_branch
      %75 = sbr.rel (0) target = $region29
    $region28: #{net_forward.1} parent=1 // pred_region
      _
    $region29: #{net_forward.1} parent=1 // pred_fallthru
      _
    // Predicated region
    $region30: #{net_forward.1} parent=1 // pred_check
      _
    $region31: #{net_forward.1} parent=1 // pred_check_branch
      %77 = sbr.rel (0) target = $region33
    $region32: #{net_forward.1} parent=1 // pred_region
      _
    $region33: #{net_forward.1} parent=1 // pred_fallthru
      _
    // Predicated region
    $region34: #{net_forward.1} parent=1 // pred_check
      _
    $region35: #{net_forward.1} parent=1 // pred_check_branch
      %79 = sbr.rel (0) target = $region37
    $region36: #{net_forward.1} parent=1 // pred_region
      _
    $region37: #{net_forward.1} parent=1 // pred_fallthru
      _
    // Predicated region
    $region38: #{net_forward.1} parent=1 // pred_check
      _
    $region39: #{net_forward.1} parent=1 // pred_check_branch
      %81 = sbr.rel (0) target = $region41
    $region40: #{net_forward.1} parent=1 // pred_region
      %82 = dma.done [#allocation4], 256
    $region41: #{net_forward.1} parent=1 // pred_fallthru
      _
    // Predicated region
    $region42: #{net_forward.1} parent=1 // pred_check
      _
    $region43: #{net_forward.1} parent=1 // pred_check_branch
      %84 = sbr.rel (0) target = $region45
    $region44: #{net_forward.1} parent=1 // pred_region
      %85 = dma.done [#allocation7], 128
    $region45: #{net_forward.1} parent=1 // pred_fallthru
      _
    // Predicated region
    $region46: #{net_forward.1} parent=1 // pred_check
      _
    $region47: #{net_forward.1} parent=1 // pred_check_branch
      %87 = sbr.rel (0) target = $region49
    $region48: #{net_forward.1} parent=1 // pred_region
      %88 = dma.done [#allocation7], 512
    $region49: #{net_forward.1} parent=1 // pred_fallthru
      _
    // Predicated region
    $region50: #{net_forward.1} parent=1 // pred_check
      _
    $region51: #{net_forward.1} parent=1 // pred_check_branch
      %90 = sbr.rel (0) target = $region53
    $region52: #{net_forward.1} parent=1 // pred_region
      %91 = dma.done [#allocation10], 512
    $region53: #{net_forward.1} parent=1 // pred_fallthru
      _
    %v92 = vld [vmem:[#allocation6] sm:$0xff]
    %v93 = vld [vmem:[%s2] sm:$0xff]
    %v94 = vld [vmem:[%s2 + $0x8] sm:$0xff]
    %v95 = vld [vmem:[%s2 + $0x10] sm:$0xff]
    %v96 = vld [vmem:[%s2 + $0x18] sm:$0xff]
    %v97 = vld [vmem:[%s3] sm:$0x1]
    %v98 = vld [vmem:[#allocation3] sm:$0xff]
    %v99 = vld [vmem:[#allocation3 + $0x8] sm:$0xff]
    %v101 = vlaneseq
    %v102 = vshrl.u32 %v101, 7
    %v103 = vsub.s32 0, %v102
    %v104 = vrot.slane %v97, %v103
    %vm106 = vcmask 64512
    %v108 = vsel %vm106, %v98, 0
    %v111 = vsel %vm106, %v99, 0
    %113 = vmatprep.subr.mxu0 0.0
    %114 = vmatpush1.msra.mxu0 0.0
    %115 = vmatprep.subr.mxu0 0.0
    %116 = vmatpush1.msra.mxu0 0.0
    %117 = vmatprep.subr.mxu0 0.0
    %118 = vmatpush1.msra.mxu0 0.0
    %119 = vmatprep.subr.mxu0 0.0
    %120 = vmatpush1.msra.mxu0 0.0
    %121 = vmatprep.subr.mxu0 0.0
    %122 = vmatpush1.msra.mxu0 0.0
    %123 = vmatprep.subr.mxu0 0.0
    %124 = vmatpush1.msra.mxu0 0.0
    %125 = vmatprep.subr.mxu0 0.0
    %126 = vmatpush1.msra.mxu0 0.0
    %127 = vmatprep.subr.mxu0 0.0
    %128 = vmatpush1.msra.mxu0 0.0
    %129 = vmatprep.subr.mxu0 0.0
    %130 = vmatpush1.msra.mxu0 0.0
    %131 = vmatprep.subr.mxu0 0.0
    %132 = vmatpush1.msra.mxu0 0.0
    %133 = vmatprep.subr.mxu0 0.0
    %134 = vmatpush1.msra.mxu0 0.0
    %135 = vmatprep.subr.mxu0 0.0
    %136 = vmatpush1.msra.mxu0 0.0
    %137 = vmatprep.subr.mxu0 0.0
    %138 = vmatpush1.msra.mxu0 0.0
    %139 = vmatprep.subr.mxu0 0.0
    %140 = vmatpush1.msra.mxu0 0.0
    %141 = vmatprep.subr.mxu0 0.0
    %142 = vmatpush1.msra.mxu0 0.0
    %143 = vmatprep.subr.mxu0 0.0
    %144 = vmatpush1.msra.mxu0 %v92
    %145 = vmatprep.subr.mxu0 0.0
    %146 = vmatpush2.msra.mxu0 0.0
    %147 = vmatprep.subr.mxu0 0.0
    %148 = vmatpush2.msra.mxu0 0.0
    %149 = vmatprep.subr.mxu0 0.0
    %150 = vmatpush2.msra.mxu0 0.0
    %151 = vmatprep.subr.mxu0 0.0
    %152 = vmatpush2.msra.mxu0 0.0
    %153 = vmatprep.subr.mxu0 0.0
    %154 = vmatpush2.msra.mxu0 0.0
    %155 = vmatprep.subr.mxu0 0.0
    %156 = vmatpush2.msra.mxu0 0.0
    %157 = vmatprep.subr.mxu0 0.0
    %158 = vmatpush2.msra.mxu0 0.0
    %159 = vmatprep.subr.mxu0 0.0
    %160 = vmatpush2.msra.mxu0 0.0
    %161 = vmatprep.subr.mxu0 0.0
    %162 = vmatpush2.msra.mxu0 0.0
    %163 = vmatprep.subr.mxu0 0.0
    %164 = vmatpush2.msra.mxu0 0.0
    %165 = vmatprep.subr.mxu0 0.0
    %166 = vmatpush2.msra.mxu0 0.0
    %167 = vmatprep.subr.mxu0 0.0
    %168 = vmatpush2.msra.mxu0 0.0
    %169 = vmatprep.subr.mxu0 0.0
    %170 = vmatpush2.msra.mxu0 0.0
    %171 = vmatprep.subr.mxu0 0.0
    %172 = vmatpush2.msra.mxu0 0.0
    %173 = vmatprep.subr.mxu0 0.0
    %174 = vmatpush2.msra.mxu0 0.0
    %175 = vmatprep.subr.mxu0 0.0
    %176 = vmatpush2.msra.mxu0 0.0
    %177 = vmatprep.mubr.f32.mxu0 0.0
    %178 = vmatmul.mubr.f32.gmra.mxu0 %v108
    %v179 = vpop.f32.mrf.mxu0
    %v180 = vadd.f32 %v104, %v179
    %v181 = vpop.f32.mrf.mxu0
    %182 = vmatprep.mubr.f32.mxu0 0.0
    %183 = vmatmul.mubr.f32.gmra.mxu0 %v111
    %v184 = vpop.f32.mrf.mxu0
    %v185 = vadd.f32 %v104, %v184
    %v186 = vpop.f32.mrf.mxu0
    %187 = vdwg.mxu0
    %vm188 = vcmask 261120
    %v190 = vsel %vm188, 0.0, 0
    %192 = vmatprep.subr.mxu0 0.0
    %193 = vmatpush1.msra.mxu0 0.0
    %194 = vmatprep.subr.mxu0 0.0
    %195 = vmatpush1.msra.mxu0 0.0
    %196 = vmatprep.subr.mxu0 0.0
    %197 = vmatpush1.msra.mxu0 0.0
    %198 = vmatprep.subr.mxu0 0.0
    %199 = vmatpush1.msra.mxu0 0.0
    %200 = vmatprep.subr.mxu0 0.0
    %201 = vmatpush1.msra.mxu0 0.0
    %202 = vmatprep.subr.mxu0 0.0
    %203 = vmatpush1.msra.mxu0 0.0
    %204 = vmatprep.subr.mxu0 0.0
    %205 = vmatpush1.msra.mxu0 0.0
    %206 = vmatprep.subr.mxu0 0.0
    %207 = vmatpush1.msra.mxu0 0.0
    %208 = vmatprep.subr.mxu0 0.0
    %209 = vmatpush1.msra.mxu0 0.0
    %210 = vmatprep.subr.mxu0 0.0
    %211 = vmatpush1.msra.mxu0 0.0
    %212 = vmatprep.subr.mxu0 0.0
    %213 = vmatpush1.msra.mxu0 0.0
    %214 = vmatprep.subr.mxu0 0.0
    %215 = vmatpush1.msra.mxu0 0.0
    %216 = vmatprep.subr.mxu0 0.0
    %217 = vmatpush1.msra.mxu0 %v96
    %218 = vmatprep.subr.mxu0 0.0
    %219 = vmatpush1.msra.mxu0 %v95
    %220 = vmatprep.subr.mxu0 0.0
    %221 = vmatpush1.msra.mxu0 %v94
    %222 = vmatprep.subr.mxu0 0.0
    %223 = vmatpush1.msra.mxu0 %v93
    %224 = vmatprep.subr.mxu0 0.0
    %225 = vmatpush2.msra.mxu0 0.0
    %226 = vmatprep.subr.mxu0 0.0
    %227 = vmatpush2.msra.mxu0 0.0
    %228 = vmatprep.subr.mxu0 0.0
    %229 = vmatpush2.msra.mxu0 0.0
    %230 = vmatprep.subr.mxu0 0.0
    %231 = vmatpush2.msra.mxu0 0.0
    %232 = vmatprep.subr.mxu0 0.0
    %233 = vmatpush2.msra.mxu0 0.0
    %234 = vmatprep.subr.mxu0 0.0
    %235 = vmatpush2.msra.mxu0 0.0
    %236 = vmatprep.subr.mxu0 0.0
    %237 = vmatpush2.msra.mxu0 0.0
    %238 = vmatprep.subr.mxu0 0.0
    %239 = vmatpush2.msra.mxu0 0.0
    %240 = vmatprep.subr.mxu0 0.0
    %241 = vmatpush2.msra.mxu0 0.0
    %242 = vmatprep.subr.mxu0 0.0
    %243 = vmatpush2.msra.mxu0 0.0
    %244 = vmatprep.subr.mxu0 0.0
    %245 = vmatpush2.msra.mxu0 0.0
    %246 = vmatprep.subr.mxu0 0.0
    %247 = vmatpush2.msra.mxu0 0.0
    %248 = vmatprep.subr.mxu0 0.0
    %249 = vmatpush2.msra.mxu0 0.0
    %250 = vmatprep.subr.mxu0 0.0
    %251 = vmatpush2.msra.mxu0 0.0
    %252 = vmatprep.subr.mxu0 0.0
    %253 = vmatpush2.msra.mxu0 0.0
    %254 = vmatprep.subr.mxu0 0.0
    %255 = vmatpush2.msra.mxu0 0.0
    %256 = vmatprep.mubr.f32.mxu0 0.0
    %257 = vmatmul.mubr.f32.gmra.mxu0 %v190
    %v258 = vpop.f32.mrf.mxu0
    %v259 = vadd.f32 0.0, %v258
    %v260 = vpop.f32.mrf.mxu0
    %261 = vdwg.mxu0
    %v263 = vrot.slane %v259, 1
    %v266 = vadd.f32 %v180, %v259
    %v267 = vadd.f32 %v185, %v263
    %v268 = vmul.f32 %v266, 0.5
    %v269 = vmul.f32 %v267, 0.5
    %v270 = vtanh.pop %v268
    %v271 = vtanh.pop %v269
    %v272 = vadd.f32 %v270, 1.0
    %v273 = vadd.f32 %v271, 1.0
    %v274 = vmul.f32 %v272, 0.5
    %v275 = vmul.f32 %v273, 0.5
    %v276 = vtanh.pop %v266
    %v277 = vtanh.pop %v267
    %v278 = vmul.f32 %v274, 0.0
    %v279 = vmul.f32 %v275, 0.0
    %282 = vrot.lane.b32.xlu0 %v276, 64
    %v283 = vpop.permute.xlu0 %282
    %284 = vrot.lane.b32.xlu0 %v277, 64
    %v285 = vpop.permute.xlu0 %284
    %v288 = vmul.f32 %v274, %v283
    %v289 = vmul.f32 %v275, %v285
    %292 = vrot.lane.b32.xlu0 %v288, 32
    %v293 = vpop.permute.xlu0 %292
    %294 = vrot.lane.b32.xlu0 %v289, 32
    %v295 = vpop.permute.xlu0 %294
    %v298 = vadd.f32 %v278, %v293
    %v299 = vadd.f32 %v279, %v295
    %v300 = vtanh.pop %v298
    %v301 = vtanh.pop %v299
    %304 = vrot.lane.b32.xlu0 %v300, 64
    %v305 = vpop.permute.xlu0 %304
    %306 = vrot.lane.b32.xlu0 %v301, 64
    %v307 = vpop.permute.xlu0 %306
    %v310 = vmul.f32 %v274, %v305
    %v311 = vmul.f32 %v275, %v307
    %v314 = vrot.slane %v311, 7
    %vm315 = vcmask 1041409
    %v316 = vsel %vm315, %v314, %v310
    %317 = vrot.lane.b32.xlu0 %v316, 32
    %v318 = vpop.permute.xlu0 %317
    %v319 = vsel %vm188, %v318, 0
    %321 = vmatprep.subr.mxu0 0.0
    %322 = vmatpush1.msra.mxu0 0.0
    %323 = vmatprep.subr.mxu0 0.0
    %324 = vmatpush1.msra.mxu0 0.0
    %325 = vmatprep.subr.mxu0 0.0
    %326 = vmatpush1.msra.mxu0 0.0
    %327 = vmatprep.subr.mxu0 0.0
    %328 = vmatpush1.msra.mxu0 0.0
    %329 = vmatprep.subr.mxu0 0.0
    %330 = vmatpush1.msra.mxu0 0.0
    %331 = vmatprep.subr.mxu0 0.0
    %332 = vmatpush1.msra.mxu0 0.0
    %333 = vmatprep.subr.mxu0 0.0
    %334 = vmatpush1.msra.mxu0 0.0
    %335 = vmatprep.subr.mxu0 0.0
    %336 = vmatpush1.msra.mxu0 0.0
    %337 = vmatprep.subr.mxu0 0.0
    %338 = vmatpush1.msra.mxu0 0.0
    %339 = vmatprep.subr.mxu0 0.0
    %340 = vmatpush1.msra.mxu0 0.0
    %341 = vmatprep.subr.mxu0 0.0
    %342 = vmatpush1.msra.mxu0 0.0
    %343 = vmatprep.subr.mxu0 0.0
    %344 = vmatpush1.msra.mxu0 0.0
    %345 = vmatprep.subr.mxu0 0.0
    %346 = vmatpush1.msra.mxu0 %v96
    %347 = vmatprep.subr.mxu0 0.0
    %348 = vmatpush1.msra.mxu0 %v95
    %349 = vmatprep.subr.mxu0 0.0
    %350 = vmatpush1.msra.mxu0 %v94
    %351 = vmatprep.subr.mxu0 0.0
    %352 = vmatpush1.msra.mxu0 %v93
    %353 = vmatprep.subr.mxu0 0.0
    %354 = vmatpush2.msra.mxu0 0.0
    %355 = vmatprep.subr.mxu0 0.0
    %356 = vmatpush2.msra.mxu0 0.0
    %357 = vmatprep.subr.mxu0 0.0
    %358 = vmatpush2.msra.mxu0 0.0
    %359 = vmatprep.subr.mxu0 0.0
    %360 = vmatpush2.msra.mxu0 0.0
    %361 = vmatprep.subr.mxu0 0.0
    %362 = vmatpush2.msra.mxu0 0.0
    %363 = vmatprep.subr.mxu0 0.0
    %364 = vmatpush2.msra.mxu0 0.0
    %365 = vmatprep.subr.mxu0 0.0
    %366 = vmatpush2.msra.mxu0 0.0
    %367 = vmatprep.subr.mxu0 0.0
    %368 = vmatpush2.msra.mxu0 0.0
    %369 = vmatprep.subr.mxu0 0.0
    %370 = vmatpush2.msra.mxu0 0.0
    %371 = vmatprep.subr.mxu0 0.0
    %372 = vmatpush2.msra.mxu0 0.0
    %373 = vmatprep.subr.mxu0 0.0
    %374 = vmatpush2.msra.mxu0 0.0
    %375 = vmatprep.subr.mxu0 0.0
    %376 = vmatpush2.msra.mxu0 0.0
    %377 = vmatprep.subr.mxu0 0.0
    %378 = vmatpush2.msra.mxu0 0.0
    %379 = vmatprep.subr.mxu0 0.0
    %380 = vmatpush2.msra.mxu0 0.0
    %381 = vmatprep.subr.mxu0 0.0
    %382 = vmatpush2.msra.mxu0 0.0
    %383 = vmatprep.subr.mxu0 0.0
    %384 = vmatpush2.msra.mxu0 0.0
    %385 = vmatprep.mubr.f32.mxu0 0.0
    %386 = vmatmul.mubr.f32.gmra.mxu0 %v319
    %v387 = vpop.f32.mrf.mxu0
    %v388 = vadd.f32 0.0, %v387
    %v389 = vpop.f32.mrf.mxu0
    %390 = vdwg.mxu0
    %v392 = vrot.slane %v388, 7
    %v395 = vadd.f32 %v180, %v392
    %v396 = vadd.f32 %v185, %v388
    %v397 = vmul.f32 %v395, 0.5
    %v398 = vmul.f32 %v396, 0.5
    %v399 = vtanh.pop %v397
    %v400 = vtanh.pop %v398
    %v401 = vadd.f32 %v399, 1.0
    %v402 = vadd.f32 %v400, 1.0
    %v403 = vmul.f32 %v401, 0.5
    %v404 = vmul.f32 %v402, 0.5
    %v405 = vtanh.pop %v395
    %v406 = vtanh.pop %v396
    %v409 = vrot.slane %v298, 7
    %v410 = vrot.slane %v299, 7
    %v413 = vmul.f32 %v403, %v409
    %v414 = vmul.f32 %v404, %v410
    %417 = vrot.lane.b32.xlu0 %v405, 64
    %v418 = vpop.permute.xlu0 %417
    %419 = vrot.lane.b32.xlu0 %v406, 64
    %v420 = vpop.permute.xlu0 %419
    %v423 = vmul.f32 %v403, %v418
    %v424 = vmul.f32 %v404, %v420
    %427 = vrot.lane.b32.xlu0 %v423, 32
    %v428 = vpop.permute.xlu0 %427
    %429 = vrot.lane.b32.xlu0 %v424, 32
    %v430 = vpop.permute.xlu0 %429
    %v433 = vadd.f32 %v413, %v428
    %v434 = vadd.f32 %v414, %v430
    %v435 = vtanh.pop %v433
    %v436 = vtanh.pop %v434
    %439 = vrot.lane.b32.xlu0 %v435, 64
    %v440 = vpop.permute.xlu0 %439
    %441 = vrot.lane.b32.xlu0 %v436, 64
    %v442 = vpop.permute.xlu0 %441
    %v445 = vmul.f32 %v403, %v440
    %v446 = vmul.f32 %v404, %v442
    %v449 = vrot.slane %v445, 1
    %v450 = vsel %vm315, %v446, %v449
    %451 = vrot.lane.b32.xlu0 %v450, 32
    %v452 = vpop.permute.xlu0 %451
    %v453 = vsel %vm188, %v452, 0
    %455 = vmatprep.subr.mxu0 0.0
    %456 = vmatpush1.msra.mxu0 0.0
    %457 = vmatprep.subr.mxu0 0.0
    %458 = vmatpush1.msra.mxu0 0.0
    %459 = vmatprep.subr.mxu0 0.0
    %460 = vmatpush1.msra.mxu0 0.0
    %461 = vmatprep.subr.mxu0 0.0
    %462 = vmatpush1.msra.mxu0 0.0
    %463 = vmatprep.subr.mxu0 0.0
    %464 = vmatpush1.msra.mxu0 0.0
    %465 = vmatprep.subr.mxu0 0.0
    %466 = vmatpush1.msra.mxu0 0.0
    %467 = vmatprep.subr.mxu0 0.0
    %468 = vmatpush1.msra.mxu0 0.0
    %469 = vmatprep.subr.mxu0 0.0
    %470 = vmatpush1.msra.mxu0 0.0
    %471 = vmatprep.subr.mxu0 0.0
    %472 = vmatpush1.msra.mxu0 0.0
    %473 = vmatprep.subr.mxu0 0.0
    %474 = vmatpush1.msra.mxu0 0.0
    %475 = vmatprep.subr.mxu0 0.0
    %476 = vmatpush1.msra.mxu0 0.0
    %477 = vmatprep.subr.mxu0 0.0
    %478 = vmatpush1.msra.mxu0 0.0
    %479 = vmatprep.subr.mxu0 0.0
    %480 = vmatpush1.msra.mxu0 %v96
    %481 = vmatprep.subr.mxu0 0.0
    %482 = vmatpush1.msra.mxu0 %v95
    %483 = vmatprep.subr.mxu0 0.0
    %484 = vmatpush1.msra.mxu0 %v94
    %485 = vmatprep.subr.mxu0 0.0
    %486 = vmatpush1.msra.mxu0 %v93
    %487 = vmatprep.subr.mxu0 0.0
    %488 = vmatpush2.msra.mxu0 0.0
    %489 = vmatprep.subr.mxu0 0.0
    %490 = vmatpush2.msra.mxu0 0.0
    %491 = vmatprep.subr.mxu0 0.0
    %492 = vmatpush2.msra.mxu0 0.0
    %493 = vmatprep.subr.mxu0 0.0
    %494 = vmatpush2.msra.mxu0 0.0
    %495 = vmatprep.subr.mxu0 0.0
    %496 = vmatpush2.msra.mxu0 0.0
    %497 = vmatprep.subr.mxu0 0.0
    %498 = vmatpush2.msra.mxu0 0.0
    %499 = vmatprep.subr.mxu0 0.0
    %500 = vmatpush2.msra.mxu0 0.0
    %501 = vmatprep.subr.mxu0 0.0
    %502 = vmatpush2.msra.mxu0 0.0
    %503 = vmatprep.subr.mxu0 0.0
    %504 = vmatpush2.msra.mxu0 0.0
    %505 = vmatprep.subr.mxu0 0.0
    %506 = vmatpush2.msra.mxu0 0.0
    %507 = vmatprep.subr.mxu0 0.0
    %508 = vmatpush2.msra.mxu0 0.0
    %509 = vmatprep.subr.mxu0 0.0
    %510 = vmatpush2.msra.mxu0 0.0
    %511 = vmatprep.subr.mxu0 0.0
    %512 = vmatpush2.msra.mxu0 0.0
    %513 = vmatprep.subr.mxu0 0.0
    %514 = vmatpush2.msra.mxu0 0.0
    %515 = vmatprep.subr.mxu0 0.0
    %516 = vmatpush2.msra.mxu0 0.0
    %517 = vmatprep.subr.mxu0 0.0
    %518 = vmatpush2.msra.mxu0 0.0
    %519 = vmatprep.mubr.f32.mxu0 0.0
    %520 = vmatmul.mubr.f32.gmra.mxu0 %v453
    %v521 = vpop.f32.mrf.mxu0
    %v522 = vadd.f32 0.0, %v521
    %v523 = vpop.f32.mrf.mxu0
    %524 = vdwg.mxu0
    %v526 = vrot.slane %v522, 6
    %v527 = vrot.slane %v522, 7
    %v530 = vadd.f32 %v180, %v526
    %v531 = vadd.f32 %v185, %v527
    %v532 = vmul.f32 %v530, 0.5
    %v533 = vmul.f32 %v531, 0.5
    %v534 = vtanh.pop %v532
    %v535 = vtanh.pop %v533
    %v536 = vadd.f32 %v534, 1.0
    %v537 = vadd.f32 %v535, 1.0
    %v538 = vmul.f32 %v536, 0.5
    %v539 = vmul.f32 %v537, 0.5
    %v540 = vtanh.pop %v530
    %v541 = vtanh.pop %v531
    %v544 = vrot.slane %v433, 7
    %v545 = vrot.slane %v434, 7
    %v548 = vmul.f32 %v538, %v544
    %v549 = vmul.f32 %v539, %v545
    %552 = vrot.lane.b32.xlu0 %v540, 64
    %v553 = vpop.permute.xlu0 %552
    %554 = vrot.lane.b32.xlu0 %v541, 64
    %v555 = vpop.permute.xlu0 %554
    %v558 = vmul.f32 %v538, %v553
    %v559 = vmul.f32 %v539, %v555
    %562 = vrot.lane.b32.xlu0 %v558, 32
    %v563 = vpop.permute.xlu0 %562
    %564 = vrot.lane.b32.xlu0 %v559, 32
    %v565 = vpop.permute.xlu0 %564
    %v568 = vadd.f32 %v548, %v563
    %v569 = vadd.f32 %v549, %v565
    %v570 = vtanh.pop %v568
    %v571 = vtanh.pop %v569
    %574 = vrot.lane.b32.xlu0 %v570, 64
    %v575 = vpop.permute.xlu0 %574
    %576 = vrot.lane.b32.xlu0 %v571, 64
    %v577 = vpop.permute.xlu0 %576
    %v580 = vmul.f32 %v538, %v575
    %v581 = vmul.f32 %v539, %v577
    %v584 = vrot.slane %v580, 2
    %v585 = vrot.slane %v581, 1
    %v586 = vsel %vm315, %v585, %v584
    %587 = vrot.lane.b32.xlu0 %v586, 32
    %v588 = vpop.permute.xlu0 %587
    %v589 = vsel %vm188, %v588, 0
    %591 = vmatprep.subr.mxu0 0.0
    %592 = vmatpush1.msra.mxu0 0.0
    %593 = vmatprep.subr.mxu0 0.0
    %594 = vmatpush1.msra.mxu0 0.0
    %595 = vmatprep.subr.mxu0 0.0
    %596 = vmatpush1.msra.mxu0 0.0
    %597 = vmatprep.subr.mxu0 0.0
    %598 = vmatpush1.msra.mxu0 0.0
    %599 = vmatprep.subr.mxu0 0.0
    %600 = vmatpush1.msra.mxu0 0.0
    %601 = vmatprep.subr.mxu0 0.0
    %602 = vmatpush1.msra.mxu0 0.0
    %603 = vmatprep.subr.mxu0 0.0
    %604 = vmatpush1.msra.mxu0 0.0
    %605 = vmatprep.subr.mxu0 0.0
    %606 = vmatpush1.msra.mxu0 0.0
    %607 = vmatprep.subr.mxu0 0.0
    %608 = vmatpush1.msra.mxu0 0.0
    %609 = vmatprep.subr.mxu0 0.0
    %610 = vmatpush1.msra.mxu0 0.0
    %611 = vmatprep.subr.mxu0 0.0
    %612 = vmatpush1.msra.mxu0 0.0
    %613 = vmatprep.subr.mxu0 0.0
    %614 = vmatpush1.msra.mxu0 0.0
    %615 = vmatprep.subr.mxu0 0.0
    %616 = vmatpush1.msra.mxu0 %v96
    %617 = vmatprep.subr.mxu0 0.0
    %618 = vmatpush1.msra.mxu0 %v95
    %619 = vmatprep.subr.mxu0 0.0
    %620 = vmatpush1.msra.mxu0 %v94
    %621 = vmatprep.subr.mxu0 0.0
    %622 = vmatpush1.msra.mxu0 %v93
    %623 = vmatprep.subr.mxu0 0.0
    %624 = vmatpush2.msra.mxu0 0.0
    %625 = vmatprep.subr.mxu0 0.0
    %626 = vmatpush2.msra.mxu0 0.0
    %627 = vmatprep.subr.mxu0 0.0
    %628 = vmatpush2.msra.mxu0 0.0
    %629 = vmatprep.subr.mxu0 0.0
    %630 = vmatpush2.msra.mxu0 0.0
    %631 = vmatprep.subr.mxu0 0.0
    %632 = vmatpush2.msra.mxu0 0.0
    %633 = vmatprep.subr.mxu0 0.0
    %634 = vmatpush2.msra.mxu0 0.0
    %635 = vmatprep.subr.mxu0 0.0
    %636 = vmatpush2.msra.mxu0 0.0
    %637 = vmatprep.subr.mxu0 0.0
    %638 = vmatpush2.msra.mxu0 0.0
    %639 = vmatprep.subr.mxu0 0.0
    %640 = vmatpush2.msra.mxu0 0.0
    %641 = vmatprep.subr.mxu0 0.0
    %642 = vmatpush2.msra.mxu0 0.0
    %643 = vmatprep.subr.mxu0 0.0
    %644 = vmatpush2.msra.mxu0 0.0
    %645 = vmatprep.subr.mxu0 0.0
    %646 = vmatpush2.msra.mxu0 0.0
    %647 = vmatprep.subr.mxu0 0.0
    %648 = vmatpush2.msra.mxu0 0.0
    %649 = vmatprep.subr.mxu0 0.0
    %650 = vmatpush2.msra.mxu0 0.0
    %651 = vmatprep.subr.mxu0 0.0
    %652 = vmatpush2.msra.mxu0 0.0
    %653 = vmatprep.subr.mxu0 0.0
    %654 = vmatpush2.msra.mxu0 0.0
    %655 = vmatprep.mubr.f32.mxu0 0.0
    %656 = vmatmul.mubr.f32.gmra.mxu0 %v589
    %v657 = vpop.f32.mrf.mxu0
    %v658 = vadd.f32 0.0, %v657
    %v659 = vpop.f32.mrf.mxu0
    %660 = vdwg.mxu0
    %v662 = vrot.slane %v658, 5
    %v663 = vrot.slane %v658, 6
    %v666 = vadd.f32 %v180, %v662
    %v667 = vadd.f32 %v185, %v663
    %v668 = vmul.f32 %v666, 0.5
    %v669 = vmul.f32 %v667, 0.5
    %v670 = vtanh.pop %v668
    %v671 = vtanh.pop %v669
    %v672 = vadd.f32 %v670, 1.0
    %v673 = vadd.f32 %v671, 1.0
    %v674 = vmul.f32 %v672, 0.5
    %v675 = vmul.f32 %v673, 0.5
    %v676 = vtanh.pop %v666
    %v677 = vtanh.pop %v667
    %v680 = vrot.slane %v568, 7
    %v681 = vrot.slane %v569, 7
    %v684 = vmul.f32 %v674, %v680
    %v685 = vmul.f32 %v675, %v681
    %688 = vrot.lane.b32.xlu0 %v676, 64
    %v689 = vpop.permute.xlu0 %688
    %690 = vrot.lane.b32.xlu0 %v677, 64
    %v691 = vpop.permute.xlu0 %690
    %v694 = vmul.f32 %v674, %v689
    %v695 = vmul.f32 %v675, %v691
    %698 = vrot.lane.b32.xlu0 %v694, 32
    %v699 = vpop.permute.xlu0 %698
    %700 = vrot.lane.b32.xlu0 %v695, 32
    %v701 = vpop.permute.xlu0 %700
    %v704 = vadd.f32 %v684, %v699
    %v705 = vadd.f32 %v685, %v701
    %v706 = vtanh.pop %v704
    %v707 = vtanh.pop %v705
    %710 = vrot.lane.b32.xlu0 %v706, 64
    %v711 = vpop.permute.xlu0 %710
    %712 = vrot.lane.b32.xlu0 %v707, 64
    %v713 = vpop.permute.xlu0 %712
    %v716 = vmul.f32 %v674, %v711
    %v717 = vmul.f32 %v675, %v713
    %v720 = vrot.slane %v716, 3
    %v721 = vrot.slane %v717, 2
    %v722 = vsel %vm315, %v721, %v720
    %723 = vrot.lane.b32.xlu0 %v722, 32
    %v724 = vpop.permute.xlu0 %723
    %v725 = vsel %vm188, %v724, 0
    %727 = vmatprep.subr.mxu0 0.0
    %728 = vmatpush1.msra.mxu0 0.0
    %729 = vmatprep.subr.mxu0 0.0
    %730 = vmatpush1.msra.mxu0 0.0
    %731 = vmatprep.subr.mxu0 0.0
    %732 = vmatpush1.msra.mxu0 0.0
    %733 = vmatprep.subr.mxu0 0.0
    %734 = vmatpush1.msra.mxu0 0.0
    %735 = vmatprep.subr.mxu0 0.0
    %736 = vmatpush1.msra.mxu0 0.0
    %737 = vmatprep.subr.mxu0 0.0
    %738 = vmatpush1.msra.mxu0 0.0
    %739 = vmatprep.subr.mxu0 0.0
    %740 = vmatpush1.msra.mxu0 0.0
    %741 = vmatprep.subr.mxu0 0.0
    %742 = vmatpush1.msra.mxu0 0.0
    %743 = vmatprep.subr.mxu0 0.0
    %744 = vmatpush1.msra.mxu0 0.0
    %745 = vmatprep.subr.mxu0 0.0
    %746 = vmatpush1.msra.mxu0 0.0
    %747 = vmatprep.subr.mxu0 0.0
    %748 = vmatpush1.msra.mxu0 0.0
    %749 = vmatprep.subr.mxu0 0.0
    %750 = vmatpush1.msra.mxu0 0.0
    %751 = vmatprep.subr.mxu0 0.0
    %752 = vmatpush1.msra.mxu0 %v96
    %753 = vmatprep.subr.mxu0 0.0
    %754 = vmatpush1.msra.mxu0 %v95
    %755 = vmatprep.subr.mxu0 0.0
    %756 = vmatpush1.msra.mxu0 %v94
    %757 = vmatprep.subr.mxu0 0.0
    %758 = vmatpush1.msra.mxu0 %v93
    %759 = vmatprep.subr.mxu0 0.0
    %760 = vmatpush2.msra.mxu0 0.0
    %761 = vmatprep.subr.mxu0 0.0
    %762 = vmatpush2.msra.mxu0 0.0
    %763 = vmatprep.subr.mxu0 0.0
    %764 = vmatpush2.msra.mxu0 0.0
    %765 = vmatprep.subr.mxu0 0.0
    %766 = vmatpush2.msra.mxu0 0.0
    %767 = vmatprep.subr.mxu0 0.0
    %768 = vmatpush2.msra.mxu0 0.0
    %769 = vmatprep.subr.mxu0 0.0
    %770 = vmatpush2.msra.mxu0 0.0
    %771 = vmatprep.subr.mxu0 0.0
    %772 = vmatpush2.msra.mxu0 0.0
    %773 = vmatprep.subr.mxu0 0.0
    %774 = vmatpush2.msra.mxu0 0.0
    %775 = vmatprep.subr.mxu0 0.0
    %776 = vmatpush2.msra.mxu0 0.0
    %777 = vmatprep.subr.mxu0 0.0
    %778 = vmatpush2.msra.mxu0 0.0
    %779 = vmatprep.subr.mxu0 0.0
    %780 = vmatpush2.msra.mxu0 0.0
    %781 = vmatprep.subr.mxu0 0.0
    %782 = vmatpush2.msra.mxu0 0.0
    %783 = vmatprep.subr.mxu0 0.0
    %784 = vmatpush2.msra.mxu0 0.0
    %785 = vmatprep.subr.mxu0 0.0
    %786 = vmatpush2.msra.mxu0 0.0
    %787 = vmatprep.subr.mxu0 0.0
    %788 = vmatpush2.msra.mxu0 0.0
    %789 = vmatprep.subr.mxu0 0.0
    %790 = vmatpush2.msra.mxu0 0.0
    %791 = vmatprep.mubr.f32.mxu0 0.0
    %792 = vmatmul.mubr.f32.gmra.mxu0 %v725
    %v793 = vpop.f32.mrf.mxu0
    %v794 = vadd.f32 0.0, %v793
    %v795 = vpop.f32.mrf.mxu0
    %796 = vdwg.mxu0
    %v798 = vrot.slane %v794, 4
    %v799 = vrot.slane %v794, 5
    %v802 = vadd.f32 %v180, %v798
    %v803 = vadd.f32 %v185, %v799
    %v804 = vmul.f32 %v802, 0.5
    %v805 = vmul.f32 %v803, 0.5
    %v806 = vtanh.pop %v804
    %v807 = vtanh.pop %v805
    %v808 = vadd.f32 %v806, 1.0
    %v809 = vadd.f32 %v807, 1.0
    %v810 = vmul.f32 %v808, 0.5
    %v811 = vmul.f32 %v809, 0.5
    %v812 = vtanh.pop %v802
    %v813 = vtanh.pop %v803
    %v816 = vrot.slane %v704, 7
    %v817 = vrot.slane %v705, 7
    %v820 = vmul.f32 %v810, %v816
    %v821 = vmul.f32 %v811, %v817
    %824 = vrot.lane.b32.xlu0 %v812, 64
    %v825 = vpop.permute.xlu0 %824
    %826 = vrot.lane.b32.xlu0 %v813, 64
    %v827 = vpop.permute.xlu0 %826
    %v830 = vmul.f32 %v810, %v825
    %v831 = vmul.f32 %v811, %v827
    %834 = vrot.lane.b32.xlu0 %v830, 32
    %v835 = vpop.permute.xlu0 %834
    %836 = vrot.lane.b32.xlu0 %v831, 32
    %v837 = vpop.permute.xlu0 %836
    %v840 = vadd.f32 %v820, %v835
    %v841 = vadd.f32 %v821, %v837
    %v842 = vtanh.pop %v840
    %v843 = vtanh.pop %v841
    %846 = vrot.lane.b32.xlu0 %v842, 64
    %v847 = vpop.permute.xlu0 %846
    %848 = vrot.lane.b32.xlu0 %v843, 64
    %v849 = vpop.permute.xlu0 %848
    %v852 = vmul.f32 %v810, %v847
    %v853 = vmul.f32 %v811, %v849
    %v856 = vrot.slane %v852, 4
    %v857 = vrot.slane %v853, 3
    %v858 = vsel %vm315, %v857, %v856
    %859 = vrot.lane.b32.xlu0 %v858, 32
    %v860 = vpop.permute.xlu0 %859
    %v861 = vsel %vm188, %v860, 0
    %863 = vmatprep.subr.mxu0 0.0
    %864 = vmatpush1.msra.mxu0 0.0
    %865 = vmatprep.subr.mxu0 0.0
    %866 = vmatpush1.msra.mxu0 0.0
    %867 = vmatprep.subr.mxu0 0.0
    %868 = vmatpush1.msra.mxu0 0.0
    %869 = vmatprep.subr.mxu0 0.0
    %870 = vmatpush1.msra.mxu0 0.0
    %871 = vmatprep.subr.mxu0 0.0
    %872 = vmatpush1.msra.mxu0 0.0
    %873 = vmatprep.subr.mxu0 0.0
    %874 = vmatpush1.msra.mxu0 0.0
    %875 = vmatprep.subr.mxu0 0.0
    %876 = vmatpush1.msra.mxu0 0.0
    %877 = vmatprep.subr.mxu0 0.0
    %878 = vmatpush1.msra.mxu0 0.0
    %879 = vmatprep.subr.mxu0 0.0
    %880 = vmatpush1.msra.mxu0 0.0
    %881 = vmatprep.subr.mxu0 0.0
    %882 = vmatpush1.msra.mxu0 0.0
    %883 = vmatprep.subr.mxu0 0.0
    %884 = vmatpush1.msra.mxu0 0.0
    %885 = vmatprep.subr.mxu0 0.0
    %886 = vmatpush1.msra.mxu0 0.0
    %887 = vmatprep.subr.mxu0 0.0
    %888 = vmatpush1.msra.mxu0 %v96
    %889 = vmatprep.subr.mxu0 0.0
    %890 = vmatpush1.msra.mxu0 %v95
    %891 = vmatprep.subr.mxu0 0.0
    %892 = vmatpush1.msra.mxu0 %v94
    %893 = vmatprep.subr.mxu0 0.0
    %894 = vmatpush1.msra.mxu0 %v93
    %895 = vmatprep.subr.mxu0 0.0
    %896 = vmatpush2.msra.mxu0 0.0
    %897 = vmatprep.subr.mxu0 0.0
    %898 = vmatpush2.msra.mxu0 0.0
    %899 = vmatprep.subr.mxu0 0.0
    %900 = vmatpush2.msra.mxu0 0.0
    %901 = vmatprep.subr.mxu0 0.0
    %902 = vmatpush2.msra.mxu0 0.0
    %903 = vmatprep.subr.mxu0 0.0
    %904 = vmatpush2.msra.mxu0 0.0
    %905 = vmatprep.subr.mxu0 0.0
    %906 = vmatpush2.msra.mxu0 0.0
    %907 = vmatprep.subr.mxu0 0.0
    %908 = vmatpush2.msra.mxu0 0.0
    %909 = vmatprep.subr.mxu0 0.0
    %910 = vmatpush2.msra.mxu0 0.0
    %911 = vmatprep.subr.mxu0 0.0
    %912 = vmatpush2.msra.mxu0 0.0
    %913 = vmatprep.subr.mxu0 0.0
    %914 = vmatpush2.msra.mxu0 0.0
    %915 = vmatprep.subr.mxu0 0.0
    %916 = vmatpush2.msra.mxu0 0.0
    %917 = vmatprep.subr.mxu0 0.0
    %918 = vmatpush2.msra.mxu0 0.0
    %919 = vmatprep.subr.mxu0 0.0
    %920 = vmatpush2.msra.mxu0 0.0
    %921 = vmatprep.subr.mxu0 0.0
    %922 = vmatpush2.msra.mxu0 0.0
    %923 = vmatprep.subr.mxu0 0.0
    %924 = vmatpush2.msra.mxu0 0.0
    %925 = vmatprep.subr.mxu0 0.0
    %926 = vmatpush2.msra.mxu0 0.0
    %927 = vmatprep.mubr.f32.mxu0 0.0
    %928 = vmatmul.mubr.f32.gmra.mxu0 %v861
    %v929 = vpop.f32.mrf.mxu0
    %v930 = vadd.f32 0.0, %v929
    %v931 = vpop.f32.mrf.mxu0
    %932 = vdwg.mxu0
    %v934 = vrot.slane %v930, 3
    %v935 = vrot.slane %v930, 4
    %v938 = vadd.f32 %v180, %v934
    %v939 = vadd.f32 %v185, %v935
    %v940 = vmul.f32 %v938, 0.5
    %v941 = vmul.f32 %v939, 0.5
    %v942 = vtanh.pop %v940
    %v943 = vtanh.pop %v941
    %v944 = vadd.f32 %v942, 1.0
    %v945 = vadd.f32 %v943, 1.0
    %v946 = vmul.f32 %v944, 0.5
    %v947 = vmul.f32 %v945, 0.5
    %v948 = vtanh.pop %v938
    %v949 = vtanh.pop %v939
    %v952 = vrot.slane %v840, 7
    %v953 = vrot.slane %v841, 7
    %v956 = vmul.f32 %v946, %v952
    %v957 = vmul.f32 %v947, %v953
    %960 = vrot.lane.b32.xlu0 %v948, 64
    %v961 = vpop.permute.xlu0 %960
    %962 = vrot.lane.b32.xlu0 %v949, 64
    %v963 = vpop.permute.xlu0 %962
    %v966 = vmul.f32 %v946, %v961
    %v967 = vmul.f32 %v947, %v963
    %970 = vrot.lane.b32.xlu0 %v966, 32
    %v971 = vpop.permute.xlu0 %970
    %972 = vrot.lane.b32.xlu0 %v967, 32
    %v973 = vpop.permute.xlu0 %972
    %v976 = vadd.f32 %v956, %v971
    %v977 = vadd.f32 %v957, %v973
    %v978 = vtanh.pop %v976
    %v979 = vtanh.pop %v977
    %982 = vrot.lane.b32.xlu0 %v978, 64
    %v983 = vpop.permute.xlu0 %982
    %984 = vrot.lane.b32.xlu0 %v979, 64
    %v985 = vpop.permute.xlu0 %984
    %v988 = vmul.f32 %v946, %v983
    %v989 = vmul.f32 %v947, %v985
    %v992 = vrot.slane %v988, 5
    %v993 = vrot.slane %v989, 4
    %v994 = vsel %vm315, %v993, %v992
    %995 = vrot.lane.b32.xlu0 %v994, 32
    %v996 = vpop.permute.xlu0 %995
    %v997 = vsel %vm188, %v996, 0
    %999 = vmatprep.subr.mxu0 0.0
    %1000 = vmatpush1.msra.mxu0 0.0
    %1001 = vmatprep.subr.mxu0 0.0
    %1002 = vmatpush1.msra.mxu0 0.0
    %1003 = vmatprep.subr.mxu0 0.0
    %1004 = vmatpush1.msra.mxu0 0.0
    %1005 = vmatprep.subr.mxu0 0.0
    %1006 = vmatpush1.msra.mxu0 0.0
    %1007 = vmatprep.subr.mxu0 0.0
    %1008 = vmatpush1.msra.mxu0 0.0
    %1009 = vmatprep.subr.mxu0 0.0
    %1010 = vmatpush1.msra.mxu0 0.0
    %1011 = vmatprep.subr.mxu0 0.0
    %1012 = vmatpush1.msra.mxu0 0.0
    %1013 = vmatprep.subr.mxu0 0.0
    %1014 = vmatpush1.msra.mxu0 0.0
    %1015 = vmatprep.subr.mxu0 0.0
    %1016 = vmatpush1.msra.mxu0 0.0
    %1017 = vmatprep.subr.mxu0 0.0
    %1018 = vmatpush1.msra.mxu0 0.0
    %1019 = vmatprep.subr.mxu0 0.0
    %1020 = vmatpush1.msra.mxu0 0.0
    %1021 = vmatprep.subr.mxu0 0.0
    %1022 = vmatpush1.msra.mxu0 0.0
    %1023 = vmatprep.subr.mxu0 0.0
    %1024 = vmatpush1.msra.mxu0 %v96
    %1025 = vmatprep.subr.mxu0 0.0
    %1026 = vmatpush1.msra.mxu0 %v95
    %1027 = vmatprep.subr.mxu0 0.0
    %1028 = vmatpush1.msra.mxu0 %v94
    %1029 = vmatprep.subr.mxu0 0.0
    %1030 = vmatpush1.msra.mxu0 %v93
    %1031 = vmatprep.subr.mxu0 0.0
    %1032 = vmatpush2.msra.mxu0 0.0
    %1033 = vmatprep.subr.mxu0 0.0
    %1034 = vmatpush2.msra.mxu0 0.0
    %1035 = vmatprep.subr.mxu0 0.0
    %1036 = vmatpush2.msra.mxu0 0.0
    %1037 = vmatprep.subr.mxu0 0.0
    %1038 = vmatpush2.msra.mxu0 0.0
    %1039 = vmatprep.subr.mxu0 0.0
    %1040 = vmatpush2.msra.mxu0 0.0
    %1041 = vmatprep.subr.mxu0 0.0
    %1042 = vmatpush2.msra.mxu0 0.0
    %1043 = vmatprep.subr.mxu0 0.0
    %1044 = vmatpush2.msra.mxu0 0.0
    %1045 = vmatprep.subr.mxu0 0.0
    %1046 = vmatpush2.msra.mxu0 0.0
    %1047 = vmatprep.subr.mxu0 0.0
    %1048 = vmatpush2.msra.mxu0 0.0
    %1049 = vmatprep.subr.mxu0 0.0
    %1050 = vmatpush2.msra.mxu0 0.0
    %1051 = vmatprep.subr.mxu0 0.0
    %1052 = vmatpush2.msra.mxu0 0.0
    %1053 = vmatprep.subr.mxu0 0.0
    %1054 = vmatpush2.msra.mxu0 0.0
    %1055 = vmatprep.subr.mxu0 0.0
    %1056 = vmatpush2.msra.mxu0 0.0
    %1057 = vmatprep.subr.mxu0 0.0
    %1058 = vmatpush2.msra.mxu0 0.0
    %1059 = vmatprep.subr.mxu0 0.0
    %1060 = vmatpush2.msra.mxu0 0.0
    %1061 = vmatprep.subr.mxu0 0.0
    %1062 = vmatpush2.msra.mxu0 0.0
    %1063 = vmatprep.mubr.f32.mxu0 0.0
    %1064 = vmatmul.mubr.f32.gmra.mxu0 %v997
    %v1065 = vpop.f32.mrf.mxu0
    %v1066 = vadd.f32 0.0, %v1065
    %v1067 = vpop.f32.mrf.mxu0
    %1068 = vdwg.mxu0
    %v1070 = vrot.slane %v1066, 2
    %v1071 = vrot.slane %v1066, 3
    %v1074 = vadd.f32 %v180, %v1070
    %v1075 = vadd.f32 %v185, %v1071
    %v1076 = vmul.f32 %v1074, 0.5
    %v1077 = vmul.f32 %v1075, 0.5
    %v1078 = vtanh.pop %v1076
    %v1079 = vtanh.pop %v1077
    %v1080 = vadd.f32 %v1078, 1.0
    %v1081 = vadd.f32 %v1079, 1.0
    %v1082 = vmul.f32 %v1080, 0.5
    %v1083 = vmul.f32 %v1081, 0.5
    %v1084 = vtanh.pop %v1074
    %v1085 = vtanh.pop %v1075
    %v1088 = vrot.slane %v976, 7
    %v1089 = vrot.slane %v977, 7
    %v1092 = vmul.f32 %v1082, %v1088
    %v1093 = vmul.f32 %v1083, %v1089
    %1096 = vrot.lane.b32.xlu0 %v1084, 64
    %v1097 = vpop.permute.xlu0 %1096
    %1098 = vrot.lane.b32.xlu0 %v1085, 64
    %v1099 = vpop.permute.xlu0 %1098
    %v1102 = vmul.f32 %v1082, %v1097
    %v1103 = vmul.f32 %v1083, %v1099
    %1106 = vrot.lane.b32.xlu0 %v1102, 32
    %v1107 = vpop.permute.xlu0 %1106
    %1108 = vrot.lane.b32.xlu0 %v1103, 32
    %v1109 = vpop.permute.xlu0 %1108
    %v1112 = vadd.f32 %v1092, %v1107
    %v1113 = vadd.f32 %v1093, %v1109
    %v1114 = vtanh.pop %v1112
    %v1115 = vtanh.pop %v1113
    %1118 = vrot.lane.b32.xlu0 %v1114, 64
    %v1119 = vpop.permute.xlu0 %1118
    %1120 = vrot.lane.b32.xlu0 %v1115, 64
    %v1121 = vpop.permute.xlu0 %1120
    %v1124 = vmul.f32 %v1082, %v1119
    %v1125 = vmul.f32 %v1083, %v1121
    %v1128 = vrot.slane %v1124, 6
    %v1129 = vrot.slane %v1125, 5
    %v1130 = vsel %vm315, %v1129, %v1128
    %1131 = vrot.lane.b32.xlu0 %v1130, 32
    %v1132 = vpop.permute.xlu0 %1131
    %v1133 = vsel %vm188, %v1132, 0
    %1135 = vmatprep.subr.mxu0 0.0
    %1136 = vmatpush1.msra.mxu0 0.0
    %1137 = vmatprep.subr.mxu0 0.0
    %1138 = vmatpush1.msra.mxu0 0.0
    %1139 = vmatprep.subr.mxu0 0.0
    %1140 = vmatpush1.msra.mxu0 0.0
    %1141 = vmatprep.subr.mxu0 0.0
    %1142 = vmatpush1.msra.mxu0 0.0
    %1143 = vmatprep.subr.mxu0 0.0
    %1144 = vmatpush1.msra.mxu0 0.0
    %1145 = vmatprep.subr.mxu0 0.0
    %1146 = vmatpush1.msra.mxu0 0.0
    %1147 = vmatprep.subr.mxu0 0.0
    %1148 = vmatpush1.msra.mxu0 0.0
    %1149 = vmatprep.subr.mxu0 0.0
    %1150 = vmatpush1.msra.mxu0 0.0
    %1151 = vmatprep.subr.mxu0 0.0
    %1152 = vmatpush1.msra.mxu0 0.0
    %1153 = vmatprep.subr.mxu0 0.0
    %1154 = vmatpush1.msra.mxu0 0.0
    %1155 = vmatprep.subr.mxu0 0.0
    %1156 = vmatpush1.msra.mxu0 0.0
    %1157 = vmatprep.subr.mxu0 0.0
    %1158 = vmatpush1.msra.mxu0 0.0
    %1159 = vmatprep.subr.mxu0 0.0
    %1160 = vmatpush1.msra.mxu0 %v96
    %1161 = vmatprep.subr.mxu0 0.0
    %1162 = vmatpush1.msra.mxu0 %v95
    %1163 = vmatprep.subr.mxu0 0.0
    %1164 = vmatpush1.msra.mxu0 %v94
    %1165 = vmatprep.subr.mxu0 0.0
    %1166 = vmatpush1.msra.mxu0 %v93
    %1167 = vmatprep.subr.mxu0 0.0
    %1168 = vmatpush2.msra.mxu0 0.0
    %1169 = vmatprep.subr.mxu0 0.0
    %1170 = vmatpush2.msra.mxu0 0.0
    %1171 = vmatprep.subr.mxu0 0.0
    %1172 = vmatpush2.msra.mxu0 0.0
    %1173 = vmatprep.subr.mxu0 0.0
    %1174 = vmatpush2.msra.mxu0 0.0
    %1175 = vmatprep.subr.mxu0 0.0
    %1176 = vmatpush2.msra.mxu0 0.0
    %1177 = vmatprep.subr.mxu0 0.0
    %1178 = vmatpush2.msra.mxu0 0.0
    %1179 = vmatprep.subr.mxu0 0.0
    %1180 = vmatpush2.msra.mxu0 0.0
    %1181 = vmatprep.subr.mxu0 0.0
    %1182 = vmatpush2.msra.mxu0 0.0
    %1183 = vmatprep.subr.mxu0 0.0
    %1184 = vmatpush2.msra.mxu0 0.0
    %1185 = vmatprep.subr.mxu0 0.0
    %1186 = vmatpush2.msra.mxu0 0.0
    %1187 = vmatprep.subr.mxu0 0.0
    %1188 = vmatpush2.msra.mxu0 0.0
    %1189 = vmatprep.subr.mxu0 0.0
    %1190 = vmatpush2.msra.mxu0 0.0
    %1191 = vmatprep.subr.mxu0 0.0
    %1192 = vmatpush2.msra.mxu0 0.0
    %1193 = vmatprep.subr.mxu0 0.0
    %1194 = vmatpush2.msra.mxu0 0.0
    %1195 = vmatprep.subr.mxu0 0.0
    %1196 = vmatpush2.msra.mxu0 0.0
    %1197 = vmatprep.subr.mxu0 0.0
    %1198 = vmatpush2.msra.mxu0 0.0
    %1199 = vmatprep.mubr.f32.mxu0 0.0
    %1200 = vmatmul.mubr.f32.gmra.mxu0 %v1133
    %v1201 = vpop.f32.mrf.mxu0
    %v1202 = vadd.f32 0.0, %v1201
    %v1203 = vpop.f32.mrf.mxu0
    %1204 = vdwg.mxu0
    %v1206 = vrot.slane %v1202, 1
    %v1207 = vrot.slane %v1202, 2
    %v1210 = vadd.f32 %v180, %v1206
    %v1211 = vadd.f32 %v185, %v1207
    %v1212 = vmul.f32 %v1210, 0.5
    %v1213 = vmul.f32 %v1211, 0.5
    %v1214 = vtanh.pop %v1212
    %v1215 = vtanh.pop %v1213
    %v1216 = vadd.f32 %v1214, 1.0
    %v1217 = vadd.f32 %v1215, 1.0
    %v1218 = vmul.f32 %v1216, 0.5
    %v1219 = vmul.f32 %v1217, 0.5
    %v1220 = vtanh.pop %v1210
    %v1221 = vtanh.pop %v1211
    %v1224 = vrot.slane %v1112, 7
    %v1225 = vrot.slane %v1113, 7
    %v1228 = vmul.f32 %v1218, %v1224
    %v1229 = vmul.f32 %v1219, %v1225
    %1232 = vrot.lane.b32.xlu0 %v1220, 64
    %v1233 = vpop.permute.xlu0 %1232
    %1234 = vrot.lane.b32.xlu0 %v1221, 64
    %v1235 = vpop.permute.xlu0 %1234
    %v1238 = vmul.f32 %v1218, %v1233
    %v1239 = vmul.f32 %v1219, %v1235
    %1242 = vrot.lane.b32.xlu0 %v1238, 32
    %v1243 = vpop.permute.xlu0 %1242
    %1244 = vrot.lane.b32.xlu0 %v1239, 32
    %v1245 = vpop.permute.xlu0 %1244
    %v1248 = vadd.f32 %v1228, %v1243
    %v1249 = vadd.f32 %v1229, %v1245
    %v1250 = vtanh.pop %v1248
    %v1251 = vtanh.pop %v1249
    %1254 = vrot.lane.b32.xlu0 %v1250, 64
    %v1255 = vpop.permute.xlu0 %1254
    %1256 = vrot.lane.b32.xlu0 %v1251, 64
    %v1257 = vpop.permute.xlu0 %1256
    %v1260 = vmul.f32 %v1218, %v1255
    %v1261 = vmul.f32 %v1219, %v1257
    %v1264 = vrot.slane %v1261, 7
    %1265 = vrot.lane.b32.xlu0 %v1260, 32
    %v1266 = vpop.permute.xlu0 %1265
    %1267 = vrot.lane.b32.xlu0 %v1264, 32
    %v1268 = vpop.permute.xlu0 %1267
    %vm1271 = vcmask 261127
    %1272 = vst.msk [vmem:[#allocation11 - $0x7] sm:$0x80] %vm1271, %v1266
    %vm1273 = vcmask 253952
    %1274 = vst.msk [vmem:[#allocation11 + $0x1] sm:$0x1] %vm1273, %v1268
    %v1277 = vrot.slane %v1249, 7
    %1278 = vrot.lane.b32.xlu0 %v1248, 96
    %v1279 = vpop.permute.xlu0 %1278
    %1280 = vrot.lane.b32.xlu0 %v1277, 96
    %v1281 = vpop.permute.xlu0 %1280
    %1284 = vst.msk [vmem:[#allocation12 - $0x7] sm:$0x80] %vm1271, %v1279
    %1285 = vst.msk [vmem:[#allocation12 + $0x1] sm:$0x1] %vm1273, %v1281
    %v1286 = vld [vmem:[#allocation8] sm:$0xff]
    %v1287 = vld [vmem:[#allocation8 + $0x8] sm:$0xff]
    %v1288 = vld [vmem:[#allocation8 + $0x10] sm:$0xff]
    %v1289 = vld [vmem:[#allocation8 + $0x18] sm:$0xff]
    %v1290 = vld [vmem:[#allocation9] sm:$0xff]
    %v1291 = vld [vmem:[#allocation9 + $0x8] sm:$0xff]
    %v1292 = vld [vmem:[#allocation9 + $0x10] sm:$0xff]
    %v1293 = vld [vmem:[#allocation9 + $0x18] sm:$0xff]
    %v1294 = vld [vmem:[%s6] sm:$0x1]
    %v1296 = vlaneseq
    %v1297 = vshrl.u32 %v1296, 7
    %v1298 = vsub.s32 0, %v1297
    %v1299 = vrot.slane %v1294, %v1298
    %1301 = vmatprep.subr.mxu0 0.0
    %1302 = vmatpush1.msra.mxu0 0.0
    %1303 = vmatprep.subr.mxu0 0.0
    %1304 = vmatpush1.msra.mxu0 0.0
    %1305 = vmatprep.subr.mxu0 0.0
    %1306 = vmatpush1.msra.mxu0 0.0
    %1307 = vmatprep.subr.mxu0 0.0
    %1308 = vmatpush1.msra.mxu0 0.0
    %1309 = vmatprep.subr.mxu0 0.0
    %1310 = vmatpush1.msra.mxu0 0.0
    %1311 = vmatprep.subr.mxu0 0.0
    %1312 = vmatpush1.msra.mxu0 0.0
    %1313 = vmatprep.subr.mxu0 0.0
    %1314 = vmatpush1.msra.mxu0 0.0
    %1315 = vmatprep.subr.mxu0 0.0
    %1316 = vmatpush1.msra.mxu0 0.0
    %1317 = vmatprep.subr.mxu0 0.0
    %1318 = vmatpush1.msra.mxu0 0.0
    %1319 = vmatprep.subr.mxu0 0.0
    %1320 = vmatpush1.msra.mxu0 0.0
    %1321 = vmatprep.subr.mxu0 0.0
    %1322 = vmatpush1.msra.mxu0 0.0
    %1323 = vmatprep.subr.mxu0 0.0
    %1324 = vmatpush1.msra.mxu0 0.0
    %1325 = vmatprep.subr.mxu0 0.0
    %1326 = vmatpush1.msra.mxu0 %v1289
    %1327 = vmatprep.subr.mxu0 0.0
    %1328 = vmatpush1.msra.mxu0 %v1288
    %1329 = vmatprep.subr.mxu0 0.0
    %1330 = vmatpush1.msra.mxu0 %v1287
    %1331 = vmatprep.subr.mxu0 0.0
    %1332 = vmatpush1.msra.mxu0 %v1286
    %1333 = vmatprep.subr.mxu0 0.0
    %1334 = vmatpush2.msra.mxu0 0.0
    %1335 = vmatprep.subr.mxu0 0.0
    %1336 = vmatpush2.msra.mxu0 0.0
    %1337 = vmatprep.subr.mxu0 0.0
    %1338 = vmatpush2.msra.mxu0 0.0
    %1339 = vmatprep.subr.mxu0 0.0
    %1340 = vmatpush2.msra.mxu0 0.0
    %1341 = vmatprep.subr.mxu0 0.0
    %1342 = vmatpush2.msra.mxu0 0.0
    %1343 = vmatprep.subr.mxu0 0.0
    %1344 = vmatpush2.msra.mxu0 0.0
    %1345 = vmatprep.subr.mxu0 0.0
    %1346 = vmatpush2.msra.mxu0 0.0
    %1347 = vmatprep.subr.mxu0 0.0
    %1348 = vmatpush2.msra.mxu0 0.0
    %1349 = vmatprep.subr.mxu0 0.0
    %1350 = vmatpush2.msra.mxu0 0.0
    %1351 = vmatprep.subr.mxu0 0.0
    %1352 = vmatpush2.msra.mxu0 0.0
    %1353 = vmatprep.subr.mxu0 0.0
    %1354 = vmatpush2.msra.mxu0 0.0
    %1355 = vmatprep.subr.mxu0 0.0
    %1356 = vmatpush2.msra.mxu0 0.0
    %1357 = vmatprep.subr.mxu0 0.0
    %1358 = vmatpush2.msra.mxu0 0.0
    %1359 = vmatprep.subr.mxu0 0.0
    %1360 = vmatpush2.msra.mxu0 0.0
    %1361 = vmatprep.subr.mxu0 0.0
    %1362 = vmatpush2.msra.mxu0 0.0
    %1363 = vmatprep.subr.mxu0 0.0
    %1364 = vmatpush2.msra.mxu0 0.0
    %1365 = vmatprep.mubr.f32.mxu0 0.0
    %1366 = vmatmul.mubr.f32.gmra.mxu0 %v319
    %v1367 = vpop.f32.mrf.mxu0
    %v1368 = vadd.f32 %v1299, %v1367
    %v1369 = vpop.f32.mrf.mxu0
    %1370 = vdwg.mxu0
    %1371 = vmatprep.subr.mxu0 0.0
    %1372 = vmatpush1.msra.mxu0 0.0
    %1373 = vmatprep.subr.mxu0 0.0
    %1374 = vmatpush1.msra.mxu0 0.0
    %1375 = vmatprep.subr.mxu0 0.0
    %1376 = vmatpush1.msra.mxu0 0.0
    %1377 = vmatprep.subr.mxu0 0.0
    %1378 = vmatpush1.msra.mxu0 0.0
    %1379 = vmatprep.subr.mxu0 0.0
    %1380 = vmatpush1.msra.mxu0 0.0
    %1381 = vmatprep.subr.mxu0 0.0
    %1382 = vmatpush1.msra.mxu0 0.0
    %1383 = vmatprep.subr.mxu0 0.0
    %1384 = vmatpush1.msra.mxu0 0.0
    %1385 = vmatprep.subr.mxu0 0.0
    %1386 = vmatpush1.msra.mxu0 0.0
    %1387 = vmatprep.subr.mxu0 0.0
    %1388 = vmatpush1.msra.mxu0 0.0
    %1389 = vmatprep.subr.mxu0 0.0
    %1390 = vmatpush1.msra.mxu0 0.0
    %1391 = vmatprep.subr.mxu0 0.0
    %1392 = vmatpush1.msra.mxu0 0.0
    %1393 = vmatprep.subr.mxu0 0.0
    %1394 = vmatpush1.msra.mxu0 0.0
    %1395 = vmatprep.subr.mxu0 0.0
    %1396 = vmatpush1.msra.mxu0 %v1293
    %1397 = vmatprep.subr.mxu0 0.0
    %1398 = vmatpush1.msra.mxu0 %v1292
    %1399 = vmatprep.subr.mxu0 0.0
    %1400 = vmatpush1.msra.mxu0 %v1291
    %1401 = vmatprep.subr.mxu0 0.0
    %1402 = vmatpush1.msra.mxu0 %v1290
    %1403 = vmatprep.subr.mxu0 0.0
    %1404 = vmatpush2.msra.mxu0 0.0
    %1405 = vmatprep.subr.mxu0 0.0
    %1406 = vmatpush2.msra.mxu0 0.0
    %1407 = vmatprep.subr.mxu0 0.0
    %1408 = vmatpush2.msra.mxu0 0.0
    %1409 = vmatprep.subr.mxu0 0.0
    %1410 = vmatpush2.msra.mxu0 0.0
    %1411 = vmatprep.subr.mxu0 0.0
    %1412 = vmatpush2.msra.mxu0 0.0
    %1413 = vmatprep.subr.mxu0 0.0
    %1414 = vmatpush2.msra.mxu0 0.0
    %1415 = vmatprep.subr.mxu0 0.0
    %1416 = vmatpush2.msra.mxu0 0.0
    %1417 = vmatprep.subr.mxu0 0.0
    %1418 = vmatpush2.msra.mxu0 0.0
    %1419 = vmatprep.subr.mxu0 0.0
    %1420 = vmatpush2.msra.mxu0 0.0
    %1421 = vmatprep.subr.mxu0 0.0
    %1422 = vmatpush2.msra.mxu0 0.0
    %1423 = vmatprep.subr.mxu0 0.0
    %1424 = vmatpush2.msra.mxu0 0.0
    %1425 = vmatprep.subr.mxu0 0.0
    %1426 = vmatpush2.msra.mxu0 0.0
    %1427 = vmatprep.subr.mxu0 0.0
    %1428 = vmatpush2.msra.mxu0 0.0
    %1429 = vmatprep.subr.mxu0 0.0
    %1430 = vmatpush2.msra.mxu0 0.0
    %1431 = vmatprep.subr.mxu0 0.0
    %1432 = vmatpush2.msra.mxu0 0.0
    %1433 = vmatprep.subr.mxu0 0.0
    %1434 = vmatpush2.msra.mxu0 0.0
    %1435 = vmatprep.mubr.f32.mxu0 0.0
    %1436 = vmatmul.mubr.f32.gmra.mxu0 %v190
    %v1437 = vpop.f32.mrf.mxu0
    %v1438 = vadd.f32 0.0, %v1437
    %v1439 = vpop.f32.mrf.mxu0
    %1440 = vdwg.mxu0
    %v1441 = vadd.f32 %v1368, %v1438
    %v1442 = vmul.f32 %v1441, 0.5
    %v1443 = vtanh.pop %v1442
    %v1444 = vadd.f32 %v1443, 1.0
    %v1445 = vmul.f32 %v1444, 0.5
    %v1446 = vtanh.pop %v1441
    %v1447 = vmul.f32 %v1445, 0.0
    %1449 = vrot.lane.b32.xlu0 %v1446, 64
    %v1450 = vpop.permute.xlu0 %1449
    %v1452 = vmul.f32 %v1445, %v1450
    %1454 = vrot.lane.b32.xlu0 %v1452, 32
    %v1455 = vpop.permute.xlu0 %1454
    %v1457 = vadd.f32 %v1447, %v1455
    %v1458 = vtanh.pop %v1457
    %1460 = vrot.lane.b32.xlu0 %v1458, 64
    %v1461 = vpop.permute.xlu0 %1460
    %v1463 = vmul.f32 %v1445, %v1461
    %1464 = vmatprep.subr.mxu0 0.0
    %1465 = vmatpush1.msra.mxu0 0.0
    %1466 = vmatprep.subr.mxu0 0.0
    %1467 = vmatpush1.msra.mxu0 0.0
    %1468 = vmatprep.subr.mxu0 0.0
    %1469 = vmatpush1.msra.mxu0 0.0
    %1470 = vmatprep.subr.mxu0 0.0
    %1471 = vmatpush1.msra.mxu0 0.0
    %1472 = vmatprep.subr.mxu0 0.0
    %1473 = vmatpush1.msra.mxu0 0.0
    %1474 = vmatprep.subr.mxu0 0.0
    %1475 = vmatpush1.msra.mxu0 0.0
    %1476 = vmatprep.subr.mxu0 0.0
    %1477 = vmatpush1.msra.mxu0 0.0
    %1478 = vmatprep.subr.mxu0 0.0
    %1479 = vmatpush1.msra.mxu0 0.0
    %1480 = vmatprep.subr.mxu0 0.0
    %1481 = vmatpush1.msra.mxu0 0.0
    %1482 = vmatprep.subr.mxu0 0.0
    %1483 = vmatpush1.msra.mxu0 0.0
    %1484 = vmatprep.subr.mxu0 0.0
    %1485 = vmatpush1.msra.mxu0 0.0
    %1486 = vmatprep.subr.mxu0 0.0
    %1487 = vmatpush1.msra.mxu0 0.0
    %1488 = vmatprep.subr.mxu0 0.0
    %1489 = vmatpush1.msra.mxu0 %v1289
    %1490 = vmatprep.subr.mxu0 0.0
    %1491 = vmatpush1.msra.mxu0 %v1288
    %1492 = vmatprep.subr.mxu0 0.0
    %1493 = vmatpush1.msra.mxu0 %v1287
    %1494 = vmatprep.subr.mxu0 0.0
    %1495 = vmatpush1.msra.mxu0 %v1286
    %1496 = vmatprep.subr.mxu0 0.0
    %1497 = vmatpush2.msra.mxu0 0.0
    %1498 = vmatprep.subr.mxu0 0.0
    %1499 = vmatpush2.msra.mxu0 0.0
    %1500 = vmatprep.subr.mxu0 0.0
    %1501 = vmatpush2.msra.mxu0 0.0
    %1502 = vmatprep.subr.mxu0 0.0
    %1503 = vmatpush2.msra.mxu0 0.0
    %1504 = vmatprep.subr.mxu0 0.0
    %1505 = vmatpush2.msra.mxu0 0.0
    %1506 = vmatprep.subr.mxu0 0.0
    %1507 = vmatpush2.msra.mxu0 0.0
    %1508 = vmatprep.subr.mxu0 0.0
    %1509 = vmatpush2.msra.mxu0 0.0
    %1510 = vmatprep.subr.mxu0 0.0
    %1511 = vmatpush2.msra.mxu0 0.0
    %1512 = vmatprep.subr.mxu0 0.0
    %1513 = vmatpush2.msra.mxu0 0.0
    %1514 = vmatprep.subr.mxu0 0.0
    %1515 = vmatpush2.msra.mxu0 0.0
    %1516 = vmatprep.subr.mxu0 0.0
    %1517 = vmatpush2.msra.mxu0 0.0
    %1518 = vmatprep.subr.mxu0 0.0
    %1519 = vmatpush2.msra.mxu0 0.0
    %1520 = vmatprep.subr.mxu0 0.0
    %1521 = vmatpush2.msra.mxu0 0.0
    %1522 = vmatprep.subr.mxu0 0.0
    %1523 = vmatpush2.msra.mxu0 0.0
    %1524 = vmatprep.subr.mxu0 0.0
    %1525 = vmatpush2.msra.mxu0 0.0
    %1526 = vmatprep.subr.mxu0 0.0
    %1527 = vmatpush2.msra.mxu0 0.0
    %1528 = vmatprep.mubr.f32.mxu0 0.0
    %1529 = vmatmul.mubr.f32.gmra.mxu0 %v453
    %v1530 = vpop.f32.mrf.mxu0
    %v1531 = vadd.f32 %v1299, %v1530
    %v1532 = vpop.f32.mrf.mxu0
    %1533 = vdwg.mxu0
    %1535 = vrot.lane.b32.xlu0 %v1463, 32
    %v1536 = vpop.permute.xlu0 %1535
    %v1537 = vsel %vm188, %v1536, 0
    %1539 = vmatprep.subr.mxu0 0.0
    %1540 = vmatpush1.msra.mxu0 0.0
    %1541 = vmatprep.subr.mxu0 0.0
    %1542 = vmatpush1.msra.mxu0 0.0
    %1543 = vmatprep.subr.mxu0 0.0
    %1544 = vmatpush1.msra.mxu0 0.0
    %1545 = vmatprep.subr.mxu0 0.0
    %1546 = vmatpush1.msra.mxu0 0.0
    %1547 = vmatprep.subr.mxu0 0.0
    %1548 = vmatpush1.msra.mxu0 0.0
    %1549 = vmatprep.subr.mxu0 0.0
    %1550 = vmatpush1.msra.mxu0 0.0
    %1551 = vmatprep.subr.mxu0 0.0
    %1552 = vmatpush1.msra.mxu0 0.0
    %1553 = vmatprep.subr.mxu0 0.0
    %1554 = vmatpush1.msra.mxu0 0.0
    %1555 = vmatprep.subr.mxu0 0.0
    %1556 = vmatpush1.msra.mxu0 0.0
    %1557 = vmatprep.subr.mxu0 0.0
    %1558 = vmatpush1.msra.mxu0 0.0
    %1559 = vmatprep.subr.mxu0 0.0
    %1560 = vmatpush1.msra.mxu0 0.0
    %1561 = vmatprep.subr.mxu0 0.0
    %1562 = vmatpush1.msra.mxu0 0.0
    %1563 = vmatprep.subr.mxu0 0.0
    %1564 = vmatpush1.msra.mxu0 %v1293
    %1565 = vmatprep.subr.mxu0 0.0
    %1566 = vmatpush1.msra.mxu0 %v1292
    %1567 = vmatprep.subr.mxu0 0.0
    %1568 = vmatpush1.msra.mxu0 %v1291
    %1569 = vmatprep.subr.mxu0 0.0
    %1570 = vmatpush1.msra.mxu0 %v1290
    %1571 = vmatprep.subr.mxu0 0.0
    %1572 = vmatpush2.msra.mxu0 0.0
    %1573 = vmatprep.subr.mxu0 0.0
    %1574 = vmatpush2.msra.mxu0 0.0
    %1575 = vmatprep.subr.mxu0 0.0
    %1576 = vmatpush2.msra.mxu0 0.0
    %1577 = vmatprep.subr.mxu0 0.0
    %1578 = vmatpush2.msra.mxu0 0.0
    %1579 = vmatprep.subr.mxu0 0.0
    %1580 = vmatpush2.msra.mxu0 0.0
    %1581 = vmatprep.subr.mxu0 0.0
    %1582 = vmatpush2.msra.mxu0 0.0
    %1583 = vmatprep.subr.mxu0 0.0
    %1584 = vmatpush2.msra.mxu0 0.0
    %1585 = vmatprep.subr.mxu0 0.0
    %1586 = vmatpush2.msra.mxu0 0.0
    %1587 = vmatprep.subr.mxu0 0.0
    %1588 = vmatpush2.msra.mxu0 0.0
    %1589 = vmatprep.subr.mxu0 0.0
    %1590 = vmatpush2.msra.mxu0 0.0
    %1591 = vmatprep.subr.mxu0 0.0
    %1592 = vmatpush2.msra.mxu0 0.0
    %1593 = vmatprep.subr.mxu0 0.0
    %1594 = vmatpush2.msra.mxu0 0.0
    %1595 = vmatprep.subr.mxu0 0.0
    %1596 = vmatpush2.msra.mxu0 0.0
    %1597 = vmatprep.subr.mxu0 0.0
    %1598 = vmatpush2.msra.mxu0 0.0
    %1599 = vmatprep.subr.mxu0 0.0
    %1600 = vmatpush2.msra.mxu0 0.0
    %1601 = vmatprep.subr.mxu0 0.0
    %1602 = vmatpush2.msra.mxu0 0.0
    %1603 = vmatprep.mubr.f32.mxu0 0.0
    %1604 = vmatmul.mubr.f32.gmra.mxu0 %v1537
    %v1605 = vpop.f32.mrf.mxu0
    %v1606 = vadd.f32 0.0, %v1605
    %v1607 = vpop.f32.mrf.mxu0
    %1608 = vdwg.mxu0
    %v1609 = vadd.f32 %v1531, %v1606
    %v1610 = vmul.f32 %v1609, 0.5
    %v1611 = vtanh.pop %v1610
    %v1612 = vadd.f32 %v1611, 1.0
    %v1613 = vmul.f32 %v1612, 0.5
    %v1614 = vtanh.pop %v1609
    %v1615 = vmul.f32 %v1613, %v1457
    %1617 = vrot.lane.b32.xlu0 %v1614, 64
    %v1618 = vpop.permute.xlu0 %1617
    %v1620 = vmul.f32 %v1613, %v1618
    %1622 = vrot.lane.b32.xlu0 %v1620, 32
    %v1623 = vpop.permute.xlu0 %1622
    %v1625 = vadd.f32 %v1615, %v1623
    %v1626 = vtanh.pop %v1625
    %1628 = vrot.lane.b32.xlu0 %v1626, 64
    %v1629 = vpop.permute.xlu0 %1628
    %v1631 = vmul.f32 %v1613, %v1629
    %1632 = vmatprep.subr.mxu0 0.0
    %1633 = vmatpush1.msra.mxu0 0.0
    %1634 = vmatprep.subr.mxu0 0.0
    %1635 = vmatpush1.msra.mxu0 0.0
    %1636 = vmatprep.subr.mxu0 0.0
    %1637 = vmatpush1.msra.mxu0 0.0
    %1638 = vmatprep.subr.mxu0 0.0
    %1639 = vmatpush1.msra.mxu0 0.0
    %1640 = vmatprep.subr.mxu0 0.0
    %1641 = vmatpush1.msra.mxu0 0.0
    %1642 = vmatprep.subr.mxu0 0.0
    %1643 = vmatpush1.msra.mxu0 0.0
    %1644 = vmatprep.subr.mxu0 0.0
    %1645 = vmatpush1.msra.mxu0 0.0
    %1646 = vmatprep.subr.mxu0 0.0
    %1647 = vmatpush1.msra.mxu0 0.0
    %1648 = vmatprep.subr.mxu0 0.0
    %1649 = vmatpush1.msra.mxu0 0.0
    %1650 = vmatprep.subr.mxu0 0.0
    %1651 = vmatpush1.msra.mxu0 0.0
    %1652 = vmatprep.subr.mxu0 0.0
    %1653 = vmatpush1.msra.mxu0 0.0
    %1654 = vmatprep.subr.mxu0 0.0
    %1655 = vmatpush1.msra.mxu0 0.0
    %1656 = vmatprep.subr.mxu0 0.0
    %1657 = vmatpush1.msra.mxu0 %v1289
    %1658 = vmatprep.subr.mxu0 0.0
    %1659 = vmatpush1.msra.mxu0 %v1288
    %1660 = vmatprep.subr.mxu0 0.0
    %1661 = vmatpush1.msra.mxu0 %v1287
    %1662 = vmatprep.subr.mxu0 0.0
    %1663 = vmatpush1.msra.mxu0 %v1286
    %1664 = vmatprep.subr.mxu0 0.0
    %1665 = vmatpush2.msra.mxu0 0.0
    %1666 = vmatprep.subr.mxu0 0.0
    %1667 = vmatpush2.msra.mxu0 0.0
    %1668 = vmatprep.subr.mxu0 0.0
    %1669 = vmatpush2.msra.mxu0 0.0
    %1670 = vmatprep.subr.mxu0 0.0
    %1671 = vmatpush2.msra.mxu0 0.0
    %1672 = vmatprep.subr.mxu0 0.0
    %1673 = vmatpush2.msra.mxu0 0.0
    %1674 = vmatprep.subr.mxu0 0.0
    %1675 = vmatpush2.msra.mxu0 0.0
    %1676 = vmatprep.subr.mxu0 0.0
    %1677 = vmatpush2.msra.mxu0 0.0
    %1678 = vmatprep.subr.mxu0 0.0
    %1679 = vmatpush2.msra.mxu0 0.0
    %1680 = vmatprep.subr.mxu0 0.0
    %1681 = vmatpush2.msra.mxu0 0.0
    %1682 = vmatprep.subr.mxu0 0.0
    %1683 = vmatpush2.msra.mxu0 0.0
    %1684 = vmatprep.subr.mxu0 0.0
    %1685 = vmatpush2.msra.mxu0 0.0
    %1686 = vmatprep.subr.mxu0 0.0
    %1687 = vmatpush2.msra.mxu0 0.0
    %1688 = vmatprep.subr.mxu0 0.0
    %1689 = vmatpush2.msra.mxu0 0.0
    %1690 = vmatprep.subr.mxu0 0.0
    %1691 = vmatpush2.msra.mxu0 0.0
    %1692 = vmatprep.subr.mxu0 0.0
    %1693 = vmatpush2.msra.mxu0 0.0
    %1694 = vmatprep.subr.mxu0 0.0
    %1695 = vmatpush2.msra.mxu0 0.0
    %1696 = vmatprep.mubr.f32.mxu0 0.0
    %1697 = vmatmul.mubr.f32.gmra.mxu0 %v589
    %v1698 = vpop.f32.mrf.mxu0
    %v1699 = vadd.f32 %v1299, %v1698
    %v1700 = vpop.f32.mrf.mxu0
    %1701 = vdwg.mxu0
    %1703 = vrot.lane.b32.xlu0 %v1631, 32
    %v1704 = vpop.permute.xlu0 %1703
    %v1705 = vsel %vm188, %v1704, 0
    %1707 = vmatprep.subr.mxu0 0.0
    %1708 = vmatpush1.msra.mxu0 0.0
    %1709 = vmatprep.subr.mxu0 0.0
    %1710 = vmatpush1.msra.mxu0 0.0
    %1711 = vmatprep.subr.mxu0 0.0
    %1712 = vmatpush1.msra.mxu0 0.0
    %1713 = vmatprep.subr.mxu0 0.0
    %1714 = vmatpush1.msra.mxu0 0.0
    %1715 = vmatprep.subr.mxu0 0.0
    %1716 = vmatpush1.msra.mxu0 0.0
    %1717 = vmatprep.subr.mxu0 0.0
    %1718 = vmatpush1.msra.mxu0 0.0
    %1719 = vmatprep.subr.mxu0 0.0
    %1720 = vmatpush1.msra.mxu0 0.0
    %1721 = vmatprep.subr.mxu0 0.0
    %1722 = vmatpush1.msra.mxu0 0.0
    %1723 = vmatprep.subr.mxu0 0.0
    %1724 = vmatpush1.msra.mxu0 0.0
    %1725 = vmatprep.subr.mxu0 0.0
    %1726 = vmatpush1.msra.mxu0 0.0
    %1727 = vmatprep.subr.mxu0 0.0
    %1728 = vmatpush1.msra.mxu0 0.0
    %1729 = vmatprep.subr.mxu0 0.0
    %1730 = vmatpush1.msra.mxu0 0.0
    %1731 = vmatprep.subr.mxu0 0.0
    %1732 = vmatpush1.msra.mxu0 %v1293
    %1733 = vmatprep.subr.mxu0 0.0
    %1734 = vmatpush1.msra.mxu0 %v1292
    %1735 = vmatprep.subr.mxu0 0.0
    %1736 = vmatpush1.msra.mxu0 %v1291
    %1737 = vmatprep.subr.mxu0 0.0
    %1738 = vmatpush1.msra.mxu0 %v1290
    %1739 = vmatprep.subr.mxu0 0.0
    %1740 = vmatpush2.msra.mxu0 0.0
    %1741 = vmatprep.subr.mxu0 0.0
    %1742 = vmatpush2.msra.mxu0 0.0
    %1743 = vmatprep.subr.mxu0 0.0
    %1744 = vmatpush2.msra.mxu0 0.0
    %1745 = vmatprep.subr.mxu0 0.0
    %1746 = vmatpush2.msra.mxu0 0.0
    %1747 = vmatprep.subr.mxu0 0.0
    %1748 = vmatpush2.msra.mxu0 0.0
    %1749 = vmatprep.subr.mxu0 0.0
    %1750 = vmatpush2.msra.mxu0 0.0
    %1751 = vmatprep.subr.mxu0 0.0
    %1752 = vmatpush2.msra.mxu0 0.0
    %1753 = vmatprep.subr.mxu0 0.0
    %1754 = vmatpush2.msra.mxu0 0.0
    %1755 = vmatprep.subr.mxu0 0.0
    %1756 = vmatpush2.msra.mxu0 0.0
    %1757 = vmatprep.subr.mxu0 0.0
    %1758 = vmatpush2.msra.mxu0 0.0
    %1759 = vmatprep.subr.mxu0 0.0
    %1760 = vmatpush2.msra.mxu0 0.0
    %1761 = vmatprep.subr.mxu0 0.0
    %1762 = vmatpush2.msra.mxu0 0.0
    %1763 = vmatprep.subr.mxu0 0.0
    %1764 = vmatpush2.msra.mxu0 0.0
    %1765 = vmatprep.subr.mxu0 0.0
    %1766 = vmatpush2.msra.mxu0 0.0
    %1767 = vmatprep.subr.mxu0 0.0
    %1768 = vmatpush2.msra.mxu0 0.0
    %1769 = vmatprep.subr.mxu0 0.0
    %1770 = vmatpush2.msra.mxu0 0.0
    %1771 = vmatprep.mubr.f32.mxu0 0.0
    %1772 = vmatmul.mubr.f32.gmra.mxu0 %v1705
    %v1773 = vpop.f32.mrf.mxu0
    %v1774 = vadd.f32 0.0, %v1773
    %v1775 = vpop.f32.mrf.mxu0
    %1776 = vdwg.mxu0
    %v1777 = vadd.f32 %v1699, %v1774
    %v1778 = vmul.f32 %v1777, 0.5
    %v1779 = vtanh.pop %v1778
    %v1780 = vadd.f32 %v1779, 1.0
    %v1781 = vmul.f32 %v1780, 0.5
    %v1782 = vtanh.pop %v1777
    %v1783 = vmul.f32 %v1781, %v1625
    %1785 = vrot.lane.b32.xlu0 %v1782, 64
    %v1786 = vpop.permute.xlu0 %1785
    %v1788 = vmul.f32 %v1781, %v1786
    %1790 = vrot.lane.b32.xlu0 %v1788, 32
    %v1791 = vpop.permute.xlu0 %1790
    %v1793 = vadd.f32 %v1783, %v1791
    %v1794 = vtanh.pop %v1793
    %1796 = vrot.lane.b32.xlu0 %v1794, 64
    %v1797 = vpop.permute.xlu0 %1796
    %v1799 = vmul.f32 %v1781, %v1797
    %1800 = vmatprep.subr.mxu0 0.0
    %1801 = vmatpush1.msra.mxu0 0.0
    %1802 = vmatprep.subr.mxu0 0.0
    %1803 = vmatpush1.msra.mxu0 0.0
    %1804 = vmatprep.subr.mxu0 0.0
    %1805 = vmatpush1.msra.mxu0 0.0
    %1806 = vmatprep.subr.mxu0 0.0
    %1807 = vmatpush1.msra.mxu0 0.0
    %1808 = vmatprep.subr.mxu0 0.0
    %1809 = vmatpush1.msra.mxu0 0.0
    %1810 = vmatprep.subr.mxu0 0.0
    %1811 = vmatpush1.msra.mxu0 0.0
    %1812 = vmatprep.subr.mxu0 0.0
    %1813 = vmatpush1.msra.mxu0 0.0
    %1814 = vmatprep.subr.mxu0 0.0
    %1815 = vmatpush1.msra.mxu0 0.0
    %1816 = vmatprep.subr.mxu0 0.0
    %1817 = vmatpush1.msra.mxu0 0.0
    %1818 = vmatprep.subr.mxu0 0.0
    %1819 = vmatpush1.msra.mxu0 0.0
    %1820 = vmatprep.subr.mxu0 0.0
    %1821 = vmatpush1.msra.mxu0 0.0
    %1822 = vmatprep.subr.mxu0 0.0
    %1823 = vmatpush1.msra.mxu0 0.0
    %1824 = vmatprep.subr.mxu0 0.0
    %1825 = vmatpush1.msra.mxu0 %v1289
    %1826 = vmatprep.subr.mxu0 0.0
    %1827 = vmatpush1.msra.mxu0 %v1288
    %1828 = vmatprep.subr.mxu0 0.0
    %1829 = vmatpush1.msra.mxu0 %v1287
    %1830 = vmatprep.subr.mxu0 0.0
    %1831 = vmatpush1.msra.mxu0 %v1286
    %1832 = vmatprep.subr.mxu0 0.0
    %1833 = vmatpush2.msra.mxu0 0.0
    %1834 = vmatprep.subr.mxu0 0.0
    %1835 = vmatpush2.msra.mxu0 0.0
    %1836 = vmatprep.subr.mxu0 0.0
    %1837 = vmatpush2.msra.mxu0 0.0
    %1838 = vmatprep.subr.mxu0 0.0
    %1839 = vmatpush2.msra.mxu0 0.0
    %1840 = vmatprep.subr.mxu0 0.0
    %1841 = vmatpush2.msra.mxu0 0.0
    %1842 = vmatprep.subr.mxu0 0.0
    %1843 = vmatpush2.msra.mxu0 0.0
    %1844 = vmatprep.subr.mxu0 0.0
    %1845 = vmatpush2.msra.mxu0 0.0
    %1846 = vmatprep.subr.mxu0 0.0
    %1847 = vmatpush2.msra.mxu0 0.0
    %1848 = vmatprep.subr.mxu0 0.0
    %1849 = vmatpush2.msra.mxu0 0.0
    %1850 = vmatprep.subr.mxu0 0.0
    %1851 = vmatpush2.msra.mxu0 0.0
    %1852 = vmatprep.subr.mxu0 0.0
    %1853 = vmatpush2.msra.mxu0 0.0
    %1854 = vmatprep.subr.mxu0 0.0
    %1855 = vmatpush2.msra.mxu0 0.0
    %1856 = vmatprep.subr.mxu0 0.0
    %1857 = vmatpush2.msra.mxu0 0.0
    %1858 = vmatprep.subr.mxu0 0.0
    %1859 = vmatpush2.msra.mxu0 0.0
    %1860 = vmatprep.subr.mxu0 0.0
    %1861 = vmatpush2.msra.mxu0 0.0
    %1862 = vmatprep.subr.mxu0 0.0
    %1863 = vmatpush2.msra.mxu0 0.0
    %1864 = vmatprep.mubr.f32.mxu0 0.0
    %1865 = vmatmul.mubr.f32.gmra.mxu0 %v725
    %v1866 = vpop.f32.mrf.mxu0
    %v1867 = vadd.f32 %v1299, %v1866
    %v1868 = vpop.f32.mrf.mxu0
    %1869 = vdwg.mxu0
    %1871 = vrot.lane.b32.xlu0 %v1799, 32
    %v1872 = vpop.permute.xlu0 %1871
    %v1873 = vsel %vm188, %v1872, 0
    %1875 = vmatprep.subr.mxu0 0.0
    %1876 = vmatpush1.msra.mxu0 0.0
    %1877 = vmatprep.subr.mxu0 0.0
    %1878 = vmatpush1.msra.mxu0 0.0
    %1879 = vmatprep.subr.mxu0 0.0
    %1880 = vmatpush1.msra.mxu0 0.0
    %1881 = vmatprep.subr.mxu0 0.0
    %1882 = vmatpush1.msra.mxu0 0.0
    %1883 = vmatprep.subr.mxu0 0.0
    %1884 = vmatpush1.msra.mxu0 0.0
    %1885 = vmatprep.subr.mxu0 0.0
    %1886 = vmatpush1.msra.mxu0 0.0
    %1887 = vmatprep.subr.mxu0 0.0
    %1888 = vmatpush1.msra.mxu0 0.0
    %1889 = vmatprep.subr.mxu0 0.0
    %1890 = vmatpush1.msra.mxu0 0.0
    %1891 = vmatprep.subr.mxu0 0.0
    %1892 = vmatpush1.msra.mxu0 0.0
    %1893 = vmatprep.subr.mxu0 0.0
    %1894 = vmatpush1.msra.mxu0 0.0
    %1895 = vmatprep.subr.mxu0 0.0
    %1896 = vmatpush1.msra.mxu0 0.0
    %1897 = vmatprep.subr.mxu0 0.0
    %1898 = vmatpush1.msra.mxu0 0.0
    %1899 = vmatprep.subr.mxu0 0.0
    %1900 = vmatpush1.msra.mxu0 %v1293
    %1901 = vmatprep.subr.mxu0 0.0
    %1902 = vmatpush1.msra.mxu0 %v1292
    %1903 = vmatprep.subr.mxu0 0.0
    %1904 = vmatpush1.msra.mxu0 %v1291
    %1905 = vmatprep.subr.mxu0 0.0
    %1906 = vmatpush1.msra.mxu0 %v1290
    %1907 = vmatprep.subr.mxu0 0.0
    %1908 = vmatpush2.msra.mxu0 0.0
    %1909 = vmatprep.subr.mxu0 0.0
    %1910 = vmatpush2.msra.mxu0 0.0
    %1911 = vmatprep.subr.mxu0 0.0
    %1912 = vmatpush2.msra.mxu0 0.0
    %1913 = vmatprep.subr.mxu0 0.0
    %1914 = vmatpush2.msra.mxu0 0.0
    %1915 = vmatprep.subr.mxu0 0.0
    %1916 = vmatpush2.msra.mxu0 0.0
    %1917 = vmatprep.subr.mxu0 0.0
    %1918 = vmatpush2.msra.mxu0 0.0
    %1919 = vmatprep.subr.mxu0 0.0
    %1920 = vmatpush2.msra.mxu0 0.0
    %1921 = vmatprep.subr.mxu0 0.0
    %1922 = vmatpush2.msra.mxu0 0.0
    %1923 = vmatprep.subr.mxu0 0.0
    %1924 = vmatpush2.msra.mxu0 0.0
    %1925 = vmatprep.subr.mxu0 0.0
    %1926 = vmatpush2.msra.mxu0 0.0
    %1927 = vmatprep.subr.mxu0 0.0
    %1928 = vmatpush2.msra.mxu0 0.0
    %1929 = vmatprep.subr.mxu0 0.0
    %1930 = vmatpush2.msra.mxu0 0.0
    %1931 = vmatprep.subr.mxu0 0.0
    %1932 = vmatpush2.msra.mxu0 0.0
    %1933 = vmatprep.subr.mxu0 0.0
    %1934 = vmatpush2.msra.mxu0 0.0
    %1935 = vmatprep.subr.mxu0 0.0
    %1936 = vmatpush2.msra.mxu0 0.0
    %1937 = vmatprep.subr.mxu0 0.0
    %1938 = vmatpush2.msra.mxu0 0.0
    %1939 = vmatprep.mubr.f32.mxu0 0.0
    %1940 = vmatmul.mubr.f32.gmra.mxu0 %v1873
    %v1941 = vpop.f32.mrf.mxu0
    %v1942 = vadd.f32 0.0, %v1941
    %v1943 = vpop.f32.mrf.mxu0
    %1944 = vdwg.mxu0
    %v1945 = vadd.f32 %v1867, %v1942
    %v1946 = vmul.f32 %v1945, 0.5
    %v1947 = vtanh.pop %v1946
    %v1948 = vadd.f32 %v1947, 1.0
    %v1949 = vmul.f32 %v1948, 0.5
    %v1950 = vtanh.pop %v1945
    %v1951 = vmul.f32 %v1949, %v1793
    %1953 = vrot.lane.b32.xlu0 %v1950, 64
    %v1954 = vpop.permute.xlu0 %1953
    %v1956 = vmul.f32 %v1949, %v1954
    %1958 = vrot.lane.b32.xlu0 %v1956, 32
    %v1959 = vpop.permute.xlu0 %1958
    %v1961 = vadd.f32 %v1951, %v1959
    %v1962 = vtanh.pop %v1961
    %1964 = vrot.lane.b32.xlu0 %v1962, 64
    %v1965 = vpop.permute.xlu0 %1964
    %v1967 = vmul.f32 %v1949, %v1965
    %1968 = vmatprep.subr.mxu0 0.0
    %1969 = vmatpush1.msra.mxu0 0.0
    %1970 = vmatprep.subr.mxu0 0.0
    %1971 = vmatpush1.msra.mxu0 0.0
    %1972 = vmatprep.subr.mxu0 0.0
    %1973 = vmatpush1.msra.mxu0 0.0
    %1974 = vmatprep.subr.mxu0 0.0
    %1975 = vmatpush1.msra.mxu0 0.0
    %1976 = vmatprep.subr.mxu0 0.0
    %1977 = vmatpush1.msra.mxu0 0.0
    %1978 = vmatprep.subr.mxu0 0.0
    %1979 = vmatpush1.msra.mxu0 0.0
    %1980 = vmatprep.subr.mxu0 0.0
    %1981 = vmatpush1.msra.mxu0 0.0
    %1982 = vmatprep.subr.mxu0 0.0
    %1983 = vmatpush1.msra.mxu0 0.0
    %1984 = vmatprep.subr.mxu0 0.0
    %1985 = vmatpush1.msra.mxu0 0.0
    %1986 = vmatprep.subr.mxu0 0.0
    %1987 = vmatpush1.msra.mxu0 0.0
    %1988 = vmatprep.subr.mxu0 0.0
    %1989 = vmatpush1.msra.mxu0 0.0
    %1990 = vmatprep.subr.mxu0 0.0
    %1991 = vmatpush1.msra.mxu0 0.0
    %1992 = vmatprep.subr.mxu0 0.0
    %1993 = vmatpush1.msra.mxu0 %v1289
    %1994 = vmatprep.subr.mxu0 0.0
    %1995 = vmatpush1.msra.mxu0 %v1288
    %1996 = vmatprep.subr.mxu0 0.0
    %1997 = vmatpush1.msra.mxu0 %v1287
    %1998 = vmatprep.subr.mxu0 0.0
    %1999 = vmatpush1.msra.mxu0 %v1286
    %2000 = vmatprep.subr.mxu0 0.0
    %2001 = vmatpush2.msra.mxu0 0.0
    %2002 = vmatprep.subr.mxu0 0.0
    %2003 = vmatpush2.msra.mxu0 0.0
    %2004 = vmatprep.subr.mxu0 0.0
    %2005 = vmatpush2.msra.mxu0 0.0
    %2006 = vmatprep.subr.mxu0 0.0
    %2007 = vmatpush2.msra.mxu0 0.0
    %2008 = vmatprep.subr.mxu0 0.0
    %2009 = vmatpush2.msra.mxu0 0.0
    %2010 = vmatprep.subr.mxu0 0.0
    %2011 = vmatpush2.msra.mxu0 0.0
    %2012 = vmatprep.subr.mxu0 0.0
    %2013 = vmatpush2.msra.mxu0 0.0
    %2014 = vmatprep.subr.mxu0 0.0
    %2015 = vmatpush2.msra.mxu0 0.0
    %2016 = vmatprep.subr.mxu0 0.0
    %2017 = vmatpush2.msra.mxu0 0.0
    %2018 = vmatprep.subr.mxu0 0.0
    %2019 = vmatpush2.msra.mxu0 0.0
    %2020 = vmatprep.subr.mxu0 0.0
    %2021 = vmatpush2.msra.mxu0 0.0
    %2022 = vmatprep.subr.mxu0 0.0
    %2023 = vmatpush2.msra.mxu0 0.0
    %2024 = vmatprep.subr.mxu0 0.0
    %2025 = vmatpush2.msra.mxu0 0.0
    %2026 = vmatprep.subr.mxu0 0.0
    %2027 = vmatpush2.msra.mxu0 0.0
    %2028 = vmatprep.subr.mxu0 0.0
    %2029 = vmatpush2.msra.mxu0 0.0
    %2030 = vmatprep.subr.mxu0 0.0
    %2031 = vmatpush2.msra.mxu0 0.0
    %2032 = vmatprep.mubr.f32.mxu0 0.0
    %2033 = vmatmul.mubr.f32.gmra.mxu0 %v861
    %v2034 = vpop.f32.mrf.mxu0
    %v2035 = vadd.f32 %v1299, %v2034
    %v2036 = vpop.f32.mrf.mxu0
    %2037 = vdwg.mxu0
    %2039 = vrot.lane.b32.xlu0 %v1967, 32
    %v2040 = vpop.permute.xlu0 %2039
    %v2041 = vsel %vm188, %v2040, 0
    %2043 = vmatprep.subr.mxu0 0.0
    %2044 = vmatpush1.msra.mxu0 0.0
    %2045 = vmatprep.subr.mxu0 0.0
    %2046 = vmatpush1.msra.mxu0 0.0
    %2047 = vmatprep.subr.mxu0 0.0
    %2048 = vmatpush1.msra.mxu0 0.0
    %2049 = vmatprep.subr.mxu0 0.0
    %2050 = vmatpush1.msra.mxu0 0.0
    %2051 = vmatprep.subr.mxu0 0.0
    %2052 = vmatpush1.msra.mxu0 0.0
    %2053 = vmatprep.subr.mxu0 0.0
    %2054 = vmatpush1.msra.mxu0 0.0
    %2055 = vmatprep.subr.mxu0 0.0
    %2056 = vmatpush1.msra.mxu0 0.0
    %2057 = vmatprep.subr.mxu0 0.0
    %2058 = vmatpush1.msra.mxu0 0.0
    %2059 = vmatprep.subr.mxu0 0.0
    %2060 = vmatpush1.msra.mxu0 0.0
    %2061 = vmatprep.subr.mxu0 0.0
    %2062 = vmatpush1.msra.mxu0 0.0
    %2063 = vmatprep.subr.mxu0 0.0
    %2064 = vmatpush1.msra.mxu0 0.0
    %2065 = vmatprep.subr.mxu0 0.0
    %2066 = vmatpush1.msra.mxu0 0.0
    %2067 = vmatprep.subr.mxu0 0.0
    %2068 = vmatpush1.msra.mxu0 %v1293
    %2069 = vmatprep.subr.mxu0 0.0
    %2070 = vmatpush1.msra.mxu0 %v1292
    %2071 = vmatprep.subr.mxu0 0.0
    %2072 = vmatpush1.msra.mxu0 %v1291
    %2073 = vmatprep.subr.mxu0 0.0
    %2074 = vmatpush1.msra.mxu0 %v1290
    %2075 = vmatprep.subr.mxu0 0.0
    %2076 = vmatpush2.msra.mxu0 0.0
    %2077 = vmatprep.subr.mxu0 0.0
    %2078 = vmatpush2.msra.mxu0 0.0
    %2079 = vmatprep.subr.mxu0 0.0
    %2080 = vmatpush2.msra.mxu0 0.0
    %2081 = vmatprep.subr.mxu0 0.0
    %2082 = vmatpush2.msra.mxu0 0.0
    %2083 = vmatprep.subr.mxu0 0.0
    %2084 = vmatpush2.msra.mxu0 0.0
    %2085 = vmatprep.subr.mxu0 0.0
    %2086 = vmatpush2.msra.mxu0 0.0
    %2087 = vmatprep.subr.mxu0 0.0
    %2088 = vmatpush2.msra.mxu0 0.0
    %2089 = vmatprep.subr.mxu0 0.0
    %2090 = vmatpush2.msra.mxu0 0.0
    %2091 = vmatprep.subr.mxu0 0.0
    %2092 = vmatpush2.msra.mxu0 0.0
    %2093 = vmatprep.subr.mxu0 0.0
    %2094 = vmatpush2.msra.mxu0 0.0
    %2095 = vmatprep.subr.mxu0 0.0
    %2096 = vmatpush2.msra.mxu0 0.0
    %2097 = vmatprep.subr.mxu0 0.0
    %2098 = vmatpush2.msra.mxu0 0.0
    %2099 = vmatprep.subr.mxu0 0.0
    %2100 = vmatpush2.msra.mxu0 0.0
    %2101 = vmatprep.subr.mxu0 0.0
    %2102 = vmatpush2.msra.mxu0 0.0
    %2103 = vmatprep.subr.mxu0 0.0
    %2104 = vmatpush2.msra.mxu0 0.0
    %2105 = vmatprep.subr.mxu0 0.0
    %2106 = vmatpush2.msra.mxu0 0.0
    %2107 = vmatprep.mubr.f32.mxu0 0.0
    %2108 = vmatmul.mubr.f32.gmra.mxu0 %v2041
    %v2109 = vpop.f32.mrf.mxu0
    %v2110 = vadd.f32 0.0, %v2109
    %v2111 = vpop.f32.mrf.mxu0
    %2112 = vdwg.mxu0
    %v2113 = vadd.f32 %v2035, %v2110
    %v2114 = vmul.f32 %v2113, 0.5
    %v2115 = vtanh.pop %v2114
    %v2116 = vadd.f32 %v2115, 1.0
    %v2117 = vmul.f32 %v2116, 0.5
    %v2118 = vtanh.pop %v2113
    %v2119 = vmul.f32 %v2117, %v1961
    %2121 = vrot.lane.b32.xlu0 %v2118, 64
    %v2122 = vpop.permute.xlu0 %2121
    %v2124 = vmul.f32 %v2117, %v2122
    %2126 = vrot.lane.b32.xlu0 %v2124, 32
    %v2127 = vpop.permute.xlu0 %2126
    %v2129 = vadd.f32 %v2119, %v2127
    %v2130 = vtanh.pop %v2129
    %2132 = vrot.lane.b32.xlu0 %v2130, 64
    %v2133 = vpop.permute.xlu0 %2132
    %v2135 = vmul.f32 %v2117, %v2133
    %2136 = vmatprep.subr.mxu0 0.0
    %2137 = vmatpush1.msra.mxu0 0.0
    %2138 = vmatprep.subr.mxu0 0.0
    %2139 = vmatpush1.msra.mxu0 0.0
    %2140 = vmatprep.subr.mxu0 0.0
    %2141 = vmatpush1.msra.mxu0 0.0
    %2142 = vmatprep.subr.mxu0 0.0
    %2143 = vmatpush1.msra.mxu0 0.0
    %2144 = vmatprep.subr.mxu0 0.0
    %2145 = vmatpush1.msra.mxu0 0.0
    %2146 = vmatprep.subr.mxu0 0.0
    %2147 = vmatpush1.msra.mxu0 0.0
    %2148 = vmatprep.subr.mxu0 0.0
    %2149 = vmatpush1.msra.mxu0 0.0
    %2150 = vmatprep.subr.mxu0 0.0
    %2151 = vmatpush1.msra.mxu0 0.0
    %2152 = vmatprep.subr.mxu0 0.0
    %2153 = vmatpush1.msra.mxu0 0.0
    %2154 = vmatprep.subr.mxu0 0.0
    %2155 = vmatpush1.msra.mxu0 0.0
    %2156 = vmatprep.subr.mxu0 0.0
    %2157 = vmatpush1.msra.mxu0 0.0
    %2158 = vmatprep.subr.mxu0 0.0
    %2159 = vmatpush1.msra.mxu0 0.0
    %2160 = vmatprep.subr.mxu0 0.0
    %2161 = vmatpush1.msra.mxu0 %v1289
    %2162 = vmatprep.subr.mxu0 0.0
    %2163 = vmatpush1.msra.mxu0 %v1288
    %2164 = vmatprep.subr.mxu0 0.0
    %2165 = vmatpush1.msra.mxu0 %v1287
    %2166 = vmatprep.subr.mxu0 0.0
    %2167 = vmatpush1.msra.mxu0 %v1286
    %2168 = vmatprep.subr.mxu0 0.0
    %2169 = vmatpush2.msra.mxu0 0.0
    %2170 = vmatprep.subr.mxu0 0.0
    %2171 = vmatpush2.msra.mxu0 0.0
    %2172 = vmatprep.subr.mxu0 0.0
    %2173 = vmatpush2.msra.mxu0 0.0
    %2174 = vmatprep.subr.mxu0 0.0
    %2175 = vmatpush2.msra.mxu0 0.0
    %2176 = vmatprep.subr.mxu0 0.0
    %2177 = vmatpush2.msra.mxu0 0.0
    %2178 = vmatprep.subr.mxu0 0.0
    %2179 = vmatpush2.msra.mxu0 0.0
    %2180 = vmatprep.subr.mxu0 0.0
    %2181 = vmatpush2.msra.mxu0 0.0
    %2182 = vmatprep.subr.mxu0 0.0
    %2183 = vmatpush2.msra.mxu0 0.0
    %2184 = vmatprep.subr.mxu0 0.0
    %2185 = vmatpush2.msra.mxu0 0.0
    %2186 = vmatprep.subr.mxu0 0.0
    %2187 = vmatpush2.msra.mxu0 0.0
    %2188 = vmatprep.subr.mxu0 0.0
    %2189 = vmatpush2.msra.mxu0 0.0
    %2190 = vmatprep.subr.mxu0 0.0
    %2191 = vmatpush2.msra.mxu0 0.0
    %2192 = vmatprep.subr.mxu0 0.0
    %2193 = vmatpush2.msra.mxu0 0.0
    %2194 = vmatprep.subr.mxu0 0.0
    %2195 = vmatpush2.msra.mxu0 0.0
    %2196 = vmatprep.subr.mxu0 0.0
    %2197 = vmatpush2.msra.mxu0 0.0
    %2198 = vmatprep.subr.mxu0 0.0
    %2199 = vmatpush2.msra.mxu0 0.0
    %2200 = vmatprep.mubr.f32.mxu0 0.0
    %2201 = vmatmul.mubr.f32.gmra.mxu0 %v997
    %v2202 = vpop.f32.mrf.mxu0
    %v2203 = vadd.f32 %v1299, %v2202
    %v2204 = vpop.f32.mrf.mxu0
    %2205 = vdwg.mxu0
    %2207 = vrot.lane.b32.xlu0 %v2135, 32
    %v2208 = vpop.permute.xlu0 %2207
    %v2209 = vsel %vm188, %v2208, 0
    %2211 = vmatprep.subr.mxu0 0.0
    %2212 = vmatpush1.msra.mxu0 0.0
    %2213 = vmatprep.subr.mxu0 0.0
    %2214 = vmatpush1.msra.mxu0 0.0
    %2215 = vmatprep.subr.mxu0 0.0
    %2216 = vmatpush1.msra.mxu0 0.0
    %2217 = vmatprep.subr.mxu0 0.0
    %2218 = vmatpush1.msra.mxu0 0.0
    %2219 = vmatprep.subr.mxu0 0.0
    %2220 = vmatpush1.msra.mxu0 0.0
    %2221 = vmatprep.subr.mxu0 0.0
    %2222 = vmatpush1.msra.mxu0 0.0
    %2223 = vmatprep.subr.mxu0 0.0
    %2224 = vmatpush1.msra.mxu0 0.0
    %2225 = vmatprep.subr.mxu0 0.0
    %2226 = vmatpush1.msra.mxu0 0.0
    %2227 = vmatprep.subr.mxu0 0.0
    %2228 = vmatpush1.msra.mxu0 0.0
    %2229 = vmatprep.subr.mxu0 0.0
    %2230 = vmatpush1.msra.mxu0 0.0
    %2231 = vmatprep.subr.mxu0 0.0
    %2232 = vmatpush1.msra.mxu0 0.0
    %2233 = vmatprep.subr.mxu0 0.0
    %2234 = vmatpush1.msra.mxu0 0.0
    %2235 = vmatprep.subr.mxu0 0.0
    %2236 = vmatpush1.msra.mxu0 %v1293
    %2237 = vmatprep.subr.mxu0 0.0
    %2238 = vmatpush1.msra.mxu0 %v1292
    %2239 = vmatprep.subr.mxu0 0.0
    %2240 = vmatpush1.msra.mxu0 %v1291
    %2241 = vmatprep.subr.mxu0 0.0
    %2242 = vmatpush1.msra.mxu0 %v1290
    %2243 = vmatprep.subr.mxu0 0.0
    %2244 = vmatpush2.msra.mxu0 0.0
    %2245 = vmatprep.subr.mxu0 0.0
    %2246 = vmatpush2.msra.mxu0 0.0
    %2247 = vmatprep.subr.mxu0 0.0
    %2248 = vmatpush2.msra.mxu0 0.0
    %2249 = vmatprep.subr.mxu0 0.0
    %2250 = vmatpush2.msra.mxu0 0.0
    %2251 = vmatprep.subr.mxu0 0.0
    %2252 = vmatpush2.msra.mxu0 0.0
    %2253 = vmatprep.subr.mxu0 0.0
    %2254 = vmatpush2.msra.mxu0 0.0
    %2255 = vmatprep.subr.mxu0 0.0
    %2256 = vmatpush2.msra.mxu0 0.0
    %2257 = vmatprep.subr.mxu0 0.0
    %2258 = vmatpush2.msra.mxu0 0.0
    %2259 = vmatprep.subr.mxu0 0.0
    %2260 = vmatpush2.msra.mxu0 0.0
    %2261 = vmatprep.subr.mxu0 0.0
    %2262 = vmatpush2.msra.mxu0 0.0
    %2263 = vmatprep.subr.mxu0 0.0
    %2264 = vmatpush2.msra.mxu0 0.0
    %2265 = vmatprep.subr.mxu0 0.0
    %2266 = vmatpush2.msra.mxu0 0.0
    %2267 = vmatprep.subr.mxu0 0.0
    %2268 = vmatpush2.msra.mxu0 0.0
    %2269 = vmatprep.subr.mxu0 0.0
    %2270 = vmatpush2.msra.mxu0 0.0
    %2271 = vmatprep.subr.mxu0 0.0
    %2272 = vmatpush2.msra.mxu0 0.0
    %2273 = vmatprep.subr.mxu0 0.0
    %2274 = vmatpush2.msra.mxu0 0.0
    %2275 = vmatprep.mubr.f32.mxu0 0.0
    %2276 = vmatmul.mubr.f32.gmra.mxu0 %v2209
    %v2277 = vpop.f32.mrf.mxu0
    %v2278 = vadd.f32 0.0, %v2277
    %v2279 = vpop.f32.mrf.mxu0
    %2280 = vdwg.mxu0
    %v2281 = vadd.f32 %v2203, %v2278
    %v2282 = vmul.f32 %v2281, 0.5
    %v2283 = vtanh.pop %v2282
    %v2284 = vadd.f32 %v2283, 1.0
    %v2285 = vmul.f32 %v2284, 0.5
    %v2286 = vtanh.pop %v2281
    %v2287 = vmul.f32 %v2285, %v2129
    %2289 = vrot.lane.b32.xlu0 %v2286, 64
    %v2290 = vpop.permute.xlu0 %2289
    %v2292 = vmul.f32 %v2285, %v2290
    %2294 = vrot.lane.b32.xlu0 %v2292, 32
    %v2295 = vpop.permute.xlu0 %2294
    %v2297 = vadd.f32 %v2287, %v2295
    %v2298 = vtanh.pop %v2297
    %2300 = vrot.lane.b32.xlu0 %v2298, 64
    %v2301 = vpop.permute.xlu0 %2300
    %v2303 = vmul.f32 %v2285, %v2301
    %2304 = vmatprep.subr.mxu0 0.0
    %2305 = vmatpush1.msra.mxu0 0.0
    %2306 = vmatprep.subr.mxu0 0.0
    %2307 = vmatpush1.msra.mxu0 0.0
    %2308 = vmatprep.subr.mxu0 0.0
    %2309 = vmatpush1.msra.mxu0 0.0
    %2310 = vmatprep.subr.mxu0 0.0
    %2311 = vmatpush1.msra.mxu0 0.0
    %2312 = vmatprep.subr.mxu0 0.0
    %2313 = vmatpush1.msra.mxu0 0.0
    %2314 = vmatprep.subr.mxu0 0.0
    %2315 = vmatpush1.msra.mxu0 0.0
    %2316 = vmatprep.subr.mxu0 0.0
    %2317 = vmatpush1.msra.mxu0 0.0
    %2318 = vmatprep.subr.mxu0 0.0
    %2319 = vmatpush1.msra.mxu0 0.0
    %2320 = vmatprep.subr.mxu0 0.0
    %2321 = vmatpush1.msra.mxu0 0.0
    %2322 = vmatprep.subr.mxu0 0.0
    %2323 = vmatpush1.msra.mxu0 0.0
    %2324 = vmatprep.subr.mxu0 0.0
    %2325 = vmatpush1.msra.mxu0 0.0
    %2326 = vmatprep.subr.mxu0 0.0
    %2327 = vmatpush1.msra.mxu0 0.0
    %2328 = vmatprep.subr.mxu0 0.0
    %2329 = vmatpush1.msra.mxu0 %v1289
    %2330 = vmatprep.subr.mxu0 0.0
    %2331 = vmatpush1.msra.mxu0 %v1288
    %2332 = vmatprep.subr.mxu0 0.0
    %2333 = vmatpush1.msra.mxu0 %v1287
    %2334 = vmatprep.subr.mxu0 0.0
    %2335 = vmatpush1.msra.mxu0 %v1286
    %2336 = vmatprep.subr.mxu0 0.0
    %2337 = vmatpush2.msra.mxu0 0.0
    %2338 = vmatprep.subr.mxu0 0.0
    %2339 = vmatpush2.msra.mxu0 0.0
    %2340 = vmatprep.subr.mxu0 0.0
    %2341 = vmatpush2.msra.mxu0 0.0
    %2342 = vmatprep.subr.mxu0 0.0
    %2343 = vmatpush2.msra.mxu0 0.0
    %2344 = vmatprep.subr.mxu0 0.0
    %2345 = vmatpush2.msra.mxu0 0.0
    %2346 = vmatprep.subr.mxu0 0.0
    %2347 = vmatpush2.msra.mxu0 0.0
    %2348 = vmatprep.subr.mxu0 0.0
    %2349 = vmatpush2.msra.mxu0 0.0
    %2350 = vmatprep.subr.mxu0 0.0
    %2351 = vmatpush2.msra.mxu0 0.0
    %2352 = vmatprep.subr.mxu0 0.0
    %2353 = vmatpush2.msra.mxu0 0.0
    %2354 = vmatprep.subr.mxu0 0.0
    %2355 = vmatpush2.msra.mxu0 0.0
    %2356 = vmatprep.subr.mxu0 0.0
    %2357 = vmatpush2.msra.mxu0 0.0
    %2358 = vmatprep.subr.mxu0 0.0
    %2359 = vmatpush2.msra.mxu0 0.0
    %2360 = vmatprep.subr.mxu0 0.0
    %2361 = vmatpush2.msra.mxu0 0.0
    %2362 = vmatprep.subr.mxu0 0.0
    %2363 = vmatpush2.msra.mxu0 0.0
    %2364 = vmatprep.subr.mxu0 0.0
    %2365 = vmatpush2.msra.mxu0 0.0
    %2366 = vmatprep.subr.mxu0 0.0
    %2367 = vmatpush2.msra.mxu0 0.0
    %2368 = vmatprep.mubr.f32.mxu0 0.0
    %2369 = vmatmul.mubr.f32.gmra.mxu0 %v1133
    %v2370 = vpop.f32.mrf.mxu0
    %v2371 = vadd.f32 %v1299, %v2370
    %v2372 = vpop.f32.mrf.mxu0
    %2373 = vdwg.mxu0
    %2375 = vrot.lane.b32.xlu0 %v2303, 32
    %v2376 = vpop.permute.xlu0 %2375
    %v2377 = vsel %vm188, %v2376, 0
    %2379 = vmatprep.subr.mxu0 0.0
    %2380 = vmatpush1.msra.mxu0 0.0
    %2381 = vmatprep.subr.mxu0 0.0
    %2382 = vmatpush1.msra.mxu0 0.0
    %2383 = vmatprep.subr.mxu0 0.0
    %2384 = vmatpush1.msra.mxu0 0.0
    %2385 = vmatprep.subr.mxu0 0.0
    %2386 = vmatpush1.msra.mxu0 0.0
    %2387 = vmatprep.subr.mxu0 0.0
    %2388 = vmatpush1.msra.mxu0 0.0
    %2389 = vmatprep.subr.mxu0 0.0
    %2390 = vmatpush1.msra.mxu0 0.0
    %2391 = vmatprep.subr.mxu0 0.0
    %2392 = vmatpush1.msra.mxu0 0.0
    %2393 = vmatprep.subr.mxu0 0.0
    %2394 = vmatpush1.msra.mxu0 0.0
    %2395 = vmatprep.subr.mxu0 0.0
    %2396 = vmatpush1.msra.mxu0 0.0
    %2397 = vmatprep.subr.mxu0 0.0
    %2398 = vmatpush1.msra.mxu0 0.0
    %2399 = vmatprep.subr.mxu0 0.0
    %2400 = vmatpush1.msra.mxu0 0.0
    %2401 = vmatprep.subr.mxu0 0.0
    %2402 = vmatpush1.msra.mxu0 0.0
    %2403 = vmatprep.subr.mxu0 0.0
    %2404 = vmatpush1.msra.mxu0 %v1293
    %2405 = vmatprep.subr.mxu0 0.0
    %2406 = vmatpush1.msra.mxu0 %v1292
    %2407 = vmatprep.subr.mxu0 0.0
    %2408 = vmatpush1.msra.mxu0 %v1291
    %2409 = vmatprep.subr.mxu0 0.0
    %2410 = vmatpush1.msra.mxu0 %v1290
    %2411 = vmatprep.subr.mxu0 0.0
    %2412 = vmatpush2.msra.mxu0 0.0
    %2413 = vmatprep.subr.mxu0 0.0
    %2414 = vmatpush2.msra.mxu0 0.0
    %2415 = vmatprep.subr.mxu0 0.0
    %2416 = vmatpush2.msra.mxu0 0.0
    %2417 = vmatprep.subr.mxu0 0.0
    %2418 = vmatpush2.msra.mxu0 0.0
    %2419 = vmatprep.subr.mxu0 0.0
    %2420 = vmatpush2.msra.mxu0 0.0
    %2421 = vmatprep.subr.mxu0 0.0
    %2422 = vmatpush2.msra.mxu0 0.0
    %2423 = vmatprep.subr.mxu0 0.0
    %2424 = vmatpush2.msra.mxu0 0.0
    %2425 = vmatprep.subr.mxu0 0.0
    %2426 = vmatpush2.msra.mxu0 0.0
    %2427 = vmatprep.subr.mxu0 0.0
    %2428 = vmatpush2.msra.mxu0 0.0
    %2429 = vmatprep.subr.mxu0 0.0
    %2430 = vmatpush2.msra.mxu0 0.0
    %2431 = vmatprep.subr.mxu0 0.0
    %2432 = vmatpush2.msra.mxu0 0.0
    %2433 = vmatprep.subr.mxu0 0.0
    %2434 = vmatpush2.msra.mxu0 0.0
    %2435 = vmatprep.subr.mxu0 0.0
    %2436 = vmatpush2.msra.mxu0 0.0
    %2437 = vmatprep.subr.mxu0 0.0
    %2438 = vmatpush2.msra.mxu0 0.0
    %2439 = vmatprep.subr.mxu0 0.0
    %2440 = vmatpush2.msra.mxu0 0.0
    %2441 = vmatprep.subr.mxu0 0.0
    %2442 = vmatpush2.msra.mxu0 0.0
    %2443 = vmatprep.mubr.f32.mxu0 0.0
    %2444 = vmatmul.mubr.f32.gmra.mxu0 %v2377
    %v2445 = vpop.f32.mrf.mxu0
    %v2446 = vadd.f32 0.0, %v2445
    %v2447 = vpop.f32.mrf.mxu0
    %2448 = vdwg.mxu0
    %v2449 = vadd.f32 %v2371, %v2446
    %v2450 = vmul.f32 %v2449, 0.5
    %v2451 = vtanh.pop %v2450
    %v2452 = vadd.f32 %v2451, 1.0
    %v2453 = vmul.f32 %v2452, 0.5
    %v2454 = vtanh.pop %v2449
    %v2455 = vmul.f32 %v2453, %v2297
    %2457 = vrot.lane.b32.xlu0 %v2454, 64
    %v2458 = vpop.permute.xlu0 %2457
    %v2460 = vmul.f32 %v2453, %v2458
    %2462 = vrot.lane.b32.xlu0 %v2460, 32
    %v2463 = vpop.permute.xlu0 %2462
    %v2465 = vadd.f32 %v2455, %v2463
    %v2466 = vtanh.pop %v2465
    %2468 = vrot.lane.b32.xlu0 %v2466, 64
    %v2469 = vpop.permute.xlu0 %2468
    %v2471 = vmul.f32 %v2453, %v2469
    %v2472 = vrot.slane %v1260, 7
    %v2473 = vrot.slane %v1261, 6
    %v2474 = vsel %vm315, %v2473, %v2472
    %2475 = vrot.lane.b32.xlu0 %v2474, 32
    %v2476 = vpop.permute.xlu0 %2475
    %v2477 = vsel %vm188, %v2476, 0
    %2479 = vmatprep.subr.mxu0 0.0
    %2480 = vmatpush1.msra.mxu0 0.0
    %2481 = vmatprep.subr.mxu0 0.0
    %2482 = vmatpush1.msra.mxu0 0.0
    %2483 = vmatprep.subr.mxu0 0.0
    %2484 = vmatpush1.msra.mxu0 0.0
    %2485 = vmatprep.subr.mxu0 0.0
    %2486 = vmatpush1.msra.mxu0 0.0
    %2487 = vmatprep.subr.mxu0 0.0
    %2488 = vmatpush1.msra.mxu0 0.0
    %2489 = vmatprep.subr.mxu0 0.0
    %2490 = vmatpush1.msra.mxu0 0.0
    %2491 = vmatprep.subr.mxu0 0.0
    %2492 = vmatpush1.msra.mxu0 0.0
    %2493 = vmatprep.subr.mxu0 0.0
    %2494 = vmatpush1.msra.mxu0 0.0
    %2495 = vmatprep.subr.mxu0 0.0
    %2496 = vmatpush1.msra.mxu0 0.0
    %2497 = vmatprep.subr.mxu0 0.0
    %2498 = vmatpush1.msra.mxu0 0.0
    %2499 = vmatprep.subr.mxu0 0.0
    %2500 = vmatpush1.msra.mxu0 0.0
    %2501 = vmatprep.subr.mxu0 0.0
    %2502 = vmatpush1.msra.mxu0 0.0
    %2503 = vmatprep.subr.mxu0 0.0
    %2504 = vmatpush1.msra.mxu0 %v1289
    %2505 = vmatprep.subr.mxu0 0.0
    %2506 = vmatpush1.msra.mxu0 %v1288
    %2507 = vmatprep.subr.mxu0 0.0
    %2508 = vmatpush1.msra.mxu0 %v1287
    %2509 = vmatprep.subr.mxu0 0.0
    %2510 = vmatpush1.msra.mxu0 %v1286
    %2511 = vmatprep.subr.mxu0 0.0
    %2512 = vmatpush2.msra.mxu0 0.0
    %2513 = vmatprep.subr.mxu0 0.0
    %2514 = vmatpush2.msra.mxu0 0.0
    %2515 = vmatprep.subr.mxu0 0.0
    %2516 = vmatpush2.msra.mxu0 0.0
    %2517 = vmatprep.subr.mxu0 0.0
    %2518 = vmatpush2.msra.mxu0 0.0
    %2519 = vmatprep.subr.mxu0 0.0
    %2520 = vmatpush2.msra.mxu0 0.0
    %2521 = vmatprep.subr.mxu0 0.0
    %2522 = vmatpush2.msra.mxu0 0.0
    %2523 = vmatprep.subr.mxu0 0.0
    %2524 = vmatpush2.msra.mxu0 0.0
    %2525 = vmatprep.subr.mxu0 0.0
    %2526 = vmatpush2.msra.mxu0 0.0
    %2527 = vmatprep.subr.mxu0 0.0
    %2528 = vmatpush2.msra.mxu0 0.0
    %2529 = vmatprep.subr.mxu0 0.0
    %2530 = vmatpush2.msra.mxu0 0.0
    %2531 = vmatprep.subr.mxu0 0.0
    %2532 = vmatpush2.msra.mxu0 0.0
    %2533 = vmatprep.subr.mxu0 0.0
    %2534 = vmatpush2.msra.mxu0 0.0
    %2535 = vmatprep.subr.mxu0 0.0
    %2536 = vmatpush2.msra.mxu0 0.0
    %2537 = vmatprep.subr.mxu0 0.0
    %2538 = vmatpush2.msra.mxu0 0.0
    %2539 = vmatprep.subr.mxu0 0.0
    %2540 = vmatpush2.msra.mxu0 0.0
    %2541 = vmatprep.subr.mxu0 0.0
    %2542 = vmatpush2.msra.mxu0 0.0
    %2543 = vmatprep.mubr.f32.mxu0 0.0
    %2544 = vmatmul.mubr.f32.gmra.mxu0 %v2477
    %v2545 = vpop.f32.mrf.mxu0
    %v2546 = vadd.f32 %v1299, %v2545
    %v2547 = vpop.f32.mrf.mxu0
    %2548 = vdwg.mxu0
    %2550 = vrot.lane.b32.xlu0 %v2471, 32
    %v2551 = vpop.permute.xlu0 %2550
    %v2552 = vsel %vm188, %v2551, 0
    %2554 = vmatprep.subr.mxu0 0.0
    %2555 = vmatpush1.msra.mxu0 0.0
    %2556 = vmatprep.subr.mxu0 0.0
    %2557 = vmatpush1.msra.mxu0 0.0
    %2558 = vmatprep.subr.mxu0 0.0
    %2559 = vmatpush1.msra.mxu0 0.0
    %2560 = vmatprep.subr.mxu0 0.0
    %2561 = vmatpush1.msra.mxu0 0.0
    %2562 = vmatprep.subr.mxu0 0.0
    %2563 = vmatpush1.msra.mxu0 0.0
    %2564 = vmatprep.subr.mxu0 0.0
    %2565 = vmatpush1.msra.mxu0 0.0
    %2566 = vmatprep.subr.mxu0 0.0
    %2567 = vmatpush1.msra.mxu0 0.0
    %2568 = vmatprep.subr.mxu0 0.0
    %2569 = vmatpush1.msra.mxu0 0.0
    %2570 = vmatprep.subr.mxu0 0.0
    %2571 = vmatpush1.msra.mxu0 0.0
    %2572 = vmatprep.subr.mxu0 0.0
    %2573 = vmatpush1.msra.mxu0 0.0
    %2574 = vmatprep.subr.mxu0 0.0
    %2575 = vmatpush1.msra.mxu0 0.0
    %2576 = vmatprep.subr.mxu0 0.0
    %2577 = vmatpush1.msra.mxu0 0.0
    %2578 = vmatprep.subr.mxu0 0.0
    %2579 = vmatpush1.msra.mxu0 %v1293
    %2580 = vmatprep.subr.mxu0 0.0
    %2581 = vmatpush1.msra.mxu0 %v1292
    %2582 = vmatprep.subr.mxu0 0.0
    %2583 = vmatpush1.msra.mxu0 %v1291
    %2584 = vmatprep.subr.mxu0 0.0
    %2585 = vmatpush1.msra.mxu0 %v1290
    %2586 = vmatprep.subr.mxu0 0.0
    %2587 = vmatpush2.msra.mxu0 0.0
    %2588 = vmatprep.subr.mxu0 0.0
    %2589 = vmatpush2.msra.mxu0 0.0
    %2590 = vmatprep.subr.mxu0 0.0
    %2591 = vmatpush2.msra.mxu0 0.0
    %2592 = vmatprep.subr.mxu0 0.0
    %2593 = vmatpush2.msra.mxu0 0.0
    %2594 = vmatprep.subr.mxu0 0.0
    %2595 = vmatpush2.msra.mxu0 0.0
    %2596 = vmatprep.subr.mxu0 0.0
    %2597 = vmatpush2.msra.mxu0 0.0
    %2598 = vmatprep.subr.mxu0 0.0
    %2599 = vmatpush2.msra.mxu0 0.0
    %2600 = vmatprep.subr.mxu0 0.0
    %2601 = vmatpush2.msra.mxu0 0.0
    %2602 = vmatprep.subr.mxu0 0.0
    %2603 = vmatpush2.msra.mxu0 0.0
    %2604 = vmatprep.subr.mxu0 0.0
    %2605 = vmatpush2.msra.mxu0 0.0
    %2606 = vmatprep.subr.mxu0 0.0
    %2607 = vmatpush2.msra.mxu0 0.0
    %2608 = vmatprep.subr.mxu0 0.0
    %2609 = vmatpush2.msra.mxu0 0.0
    %2610 = vmatprep.subr.mxu0 0.0
    %2611 = vmatpush2.msra.mxu0 0.0
    %2612 = vmatprep.subr.mxu0 0.0
    %2613 = vmatpush2.msra.mxu0 0.0
    %2614 = vmatprep.subr.mxu0 0.0
    %2615 = vmatpush2.msra.mxu0 0.0
    %2616 = vmatprep.subr.mxu0 0.0
    %2617 = vmatpush2.msra.mxu0 0.0
    %2618 = vmatprep.mubr.f32.mxu0 0.0
    %2619 = vmatmul.mubr.f32.gmra.mxu0 %v2552
    %v2620 = vpop.f32.mrf.mxu0
    %v2621 = vadd.f32 0.0, %v2620
    %v2622 = vpop.f32.mrf.mxu0
    %2623 = vdwg.mxu0
    %v2624 = vadd.f32 %v2546, %v2621
    %v2625 = vmul.f32 %v2624, 0.5
    %v2626 = vtanh.pop %v2625
    %v2627 = vadd.f32 %v2626, 1.0
    %v2628 = vmul.f32 %v2627, 0.5
    %v2629 = vtanh.pop %v2624
    %v2630 = vmul.f32 %v2628, %v2465
    %2632 = vrot.lane.b32.xlu0 %v2629, 64
    %v2633 = vpop.permute.xlu0 %2632
    %v2635 = vmul.f32 %v2628, %v2633
    %2637 = vrot.lane.b32.xlu0 %v2635, 32
    %v2638 = vpop.permute.xlu0 %2637
    %v2640 = vadd.f32 %v2630, %v2638
    %v2641 = vtanh.pop %v2640
    %2643 = vrot.lane.b32.xlu0 %v2641, 64
    %v2644 = vpop.permute.xlu0 %2643
    %v2646 = vmul.f32 %v2628, %v2644
    %2648 = vrot.lane.b32.xlu0 %v2646, 32
    %v2649 = vpop.permute.xlu0 %2648
    %s2651 = scalar_lea.vmem [#allocation11], 2
    %vm2652 = vcmask 254976
    %2653 = vst.msk [vmem:[%s2651] sm:$0x3] %vm2652, %v2649
    %2655 = vrot.lane.b32.xlu0 %v2640, 96
    %v2656 = vpop.permute.xlu0 %2655
    %s2658 = scalar_lea.vmem [#allocation12], 2
    %2659 = vst.msk [vmem:[%s2658] sm:$0x3] %vm2652, %v2656
    %v2661 = vunpack.c.l.s4 1966171168
    %v2662 = vunpack.c.0.s8 %v2661
    %v2663 = vlaneseq
    %v2664 = vshrl.u32 %v2663, 7
    %v2665 = vsub.s32 %v2662, %v2664
    %v2666 = vrot.slane %v1463, %v2665
    %v2667 = vcombine.high %v2666, %v2666
    %v2669 = vunpack.c.l.s4 1966171168
    %v2670 = vunpack.c.0.s8 %v2669
    %v2671 = vlaneseq
    %v2672 = vshrl.u32 %v2671, 7
    %v2673 = vsub.s32 %v2670, %v2672
    %v2674 = vrot.slane %v2666, %v2673
    %v2676 = vunpack.c.l.s4 1966171168
    %v2677 = vunpack.c.0.s8 %v2676
    %v2678 = vlaneseq
    %v2679 = vshrl.u32 %v2678, 7
    %v2680 = vsub.s32 %v2677, %v2679
    %v2681 = vrot.slane %v2667, %v2680
    %v2685 = vunpack.c.l.s4 1966171168
    %v2686 = vunpack.c.0.s8 %v2685
    %v2687 = vlaneseq
    %v2688 = vshrl.u32 %v2687, 7
    %v2689 = vsub.s32 %v2686, %v2688
    %v2690 = vrot.slane %v1631, %v2689
    %v2691 = vcombine.high %v2690, %v2690
    %v2693 = vunpack.c.l.s4 1966171168
    %v2694 = vunpack.c.0.s8 %v2693
    %v2695 = vlaneseq
    %v2696 = vshrl.u32 %v2695, 7
    %v2697 = vsub.s32 %v2694, %v2696
    %v2698 = vrot.slane %v2690, %v2697
    %v2700 = vunpack.c.l.s4 1966171168
    %v2701 = vunpack.c.0.s8 %v2700
    %v2702 = vlaneseq
    %v2703 = vshrl.u32 %v2702, 7
    %v2704 = vsub.s32 %v2701, %v2703
    %v2705 = vrot.slane %v2691, %v2704
    %v2707 = vunpack.c.l.s4 1966171168
    %v2708 = vunpack.c.0.s8 %v2707
    %v2709 = vlaneseq
    %v2710 = vshrl.u32 %v2709, 7
    %v2711 = vsub.s32 %v2708, %v2710
    %v2712 = vrot.slane %v1799, %v2711
    %v2713 = vcombine.high %v2712, %v2712
    %v2715 = vunpack.c.l.s4 1966171168
    %v2716 = vunpack.c.0.s8 %v2715
    %v2717 = vlaneseq
    %v2718 = vshrl.u32 %v2717, 7
    %v2719 = vsub.s32 %v2716, %v2718
    %v2720 = vrot.slane %v2712, %v2719
    %v2722 = vunpack.c.l.s4 1966171168
    %v2723 = vunpack.c.0.s8 %v2722
    %v2724 = vlaneseq
    %v2725 = vshrl.u32 %v2724, 7
    %v2726 = vsub.s32 %v2723, %v2725
    %v2727 = vrot.slane %v2713, %v2726
    %v2729 = vunpack.c.l.s4 1966171168
    %v2730 = vunpack.c.0.s8 %v2729
    %v2731 = vlaneseq
    %v2732 = vshrl.u32 %v2731, 7
    %v2733 = vsub.s32 %v2730, %v2732
    %v2734 = vrot.slane %v1967, %v2733
    %v2735 = vcombine.high %v2734, %v2734
    %v2737 = vunpack.c.l.s4 1966171168
    %v2738 = vunpack.c.0.s8 %v2737
    %v2739 = vlaneseq
    %v2740 = vshrl.u32 %v2739, 7
    %v2741 = vsub.s32 %v2738, %v2740
    %v2742 = vrot.slane %v2734, %v2741
    %v2744 = vunpack.c.l.s4 1966171168
    %v2745 = vunpack.c.0.s8 %v2744
    %v2746 = vlaneseq
    %v2747 = vshrl.u32 %v2746, 7
    %v2748 = vsub.s32 %v2745, %v2747
    %v2749 = vrot.slane %v2735, %v2748
    %v2751 = vunpack.c.l.s4 1966171168
    %v2752 = vunpack.c.0.s8 %v2751
    %v2753 = vlaneseq
    %v2754 = vshrl.u32 %v2753, 7
    %v2755 = vsub.s32 %v2752, %v2754
    %v2756 = vrot.slane %v2135, %v2755
    %v2757 = vcombine.high %v2756, %v2756
    %v2759 = vunpack.c.l.s4 1966171168
    %v2760 = vunpack.c.0.s8 %v2759
    %v2761 = vlaneseq
    %v2762 = vshrl.u32 %v2761, 7
    %v2763 = vsub.s32 %v2760, %v2762
    %v2764 = vrot.slane %v2756, %v2763
    %v2766 = vunpack.c.l.s4 1966171168
    %v2767 = vunpack.c.0.s8 %v2766
    %v2768 = vlaneseq
    %v2769 = vshrl.u32 %v2768, 7
    %v2770 = vsub.s32 %v2767, %v2769
    %v2771 = vrot.slane %v2757, %v2770
    %v2773 = vunpack.c.l.s4 1966171168
    %v2774 = vunpack.c.0.s8 %v2773
    %v2775 = vlaneseq
    %v2776 = vshrl.u32 %v2775, 7
    %v2777 = vsub.s32 %v2774, %v2776
    %v2778 = vrot.slane %v2303, %v2777
    %v2779 = vcombine.high %v2778, %v2778
    %v2781 = vunpack.c.l.s4 1966171168
    %v2782 = vunpack.c.0.s8 %v2781
    %v2783 = vlaneseq
    %v2784 = vshrl.u32 %v2783, 7
    %v2785 = vsub.s32 %v2782, %v2784
    %v2786 = vrot.slane %v2778, %v2785
    %v2788 = vunpack.c.l.s4 1966171168
    %v2789 = vunpack.c.0.s8 %v2788
    %v2790 = vlaneseq
    %v2791 = vshrl.u32 %v2790, 7
    %v2792 = vsub.s32 %v2789, %v2791
    %v2793 = vrot.slane %v2779, %v2792
    %v2795 = vunpack.c.l.s4 1966171168
    %v2796 = vunpack.c.0.s8 %v2795
    %v2797 = vlaneseq
    %v2798 = vshrl.u32 %v2797, 7
    %v2799 = vsub.s32 %v2796, %v2798
    %v2800 = vrot.slane %v2471, %v2799
    %v2801 = vcombine.high %v2800, %v2800
    %v2803 = vunpack.c.l.s4 1966171168
    %v2804 = vunpack.c.0.s8 %v2803
    %v2805 = vlaneseq
    %v2806 = vshrl.u32 %v2805, 7
    %v2807 = vsub.s32 %v2804, %v2806
    %v2808 = vrot.slane %v2800, %v2807
    %v2810 = vunpack.c.l.s4 1966171168
    %v2811 = vunpack.c.0.s8 %v2810
    %v2812 = vlaneseq
    %v2813 = vshrl.u32 %v2812, 7
    %v2814 = vsub.s32 %v2811, %v2813
    %v2815 = vrot.slane %v2801, %v2814
    %v2817 = vunpack.c.l.s4 1966171168
    %v2818 = vunpack.c.0.s8 %v2817
    %v2819 = vlaneseq
    %v2820 = vshrl.u32 %v2819, 7
    %v2821 = vsub.s32 %v2818, %v2820
    %v2822 = vrot.slane %v2646, %v2821
    %v2823 = vcombine.high %v2822, %v2822
    %v2825 = vunpack.c.l.s4 1966171168
    %v2826 = vunpack.c.0.s8 %v2825
    %v2827 = vlaneseq
    %v2828 = vshrl.u32 %v2827, 7
    %v2829 = vsub.s32 %v2826, %v2828
    %v2830 = vrot.slane %v2822, %v2829
    %v2832 = vunpack.c.l.s4 1966171168
    %v2833 = vunpack.c.0.s8 %v2832
    %v2834 = vlaneseq
    %v2835 = vshrl.u32 %v2834, 7
    %v2836 = vsub.s32 %v2833, %v2835
    %v2837 = vrot.slane %v2823, %v2836
    %v2838 = vlaneseq
    %v2839 = vshrl.u32 %v2838, 7
    %v2840 = vsub.s32 0, %v2839
    %v2841 = vrot.slane %v2698, %v2840
    %v2842 = vlaneseq
    %v2843 = vshrl.u32 %v2842, 7
    %v2844 = vsub.s32 0, %v2843
    %v2845 = vrot.slane %v2705, %v2844
    %v2848 = vlaneseq
    %v2849 = vshrl.u32 %v2848, 7
    %v2850 = vsub.s32 0, %v2849
    %v2851 = vrot.slane %v2720, %v2850
    %v2852 = vlaneseq
    %v2853 = vshrl.u32 %v2852, 7
    %v2854 = vsub.s32 0, %v2853
    %v2855 = vrot.slane %v2727, %v2854
    %v2858 = vlaneseq
    %v2859 = vshrl.u32 %v2858, 7
    %v2860 = vsub.s32 0, %v2859
    %v2861 = vrot.slane %v2742, %v2860
    %v2862 = vlaneseq
    %v2863 = vshrl.u32 %v2862, 7
    %v2864 = vsub.s32 0, %v2863
    %v2865 = vrot.slane %v2749, %v2864
    %v2868 = vlaneseq
    %v2869 = vshrl.u32 %v2868, 7
    %v2870 = vsub.s32 0, %v2869
    %v2871 = vrot.slane %v2764, %v2870
    %v2872 = vlaneseq
    %v2873 = vshrl.u32 %v2872, 7
    %v2874 = vsub.s32 0, %v2873
    %v2875 = vrot.slane %v2771, %v2874
    %v2878 = vlaneseq
    %v2879 = vshrl.u32 %v2878, 7
    %v2880 = vsub.s32 0, %v2879
    %v2881 = vrot.slane %v2786, %v2880
    %v2882 = vlaneseq
    %v2883 = vshrl.u32 %v2882, 7
    %v2884 = vsub.s32 0, %v2883
    %v2885 = vrot.slane %v2793, %v2884
    %v2888 = vlaneseq
    %v2889 = vshrl.u32 %v2888, 7
    %v2890 = vsub.s32 0, %v2889
    %v2891 = vrot.slane %v2808, %v2890
    %v2892 = vlaneseq
    %v2893 = vshrl.u32 %v2892, 7
    %v2894 = vsub.s32 0, %v2893
    %v2895 = vrot.slane %v2815, %v2894
    %v2898 = vlaneseq
    %v2899 = vshrl.u32 %v2898, 7
    %v2900 = vsub.s32 0, %v2899
    %v2901 = vrot.slane %v2830, %v2900
    %v2902 = vlaneseq
    %v2903 = vshrl.u32 %v2902, 7
    %v2904 = vsub.s32 0, %v2903
    %v2905 = vrot.slane %v2837, %v2904
    %vm2908 = vcmask 1040384
    %v2909 = vsel %vm2908, %v2674, %v2841
    %v2910 = vsel %vm2908, %v2681, %v2845
    %vm2911 = vcmask 1041408
    %v2912 = vsel %vm2911, %v2909, %v2851
    %v2913 = vsel %vm2911, %v2910, %v2855
    %vm2914 = vcmask 1042432
    %v2915 = vsel %vm2914, %v2912, %v2861
    %v2916 = vsel %vm2914, %v2913, %v2865
    %vm2917 = vcmask 1043456
    %v2918 = vsel %vm2917, %v2915, %v2871
    %v2919 = vsel %vm2917, %v2916, %v2875
    %vm2920 = vcmask 1044480
    %v2921 = vsel %vm2920, %v2918, %v2881
    %v2922 = vsel %vm2920, %v2919, %v2885
    %vm2923 = vcmask 1045504
    %v2924 = vsel %vm2923, %v2921, %v2891
    %v2925 = vsel %vm2923, %v2922, %v2895
    %vm2926 = vcmask 1046528
    %v2927 = vsel %vm2926, %v2924, %v2901
    %v2928 = vsel %vm2926, %v2925, %v2905
    %v2929 = vld [vmem:[%s7] sm:$0xff]
    %v2930 = vld [vmem:[%s7 + $0x8] sm:$0xff]
    %v2931 = vld [vmem:[%s7 + $0x10] sm:$0xff]
    %v2932 = vld [vmem:[%s7 + $0x18] sm:$0xff]
    %v2933 = vld [vmem:[#allocation2] sm:$0x1]
    %v2935 = vlaneseq
    %v2936 = vshrl.u32 %v2935, 7
    %v2937 = vsub.s32 0, %v2936
    %v2938 = vrot.slane %v2933, %v2937
    %2942 = vrot.lane.b32.xlu0 %v2927, 32
    %v2943 = vpop.permute.xlu0 %2942
    %2944 = vrot.lane.b32.xlu0 %v2928, 32
    %v2945 = vpop.permute.xlu0 %2944
    %v2946 = vsel %vm188, %v2943, 0
    %v2948 = vsel %vm188, %v2945, 0
    %2950 = vmatprep.subr.mxu0 0.0
    %2951 = vmatpush1.msra.mxu0 0.0
    %2952 = vmatprep.subr.mxu0 0.0
    %2953 = vmatpush1.msra.mxu0 0.0
    %2954 = vmatprep.subr.mxu0 0.0
    %2955 = vmatpush1.msra.mxu0 0.0
    %2956 = vmatprep.subr.mxu0 0.0
    %2957 = vmatpush1.msra.mxu0 0.0
    %2958 = vmatprep.subr.mxu0 0.0
    %2959 = vmatpush1.msra.mxu0 0.0
    %2960 = vmatprep.subr.mxu0 0.0
    %2961 = vmatpush1.msra.mxu0 0.0
    %2962 = vmatprep.subr.mxu0 0.0
    %2963 = vmatpush1.msra.mxu0 0.0
    %2964 = vmatprep.subr.mxu0 0.0
    %2965 = vmatpush1.msra.mxu0 0.0
    %2966 = vmatprep.subr.mxu0 0.0
    %2967 = vmatpush1.msra.mxu0 0.0
    %2968 = vmatprep.subr.mxu0 0.0
    %2969 = vmatpush1.msra.mxu0 0.0
    %2970 = vmatprep.subr.mxu0 0.0
    %2971 = vmatpush1.msra.mxu0 0.0
    %2972 = vmatprep.subr.mxu0 0.0
    %2973 = vmatpush1.msra.mxu0 0.0
    %2974 = vmatprep.subr.mxu0 0.0
    %2975 = vmatpush1.msra.mxu0 %v2932
    %2976 = vmatprep.subr.mxu0 0.0
    %2977 = vmatpush1.msra.mxu0 %v2931
    %2978 = vmatprep.subr.mxu0 0.0
    %2979 = vmatpush1.msra.mxu0 %v2930
    %2980 = vmatprep.subr.mxu0 0.0
    %2981 = vmatpush1.msra.mxu0 %v2929
    %2982 = vmatprep.subr.mxu0 0.0
    %2983 = vmatpush2.msra.mxu0 0.0
    %2984 = vmatprep.subr.mxu0 0.0
    %2985 = vmatpush2.msra.mxu0 0.0
    %2986 = vmatprep.subr.mxu0 0.0
    %2987 = vmatpush2.msra.mxu0 0.0
    %2988 = vmatprep.subr.mxu0 0.0
    %2989 = vmatpush2.msra.mxu0 0.0
    %2990 = vmatprep.subr.mxu0 0.0
    %2991 = vmatpush2.msra.mxu0 0.0
    %2992 = vmatprep.subr.mxu0 0.0
    %2993 = vmatpush2.msra.mxu0 0.0
    %2994 = vmatprep.subr.mxu0 0.0
    %2995 = vmatpush2.msra.mxu0 0.0
    %2996 = vmatprep.subr.mxu0 0.0
    %2997 = vmatpush2.msra.mxu0 0.0
    %2998 = vmatprep.subr.mxu0 0.0
    %2999 = vmatpush2.msra.mxu0 0.0
    %3000 = vmatprep.subr.mxu0 0.0
    %3001 = vmatpush2.msra.mxu0 0.0
    %3002 = vmatprep.subr.mxu0 0.0
    %3003 = vmatpush2.msra.mxu0 0.0
    %3004 = vmatprep.subr.mxu0 0.0
    %3005 = vmatpush2.msra.mxu0 0.0
    %3006 = vmatprep.subr.mxu0 0.0
    %3007 = vmatpush2.msra.mxu0 0.0
    %3008 = vmatprep.subr.mxu0 0.0
    %3009 = vmatpush2.msra.mxu0 0.0
    %3010 = vmatprep.subr.mxu0 0.0
    %3011 = vmatpush2.msra.mxu0 0.0
    %3012 = vmatprep.subr.mxu0 0.0
    %3013 = vmatpush2.msra.mxu0 0.0
    %3014 = vmatprep.mubr.f32.mxu0 0.0
    %3015 = vmatmul.mubr.f32.gmra.mxu0 %v2946
    %v3016 = vpop.f32.mrf.mxu0
    %v3017 = vadd.f32 %v2938, %v3016
    %v3018 = vpop.f32.mrf.mxu0
    %3019 = vmatprep.mubr.f32.mxu0 0.0
    %3020 = vmatmul.mubr.f32.gmra.mxu0 %v2948
    %v3021 = vpop.f32.mrf.mxu0
    %v3022 = vadd.f32 %v2938, %v3021
    %v3023 = vpop.f32.mrf.mxu0
    %3024 = vdwg.mxu0
    %vm3025 = vcmask 7168
    %3026 = vst.msk [vmem:[%s9] sm:$0xff] %vm3025, %v3017
    %3027 = vst.msk [vmem:[%s9 + $0x8] sm:$0xff] %vm3025, %v3022
    // Predicated region
    $region54: #{net_forward.1} parent=1 // pred_check
      _
    $region55: #{net_forward.1} parent=1 // pred_check_branch
      %3029 = sbr.rel (0) target = $region57
    $region56: #{net_forward.1} parent=1 // pred_region
      _
    $region57: #{net_forward.1} parent=1 // pred_fallthru
      _
    // Predicated region
    $region58: #{net_forward.1} parent=1 // pred_check
      _
    $region59: #{net_forward.1} parent=1 // pred_check_branch
      %3031 = sbr.rel (0) target = $region61
    $region60: #{net_forward.1} parent=1 // pred_region
      %s3033 = ssub.s32 64, 64
      %3034 = vsyncadd [#allocation5], %s3033
      %s3035 = sshll.u32 [#allocation11], 4
      %s3036 = int_to_ptr.vmem [resolvable:$true] %s3035
      %3041 = dma.vmem_to_hbm [thread:$0]  %s3036, 64, %s10, [#allocation5], 32, 32, 2
    $region61: #{net_forward.1} parent=1 // pred_fallthru
      _
    // Predicated region
    $region62: #{net_forward.1} parent=1 // pred_check
      _
    $region63: #{net_forward.1} parent=1 // pred_check_branch
      %3043 = sbr.rel (0) target = $region65
    $region64: #{net_forward.1} parent=1 // pred_region
      %s3045 = ssub.s32 64, 64
      %3046 = vsyncadd [#allocation13], %s3045
      %s3047 = sshll.u32 [#allocation12], 4
      %s3048 = int_to_ptr.vmem [resolvable:$true] %s3047
      %3053 = dma.vmem_to_hbm [thread:$0]  %s3048, 64, %s11, [#allocation13], 32, 32, 2
    $region65: #{net_forward.1} parent=1 // pred_fallthru
      _
    // Predicated region
    $region66: #{net_forward.1} parent=1 // pred_check
      _
    $region67: #{net_forward.1} parent=1 // pred_check_branch
      %3055 = sbr.rel (0) target = $region69
    $region68: #{net_forward.1} parent=1 // pred_region
      _
    $region69: #{net_forward.1} parent=1 // pred_fallthru
      _
    // Predicated region
    $region70: #{net_forward.1} parent=1 // pred_check
      _
    $region71: #{net_forward.1} parent=1 // pred_check_branch
      %3057 = sbr.rel (0) target = $region73
    $region72: #{net_forward.1} parent=1 // pred_region
      %3058 = dma.done [#allocation5], 64
    $region73: #{net_forward.1} parent=1 // pred_fallthru
      _
    // Predicated region
    $region74: #{net_forward.1} parent=1 // pred_check
      _
    $region75: #{net_forward.1} parent=1 // pred_check_branch
      %3060 = sbr.rel (0) target = $region77
    $region76: #{net_forward.1} parent=1 // pred_region
      %3061 = dma.done [#allocation13], 64
    $region77: #{net_forward.1} parent=1 // pred_fallthru
      _
    %3062 = vsyncpa [#allocation4], 1
    %3063 = vsyncpa [#allocation7], 1
    %3064 = vsyncpa [#allocation10], 1
    %3065 = vsyncpa [#allocation5], 1
    %3066 = vsyncpa [#allocation13], 1

</llo_original>
